<compile_context>
chip_gen: v7x
topology: tpu7x:2x2x1
jax: 0.10.0
libtpu: 0.0.40
codegen_flags: <defaults>
</compile_context>

<pallas_src>
import functools

import jax
import jax.numpy as jnp
from jax.experimental import pallas as pl
from jax.experimental.pallas import tpu as pltpu

INPUT_DIM = 784
HIDDEN_DIM = 400
LATENT_DIM = 10
NUM_EMB = 64
EMB_DIM = 10      # == LATENT_DIM (required for the quantizer)
BATCH = 32


def vqvae_kernel(x_ref, w1_ref, b1_ref, w2_ref, b2_ref,
                 emb_ref, emb_t_ref, emb_sq_ref,
                 emb_w3_ref, b3_ref, w4_ref, b4_ref,
                 xrec_ref, ze_ref, zq_ref):
    x = x_ref[...]                                                       # (bb, 784) bf16

    # ---- encoder: Linear(784,400) + ReLU + Linear(400,10) ----
    h = jnp.dot(x, w1_ref[...], preferred_element_type=jnp.float32) + b1_ref[...]
    h = jnp.maximum(h, 0.0)
    z_e = jnp.dot(h.astype(jnp.bfloat16), w2_ref[...],
                  preferred_element_type=jnp.float32) + b2_ref[...]      # (bb, 10) f32
    ze_ref[...] = z_e

    # ---- quantize: argmin_k ||z_e - e_k||^2 == argmin_k (||e_k||^2 - 2 z_e . e_k) ----
    cross = jnp.dot(z_e.astype(jnp.bfloat16), emb_t_ref[...],
                    preferred_element_type=jnp.float32)                  # (bb, 64)
    d2 = emb_sq_ref[...] - 2.0 * cross                                   # ||z_e||^2 dropped (row-const)
    k_iota = jax.lax.broadcasted_iota(jnp.int32, d2.shape, 1).astype(jnp.float32)
    min_d = jnp.min(d2, axis=1, keepdims=True)                           # (bb, 1)
    idx = jnp.min(jnp.where(d2 == min_d, k_iota, float(NUM_EMB)),
                  axis=1, keepdims=True)                                 # first-index tie-break
    onehot = (k_iota == idx).astype(jnp.bfloat16)                        # (bb, 64), exact 0/1

    # z_q output: gather-by-matmul against the (bf16-stored) codebook -> exact rows.
    zq_ref[...] = jnp.dot(onehot, emb_ref[...], preferred_element_type=jnp.float32)

    # ---- decoder: layer-1 folded into codebook (h2 = onehot @ (emb @ w3) + b3) ----
    h2 = jnp.dot(onehot, emb_w3_ref[...],
                 preferred_element_type=jnp.float32) + b3_ref[...]       # (bb, 400)
    h2 = jnp.maximum(h2, 0.0)
    logits = jnp.dot(h2.astype(jnp.bfloat16), w4_ref[...],
                     preferred_element_type=jnp.float32) + b4_ref[...]   # (bb, 784)
    xrec_ref[...] = jax.nn.sigmoid(logits)


def prepare_params(params):
    """One-time layout/dtype prep (outside the per-call path):
    fold the decoder's first layer into the codebook (emb_w3 = emb @ w3), pre-transpose
    the codebook, precompute ||e_k||^2, and store all non-trivial weights as bf16.
    No zero padding is shipped from HBM."""
    (w1, b1, w2, b2, emb, w3, b3, w4, b4) = params
    emb_b = emb.astype(jnp.bfloat16)                  # effective (bf16) codebook
    emb_f = emb_b.astype(jnp.float32)
    emb_w3 = jnp.dot(emb_f, w3, preferred_element_type=jnp.float32)   # (64, 400)
    return dict(
        w1=w1.astype(jnp.bfloat16), b1=b1,
        w2=w2.astype(jnp.bfloat16), b2=b2,
        emb=emb_b,                                    # (64, 10)  bf16 — z_q gather
        emb_t=emb_b.T,                                # (10, 64)  bf16 — quantizer cross
        emb_sq=jnp.sum(emb_f * emb_f, axis=1)[None, :],  # (1, 64) f32
        emb_w3=emb_w3.astype(jnp.bfloat16),           # (64, 400) bf16 — folded decoder L1
        b3=b3,
        w4=w4.astype(jnp.bfloat16), b4=b4,
    )


@functools.partial(jax.jit, static_argnames=("block_b",))
def vqvae_forward(x, prep, block_b=256):
    B = x.shape[0]
    bb = min(block_b, B)
    num_tiles = pl.cdiv(B, bb)
    Bp = num_tiles * bb

    x = x.astype(jnp.bfloat16)                        # halve the activation-input DMA
    if Bp != B:
        x = jnp.pad(x, ((0, Bp - B), (0, 0)))

    def row_spec(cols):
        return pl.BlockSpec((bb, cols), lambda i: (i, 0))

    def resident(shape):
        # full-array block + constant index map -> DMA'd once, VMEM-resident across tiles
        return pl.BlockSpec(shape, lambda i: (0,) * len(shape))

    args = (x, prep["w1"], prep["b1"], prep["w2"], prep["b2"],
            prep["emb"], prep["emb_t"], prep["emb_sq"],
            prep["emb_w3"], prep["b3"], prep["w4"], prep["b4"])

    in_specs = [row_spec(INPUT_DIM)] + [resident(a.shape) for a in args[1:]]
    out_specs = (row_spec(INPUT_DIM), row_spec(LATENT_DIM), row_spec(LATENT_DIM))
    out_shapes = (
        jax.ShapeDtypeStruct((Bp, INPUT_DIM), jnp.float32),   # x_recon
        jax.ShapeDtypeStruct((Bp, LATENT_DIM), jnp.float32),  # z_e
        jax.ShapeDtypeStruct((Bp, LATENT_DIM), jnp.float32),  # z_q
    )

    flops = 2 * Bp * (INPUT_DIM * HIDDEN_DIM + HIDDEN_DIM * LATENT_DIM
                      + LATENT_DIM * NUM_EMB + NUM_EMB * LATENT_DIM
                      + NUM_EMB * HIDDEN_DIM + HIDDEN_DIM * INPUT_DIM)
    bytes_accessed = sum(int(a.size) * a.dtype.itemsize for a in args) \
        + 4 * Bp * (INPUT_DIM + 2 * LATENT_DIM)
    cost = pl.CostEstimate(flops=flops, transcendentals=Bp * INPUT_DIM,
                           bytes_accessed=bytes_accessed)

    xrec, ze, zq = pl.pallas_call(
        vqvae_kernel,
        out_shape=out_shapes,
        grid=(num_tiles,),
        in_specs=in_specs,
        out_specs=out_specs,
        compiler_params=pltpu.CompilerParams(dimension_semantics=("parallel",)),
        cost_estimate=cost,
    )(*args)

    if Bp != B:
        xrec, ze, zq = xrec[:B], ze[:B], zq[:B]
    return xrec, ze, zq


def init_params(key):
    ks = jax.random.split(key, 9)

    def linear(kw, fan_in, fan_out):
        bound = 1.0 / jnp.sqrt(fan_in)
        w = jax.random.uniform(kw, (fan_in, fan_out), jnp.float32, -bound, bound)
        b = jax.random.uniform(jax.random.fold_in(kw, 1), (1, fan_out),
                               jnp.float32, -bound, bound)
        return w, b

    w1, b1 = linear(ks[0], INPUT_DIM, HIDDEN_DIM)
    w2, b2 = linear(ks[1], HIDDEN_DIM, LATENT_DIM)
    emb = jax.random.normal(ks[2], (NUM_EMB, EMB_DIM), jnp.float32)
    w3, b3 = linear(ks[3], LATENT_DIM, HIDDEN_DIM)
    w4, b4 = linear(ks[4], HIDDEN_DIM, INPUT_DIM)
    return (w1, b1, w2, b2, emb, w3, b3, w4, b4)


def reference_forward(x, prep):
    """Pure-JAX reference mirroring the kernel's exact dtype/associativity flow
    (bf16 weights, f32 accumulation, folded decoder layer 1, same distance formula)."""
    xb = x.astype(jnp.bfloat16)
    h = jnp.dot(xb, prep["w1"], preferred_element_type=jnp.float32) + prep["b1"]
    h = jnp.maximum(h, 0.0)
    z_e = jnp.dot(h.astype(jnp.bfloat16), prep["w2"],
                  preferred_element_type=jnp.float32) + prep["b2"]
    cross = jnp.dot(z_e.astype(jnp.bfloat16), prep["emb_t"],
                    preferred_element_type=jnp.float32)
    d2 = prep["emb_sq"] - 2.0 * cross
    idx = jnp.argmin(d2, axis=1)                       # first-index tie-break, like kernel
    z_q = prep["emb"][idx].astype(jnp.float32)
    h2 = jnp.maximum(prep["emb_w3"][idx].astype(jnp.float32) + prep["b3"], 0.0)
    logits = jnp.dot(h2.astype(jnp.bfloat16), prep["w4"],
                     preferred_element_type=jnp.float32) + prep["b4"]
    return jax.nn.sigmoid(logits), z_e, z_q


if __name__ == "__main__":
    # TODO(synk): the PyTorch forward's print(x.shape)/print(z_e.shape) debug prints are
    # intentionally omitted (no in-kernel equivalent needed for the computation).
    key = jax.random.PRNGKey(0)
    kx, kp = jax.random.split(key)
    x = jax.random.normal(kx, (BATCH, INPUT_DIM), jnp.float32)
    params = init_params(kp)
    prep = prepare_params(params)

    x_recon, z_e, z_q = vqvae_forward(x, prep, block_b=256)
    jax.block_until_ready((x_recon, z_e, z_q))

    xr_ref, ze_r, zq_r = reference_forward(x, prep)
    assert x_recon.shape == (BATCH, INPUT_DIM)
    assert z_e.shape == (BATCH, LATENT_DIM)
    assert z_q.shape == (BATCH, LATENT_DIM)
    # Kernel and reference share identical bf16 weight bits, the same distance formula,
    # and the same tie-break; remaining differences are MXU accumulation-order ULPs.
    assert jnp.allclose(x_recon, xr_ref, atol=1e-3)
    assert jnp.allclose(z_e, ze_r, atol=1e-3)
    assert jnp.allclose(z_q, zq_r, atol=1e-3)

    print("KERNEL_OK")
</pallas_src>

<mosaic_0001>
module attributes {stable_mosaic.version = 11 : i64} {
  func.func @vqvae_kernel(%arg0: i32, %arg1: memref<32x784xbf16, #tpu.memory_space<vmem>>, %arg2: memref<784x400xbf16, #tpu.memory_space<vmem>>, %arg3: memref<1x400xf32, #tpu.memory_space<vmem>>, %arg4: memref<400x10xbf16, #tpu.memory_space<vmem>>, %arg5: memref<1x10xf32, #tpu.memory_space<vmem>>, %arg6: memref<64x10xbf16, #tpu.memory_space<vmem>>, %arg7: memref<10x64xbf16, #tpu.memory_space<vmem>>, %arg8: memref<1x64xf32, #tpu.memory_space<vmem>>, %arg9: memref<64x400xbf16, #tpu.memory_space<vmem>>, %arg10: memref<1x400xf32, #tpu.memory_space<vmem>>, %arg11: memref<400x784xbf16, #tpu.memory_space<vmem>>, %arg12: memref<1x784xf32, #tpu.memory_space<vmem>>, %arg13: memref<32x784xf32, #tpu.memory_space<vmem>>, %arg14: memref<32x10xf32, #tpu.memory_space<vmem>>, %arg15: memref<32x10xf32, #tpu.memory_space<vmem>>) attributes {dimension_semantics = [#tpu.dimension_semantics<parallel>], iteration_bounds = array<i64: 1>, scalar_prefetch = 0 : i64, scratch_operands = 0 : i64, tpu.core_type = #tpu.core_type<tc>, window_params = [{transform_indices = @transform_0, window_bounds = array<i64: 32, 784>}, {pipeline_mode = #tpu.pipeline_mode<synchronous>, transform_indices = @transform_1, window_bounds = array<i64: 784, 400>}, {pipeline_mode = #tpu.pipeline_mode<synchronous>, transform_indices = @transform_2, window_bounds = array<i64: 1, 400>}, {pipeline_mode = #tpu.pipeline_mode<synchronous>, transform_indices = @transform_3, window_bounds = array<i64: 400, 10>}, {pipeline_mode = #tpu.pipeline_mode<synchronous>, transform_indices = @transform_4, window_bounds = array<i64: 1, 10>}, {pipeline_mode = #tpu.pipeline_mode<synchronous>, transform_indices = @transform_5, window_bounds = array<i64: 64, 10>}, {pipeline_mode = #tpu.pipeline_mode<synchronous>, transform_indices = @transform_6, window_bounds = array<i64: 10, 64>}, {pipeline_mode = #tpu.pipeline_mode<synchronous>, transform_indices = @transform_7, window_bounds = array<i64: 1, 64>}, {pipeline_mode = #tpu.pipeline_mode<synchronous>, transform_indices = @transform_8, window_bounds = array<i64: 64, 400>}, {pipeline_mode = #tpu.pipeline_mode<synchronous>, transform_indices = @transform_9, window_bounds = array<i64: 1, 400>}, {pipeline_mode = #tpu.pipeline_mode<synchronous>, transform_indices = @transform_10, window_bounds = array<i64: 400, 784>}, {pipeline_mode = #tpu.pipeline_mode<synchronous>, transform_indices = @transform_11, window_bounds = array<i64: 1, 784>}, {transform_indices = @transform_12, window_bounds = array<i64: 32, 784>}, {transform_indices = @transform_13, window_bounds = array<i64: 32, 10>}, {transform_indices = @transform_14, window_bounds = array<i64: 32, 10>}]} {
    %c0 = arith.constant 0 : index
    %c0_0 = arith.constant 0 : index
    %0 = vector.load %arg1[%c0, %c0_0] : memref<32x784xbf16, #tpu.memory_space<vmem>>, vector<32x784xbf16>
    %c0_1 = arith.constant 0 : index
    %c0_2 = arith.constant 0 : index
    %1 = vector.load %arg2[%c0_1, %c0_2] : memref<784x400xbf16, #tpu.memory_space<vmem>>, vector<784x400xbf16>
    %cst = arith.constant dense<0.000000e+00> : vector<32x400xf32>
    %2 = tpu.matmul %0, %1, %cst {dimension_numbers = #tpu.dot_dimension_numbers<[1], [0], [0], [1], [0, 0, 1, 1], [], []>} : vector<32x784xbf16>, vector<784x400xbf16>, vector<32x400xf32> -> vector<32x400xf32>
    %c0_3 = arith.constant 0 : index
    %c0_4 = arith.constant 0 : index
    %3 = vector.load %arg3[%c0_3, %c0_4] : memref<1x400xf32, #tpu.memory_space<vmem>>, vector<1x400xf32>
    %4 = vector.broadcast %3 : vector<1x400xf32> to vector<32x400xf32>
    %5 = arith.addf %2, %4 : vector<32x400xf32>
    %cst_5 = arith.constant 0.000000e+00 : f32
    %6 = vector.broadcast %cst_5 : f32 to vector<32x400xf32>
    %7 = arith.maximumf %5, %6 : vector<32x400xf32>
    %8 = arith.truncf %7 : vector<32x400xf32> to vector<32x400xbf16>
    %c0_6 = arith.constant 0 : index
    %c0_7 = arith.constant 0 : index
    %9 = vector.load %arg4[%c0_6, %c0_7] : memref<400x10xbf16, #tpu.memory_space<vmem>>, vector<400x10xbf16>
    %cst_8 = arith.constant dense<0.000000e+00> : vector<32x10xf32>
    %10 = tpu.matmul %8, %9, %cst_8 {dimension_numbers = #tpu.dot_dimension_numbers<[1], [0], [0], [1], [0, 0, 1, 1], [], []>} : vector<32x400xbf16>, vector<400x10xbf16>, vector<32x10xf32> -> vector<32x10xf32>
    %c0_9 = arith.constant 0 : index
    %c0_10 = arith.constant 0 : index
    %11 = vector.load %arg5[%c0_9, %c0_10] : memref<1x10xf32, #tpu.memory_space<vmem>>, vector<1x10xf32>
    %12 = vector.broadcast %11 : vector<1x10xf32> to vector<32x10xf32>
    %13 = arith.addf %10, %12 : vector<32x10xf32>
    %c0_11 = arith.constant 0 : index
    %c0_12 = arith.constant 0 : index
    %14 = vector.load %arg14[%c0_11, %c0_12] : memref<32x10xf32, #tpu.memory_space<vmem>>, vector<32x10xf32>
    tpu.vector_store %arg14[%c0_11, %c0_12], %13 {strides = array<i32>} : memref<32x10xf32, #tpu.memory_space<vmem>>, vector<32x10xf32>,
    %15 = arith.truncf %13 : vector<32x10xf32> to vector<32x10xbf16>
    %c0_13 = arith.constant 0 : index
    %c0_14 = arith.constant 0 : index
    %16 = vector.load %arg7[%c0_13, %c0_14] : memref<10x64xbf16, #tpu.memory_space<vmem>>, vector<10x64xbf16>
    %cst_15 = arith.constant dense<0.000000e+00> : vector<32x64xf32>
    %17 = tpu.matmul %15, %16, %cst_15 {dimension_numbers = #tpu.dot_dimension_numbers<[1], [0], [0], [1], [0, 0, 1, 1], [], []>} : vector<32x10xbf16>, vector<10x64xbf16>, vector<32x64xf32> -> vector<32x64xf32>
    %c0_16 = arith.constant 0 : index
    %c0_17 = arith.constant 0 : index
    %18 = vector.load %arg8[%c0_16, %c0_17] : memref<1x64xf32, #tpu.memory_space<vmem>>, vector<1x64xf32>
    %cst_18 = arith.constant 2.000000e+00 : f32
    %19 = vector.broadcast %cst_18 : f32 to vector<32x64xf32>
    %20 = arith.mulf %19, %17 : vector<32x64xf32>
    %21 = vector.broadcast %18 : vector<1x64xf32> to vector<32x64xf32>
    %22 = arith.subf %21, %20 : vector<32x64xf32>
    %23 = tpu.iota {dimensions = array<i32: 1>} : vector<32x64xi32>
    %24 = arith.sitofp %23 : vector<32x64xi32> to vector<32x64xf32>
    %cst_19 = arith.constant dense<0x7F800000> : vector<32xf32>
    %25 = vector.multi_reduction <minimumf>, %22, %cst_19 [1] : vector<32x64xf32> to vector<32xf32>
    %26 = vector.shape_cast %25 : vector<32xf32> to vector<32x1xf32>
    %27 = vector.broadcast %26 : vector<32x1xf32> to vector<32x64xf32>
    %28 = arith.cmpf oeq, %22, %27 : vector<32x64xf32>
    %cst_20 = arith.constant 6.400000e+01 : f32
    %29 = vector.broadcast %cst_20 : f32 to vector<32x64xf32>
    %30 = arith.select %28, %24, %29 : vector<32x64xi1>, vector<32x64xf32>
    %cst_21 = arith.constant dense<0x7F800000> : vector<32xf32>
    %31 = vector.multi_reduction <minimumf>, %30, %cst_21 [1] : vector<32x64xf32> to vector<32xf32>
    %32 = vector.shape_cast %31 : vector<32xf32> to vector<32x1xf32>
    %33 = vector.broadcast %32 : vector<32x1xf32> to vector<32x64xf32>
    %34 = arith.cmpf oeq, %24, %33 : vector<32x64xf32>
    %35 = arith.extui %34 : vector<32x64xi1> to vector<32x64xi32>
    %36 = arith.sitofp %35 : vector<32x64xi32> to vector<32x64xf32>
    %37 = arith.truncf %36 : vector<32x64xf32> to vector<32x64xbf16>
    %c0_22 = arith.constant 0 : index
    %c0_23 = arith.constant 0 : index
    %38 = vector.load %arg6[%c0_22, %c0_23] : memref<64x10xbf16, #tpu.memory_space<vmem>>, vector<64x10xbf16>
    %cst_24 = arith.constant dense<0.000000e+00> : vector<32x10xf32>
    %39 = tpu.matmul %37, %38, %cst_24 {dimension_numbers = #tpu.dot_dimension_numbers<[1], [0], [0], [1], [0, 0, 1, 1], [], []>} : vector<32x64xbf16>, vector<64x10xbf16>, vector<32x10xf32> -> vector<32x10xf32>
    %c0_25 = arith.constant 0 : index
    %c0_26 = arith.constant 0 : index
    %40 = vector.load %arg15[%c0_25, %c0_26] : memref<32x10xf32, #tpu.memory_space<vmem>>, vector<32x10xf32>
    tpu.vector_store %arg15[%c0_25, %c0_26], %39 {strides = array<i32>} : memref<32x10xf32, #tpu.memory_space<vmem>>, vector<32x10xf32>,
    %c0_27 = arith.constant 0 : index
    %c0_28 = arith.constant 0 : index
    %41 = vector.load %arg9[%c0_27, %c0_28] : memref<64x400xbf16, #tpu.memory_space<vmem>>, vector<64x400xbf16>
    %cst_29 = arith.constant dense<0.000000e+00> : vector<32x400xf32>
    %42 = tpu.matmul %37, %41, %cst_29 {dimension_numbers = #tpu.dot_dimension_numbers<[1], [0], [0], [1], [0, 0, 1, 1], [], []>} : vector<32x64xbf16>, vector<64x400xbf16>, vector<32x400xf32> -> vector<32x400xf32>
    %c0_30 = arith.constant 0 : index
    %c0_31 = arith.constant 0 : index
    %43 = vector.load %arg10[%c0_30, %c0_31] : memref<1x400xf32, #tpu.memory_space<vmem>>, vector<1x400xf32>
    %44 = vector.broadcast %43 : vector<1x400xf32> to vector<32x400xf32>
    %45 = arith.addf %42, %44 : vector<32x400xf32>
    %cst_32 = arith.constant 0.000000e+00 : f32
    %46 = vector.broadcast %cst_32 : f32 to vector<32x400xf32>
    %47 = arith.maximumf %45, %46 : vector<32x400xf32>
    %48 = arith.truncf %47 : vector<32x400xf32> to vector<32x400xbf16>
    %c0_33 = arith.constant 0 : index
    %c0_34 = arith.constant 0 : index
    %49 = vector.load %arg11[%c0_33, %c0_34] : memref<400x784xbf16, #tpu.memory_space<vmem>>, vector<400x784xbf16>
    %cst_35 = arith.constant dense<0.000000e+00> : vector<32x784xf32>
    %50 = tpu.matmul %48, %49, %cst_35 {dimension_numbers = #tpu.dot_dimension_numbers<[1], [0], [0], [1], [0, 0, 1, 1], [], []>} : vector<32x400xbf16>, vector<400x784xbf16>, vector<32x784xf32> -> vector<32x784xf32>
    %c0_36 = arith.constant 0 : index
    %c0_37 = arith.constant 0 : index
    %51 = vector.load %arg12[%c0_36, %c0_37] : memref<1x784xf32, #tpu.memory_space<vmem>>, vector<1x784xf32>
    %52 = vector.broadcast %51 : vector<1x784xf32> to vector<32x784xf32>
    %53 = arith.addf %50, %52 : vector<32x784xf32>
    %54 = arith.negf %53 : vector<32x784xf32>
    %55 = math.exp %54 : vector<32x784xf32>
    %cst_38 = arith.constant 1.000000e+00 : f32
    %56 = vector.broadcast %cst_38 : f32 to vector<32x784xf32>
    %57 = arith.addf %56, %55 : vector<32x784xf32>
    %58 = arith.divf %56, %57 : vector<32x784xf32>
    %c0_39 = arith.constant 0 : index
    %c0_40 = arith.constant 0 : index
    %59 = vector.load %arg13[%c0_39, %c0_40] : memref<32x784xf32, #tpu.memory_space<vmem>>, vector<32x784xf32>
    tpu.vector_store %arg13[%c0_39, %c0_40], %58 {strides = array<i32>} : memref<32x784xf32, #tpu.memory_space<vmem>>, vector<32x784xf32>,
    return
  }
  func.func @transform_0(%arg0: i32) -> (i32, i32) {
    %c0_i32 = arith.constant 0 : i32
    %c0_i32_0 = arith.constant 0 : i32
    return %arg0, %c0_i32 : i32, i32
  }
  func.func @transform_1(%arg0: i32) -> (i32, i32) {
    %c0_i32 = arith.constant 0 : i32
    %c0_i32_0 = arith.constant 0 : i32
    %c0_i32_1 = arith.constant 0 : i32
    return %c0_i32, %c0_i32_0 : i32, i32
  }
  func.func @transform_2(%arg0: i32) -> (i32, i32) {
    %c0_i32 = arith.constant 0 : i32
    %c0_i32_0 = arith.constant 0 : i32
    %c0_i32_1 = arith.constant 0 : i32
    return %c0_i32, %c0_i32_0 : i32, i32
  }
  func.func @transform_3(%arg0: i32) -> (i32, i32) {
    %c0_i32 = arith.constant 0 : i32
    %c0_i32_0 = arith.constant 0 : i32
    %c0_i32_1 = arith.constant 0 : i32
    return %c0_i32, %c0_i32_0 : i32, i32
  }
  func.func @transform_4(%arg0: i32) -> (i32, i32) {
    %c0_i32 = arith.constant 0 : i32
    %c0_i32_0 = arith.constant 0 : i32
    %c0_i32_1 = arith.constant 0 : i32
    return %c0_i32, %c0_i32_0 : i32, i32
  }
  func.func @transform_5(%arg0: i32) -> (i32, i32) {
    %c0_i32 = arith.constant 0 : i32
    %c0_i32_0 = arith.constant 0 : i32
    %c0_i32_1 = arith.constant 0 : i32
    return %c0_i32, %c0_i32_0 : i32, i32
  }
  func.func @transform_6(%arg0: i32) -> (i32, i32) {
    %c0_i32 = arith.constant 0 : i32
    %c0_i32_0 = arith.constant 0 : i32
    %c0_i32_1 = arith.constant 0 : i32
    return %c0_i32, %c0_i32_0 : i32, i32
  }
  func.func @transform_7(%arg0: i32) -> (i32, i32) {
    %c0_i32 = arith.constant 0 : i32
    %c0_i32_0 = arith.constant 0 : i32
    %c0_i32_1 = arith.constant 0 : i32
    return %c0_i32, %c0_i32_0 : i32, i32
  }
  func.func @transform_8(%arg0: i32) -> (i32, i32) {
    %c0_i32 = arith.constant 0 : i32
    %c0_i32_0 = arith.constant 0 : i32
    %c0_i32_1 = arith.constant 0 : i32
    return %c0_i32, %c0_i32_0 : i32, i32
  }
  func.func @transform_9(%arg0: i32) -> (i32, i32) {
    %c0_i32 = arith.constant 0 : i32
    %c0_i32_0 = arith.constant 0 : i32
    %c0_i32_1 = arith.constant 0 : i32
    return %c0_i32, %c0_i32_0 : i32, i32
  }
  func.func @transform_10(%arg0: i32) -> (i32, i32) {
    %c0_i32 = arith.constant 0 : i32
    %c0_i32_0 = arith.constant 0 : i32
    %c0_i32_1 = arith.constant 0 : i32
    return %c0_i32, %c0_i32_0 : i32, i32
  }
  func.func @transform_11(%arg0: i32) -> (i32, i32) {
    %c0_i32 = arith.constant 0 : i32
    %c0_i32_0 = arith.constant 0 : i32
    %c0_i32_1 = arith.constant 0 : i32
    return %c0_i32, %c0_i32_0 : i32, i32
  }
  func.func @transform_12(%arg0: i32) -> (i32, i32) {
    %c0_i32 = arith.constant 0 : i32
    %c0_i32_0 = arith.constant 0 : i32
    return %arg0, %c0_i32 : i32, i32
  }
  func.func @transform_13(%arg0: i32) -> (i32, i32) {
    %c0_i32 = arith.constant 0 : i32
    %c0_i32_0 = arith.constant 0 : i32
    return %arg0, %c0_i32 : i32, i32
  }
  func.func @transform_14(%arg0: i32) -> (i32, i32) {
    %c0_i32 = arith.constant 0 : i32
    %c0_i32_0 = arith.constant 0 : i32
    return %arg0, %c0_i32 : i32, i32
  }
}

</mosaic_0001>

<llo_original>
// kernel: vqvae_forward.1
$region0: #{vqvae_forward.1}
  #allocation0 [shape = 'u32[]', space=smem, size = 0x4, offset = 0x4, fixed_abs, tag = 'smem constant byte address 0x4 - core index']
  #allocation1 [shape = 'u32[144,128]{1,0:T(1,128)}', space=vmem, size = 0x12000, scoped, tag = 'internal scratch']
  %s0 = inlined_call_operand.vmem [shape: bf16[32,784], index: 0, kind: input, shape index: {}]
  %s1 = inlined_call_operand.vmem [shape: bf16[784,400], index: 1, kind: input, shape index: {}]
  %s2 = inlined_call_operand.vmem [shape: f32[1,400], index: 2, kind: input, shape index: {}]
  %s3 = inlined_call_operand.vmem [shape: bf16[400,10], index: 3, kind: input, shape index: {}]
  %s4 = inlined_call_operand.vmem [shape: f32[1,10], index: 4, kind: input, shape index: {}]
  %s5 = inlined_call_operand.vmem [shape: bf16[64,10], index: 5, kind: input, shape index: {}]
  %s6 = inlined_call_operand.vmem [shape: bf16[10,64], index: 6, kind: input, shape index: {}]
  %s7 = inlined_call_operand.vmem [shape: f32[1,64], index: 7, kind: input, shape index: {}]
  %s8 = inlined_call_operand.vmem [shape: bf16[64,400], index: 8, kind: input, shape index: {}]
  %s9 = inlined_call_operand.vmem [shape: f32[1,400], index: 9, kind: input, shape index: {}]
  %s10 = inlined_call_operand.vmem [shape: bf16[400,784], index: 10, kind: input, shape index: {}]
  %s11 = inlined_call_operand.vmem [shape: f32[1,784], index: 11, kind: input, shape index: {}]
  %s12 = inlined_call_operand.hbm [shape: f32[32,784], index: 12, kind: output, shape index: {0}]
  %s13 = inlined_call_operand.vmem [shape: f32[32,10], index: 13, kind: output, shape index: {1}]
  %s14 = inlined_call_operand.vmem [shape: f32[32,10], index: 14, kind: output, shape index: {2}]
  %15 = xla_tuple %s12, %s13, %s14
  %s16 = sld [smem:[#allocation0]]
  $region74: #{vqvae_forward.1} parent=0
    _
  %s18 = ssub.s32 1, %s16
  %s19 = scalar_select 0, %s18, %s16
  $region1: #{vqvae_forward.1} parent=0
    #allocation2 [shape = 'u8[114688]{0}', space=vmem, size = 0x1c000, scoped, tag = 'output window, operand 0, single buffered']
    #allocation3 [shape = 's32[1]{0}', space=sflag, size = 0x4, scoped, tag = 'scoped memory for vqvae_forward.1']
    %20 = vsyncpa [#allocation3], 0
    // Predicated region
    $region2: #{vqvae_forward.1} parent=1 // pred_check
      _
    $region3: #{vqvae_forward.1} parent=1 // pred_check_branch
      %22 = sbr.rel (0) target = $region5
    $region4: #{vqvae_forward.1} parent=1 // pred_region
      _
    $region5: #{vqvae_forward.1} parent=1 // pred_fallthru
      _
    // Predicated region
    $region6: #{vqvae_forward.1} parent=1 // pred_check
      _
    $region7: #{vqvae_forward.1} parent=1 // pred_check_branch
      %24 = sbr.rel (0) target = $region9
    $region8: #{vqvae_forward.1} parent=1 // pred_region
      _
    $region9: #{vqvae_forward.1} parent=1 // pred_fallthru
      _
    // Predicated region
    $region10: #{vqvae_forward.1} parent=1 // pred_check
      _
    $region11: #{vqvae_forward.1} parent=1 // pred_check_branch
      %26 = sbr.rel (0) target = $region13
    $region12: #{vqvae_forward.1} parent=1 // pred_region
      _
    $region13: #{vqvae_forward.1} parent=1 // pred_fallthru
      _
    // Predicated region
    $region14: #{vqvae_forward.1} parent=1 // pred_check
      _
    $region15: #{vqvae_forward.1} parent=1 // pred_check_branch
      %28 = sbr.rel (0) target = $region17
    $region16: #{vqvae_forward.1} parent=1 // pred_region
      _
    $region17: #{vqvae_forward.1} parent=1 // pred_fallthru
      _
    // Predicated region
    $region18: #{vqvae_forward.1} parent=1 // pred_check
      _
    $region19: #{vqvae_forward.1} parent=1 // pred_check_branch
      %30 = sbr.rel (0) target = $region21
    $region20: #{vqvae_forward.1} parent=1 // pred_region
      _
    $region21: #{vqvae_forward.1} parent=1 // pred_fallthru
      _
    // Predicated region
    $region22: #{vqvae_forward.1} parent=1 // pred_check
      _
    $region23: #{vqvae_forward.1} parent=1 // pred_check_branch
      %32 = sbr.rel (0) target = $region25
    $region24: #{vqvae_forward.1} parent=1 // pred_region
      _
    $region25: #{vqvae_forward.1} parent=1 // pred_fallthru
      _
    // Predicated region
    $region26: #{vqvae_forward.1} parent=1 // pred_check
      _
    $region27: #{vqvae_forward.1} parent=1 // pred_check_branch
      %34 = sbr.rel (0) target = $region29
    $region28: #{vqvae_forward.1} parent=1 // pred_region
      _
    $region29: #{vqvae_forward.1} parent=1 // pred_fallthru
      _
    // Predicated region
    $region30: #{vqvae_forward.1} parent=1 // pred_check
      _
    $region31: #{vqvae_forward.1} parent=1 // pred_check_branch
      %36 = sbr.rel (0) target = $region33
    $region32: #{vqvae_forward.1} parent=1 // pred_region
      _
    $region33: #{vqvae_forward.1} parent=1 // pred_fallthru
      _
    // Predicated region
    $region34: #{vqvae_forward.1} parent=1 // pred_check
      _
    $region35: #{vqvae_forward.1} parent=1 // pred_check_branch
      %38 = sbr.rel (0) target = $region37
    $region36: #{vqvae_forward.1} parent=1 // pred_region
      _
    $region37: #{vqvae_forward.1} parent=1 // pred_fallthru
      _
    // Predicated region
    $region38: #{vqvae_forward.1} parent=1 // pred_check
      _
    $region39: #{vqvae_forward.1} parent=1 // pred_check_branch
      %40 = sbr.rel (0) target = $region41
    $region40: #{vqvae_forward.1} parent=1 // pred_region
      _
    $region41: #{vqvae_forward.1} parent=1 // pred_fallthru
      _
    // Predicated region
    $region42: #{vqvae_forward.1} parent=1 // pred_check
      _
    $region43: #{vqvae_forward.1} parent=1 // pred_check_branch
      %42 = sbr.rel (0) target = $region45
    $region44: #{vqvae_forward.1} parent=1 // pred_region
      _
    $region45: #{vqvae_forward.1} parent=1 // pred_fallthru
      _
    // Predicated region
    $region46: #{vqvae_forward.1} parent=1 // pred_check
      _
    $region47: #{vqvae_forward.1} parent=1 // pred_check_branch
      %44 = sbr.rel (0) target = $region49
    $region48: #{vqvae_forward.1} parent=1 // pred_region
      _
    $region49: #{vqvae_forward.1} parent=1 // pred_fallthru
      _
    %v46 = vld [vmem:[%s0] sm:$0xff]
    %v47 = vld [vmem:[%s0 + $0x8] sm:$0xff]
    %v48 = vld [vmem:[%s0 + $0x10] sm:$0xff]
    %v49 = vld [vmem:[%s0 + $0x18] sm:$0xf]
    %v50 = vld [vmem:[%s0 + $0x1c] sm:$0xff]
    %v51 = vld [vmem:[%s0 + $0x24] sm:$0xff]
    %v52 = vld [vmem:[%s0 + $0x2c] sm:$0xff]
    %v53 = vld [vmem:[%s0 + $0x34] sm:$0xf]
    %v54 = vld [vmem:[%s0 + $0x38] sm:$0xff]
    %v55 = vld [vmem:[%s0 + $0x40] sm:$0xff]
    %v56 = vld [vmem:[%s0 + $0x48] sm:$0xff]
    %v57 = vld [vmem:[%s0 + $0x50] sm:$0xf]
    %v58 = vld [vmem:[%s0 + $0x54] sm:$0xff]
    %v59 = vld [vmem:[%s0 + $0x5c] sm:$0xff]
    %v60 = vld [vmem:[%s0 + $0x64] sm:$0xff]
    %v61 = vld [vmem:[%s0 + $0x6c] sm:$0xf]
    %v62 = vld [vmem:[%s1] sm:$0xff]
    %v63 = vld [vmem:[%s1 + $0x8] sm:$0xff]
    %v64 = vld [vmem:[%s1 + $0x10] sm:$0xff]
    %v65 = vld [vmem:[%s1 + $0x18] sm:$0xff]
    %v66 = vld [vmem:[%s1 + $0x20] sm:$0xff]
    %v67 = vld [vmem:[%s1 + $0x28] sm:$0xff]
    %v68 = vld [vmem:[%s1 + $0x30] sm:$0xff]
    %v69 = vld [vmem:[%s1 + $0x38] sm:$0xff]
    %v70 = vld [vmem:[%s1 + $0x40] sm:$0xff]
    %v71 = vld [vmem:[%s1 + $0x48] sm:$0xff]
    %v72 = vld [vmem:[%s1 + $0x50] sm:$0xff]
    %v73 = vld [vmem:[%s1 + $0x58] sm:$0xff]
    %v74 = vld [vmem:[%s1 + $0x60] sm:$0xff]
    %v75 = vld [vmem:[%s1 + $0x68] sm:$0xff]
    %v76 = vld [vmem:[%s1 + $0x70] sm:$0xff]
    %v77 = vld [vmem:[%s1 + $0x78] sm:$0xff]
    %v78 = vld [vmem:[%s1 + $0x80] sm:$0xff]
    %v79 = vld [vmem:[%s1 + $0x88] sm:$0xff]
    %v80 = vld [vmem:[%s1 + $0x90] sm:$0xff]
    %v81 = vld [vmem:[%s1 + $0x98] sm:$0xff]
    %v82 = vld [vmem:[%s1 + $0xa0] sm:$0xff]
    %v83 = vld [vmem:[%s1 + $0xa8] sm:$0xff]
    %v84 = vld [vmem:[%s1 + $0xb0] sm:$0xff]
    %v85 = vld [vmem:[%s1 + $0xb8] sm:$0xff]
    %v86 = vld [vmem:[%s1 + $0xc0] sm:$0xff]
    %v87 = vld [vmem:[%s1 + $0xc8] sm:$0xff]
    %v88 = vld [vmem:[%s1 + $0xd0] sm:$0xff]
    %v89 = vld [vmem:[%s1 + $0xd8] sm:$0xff]
    %v90 = vld [vmem:[%s1 + $0xe0] sm:$0xff]
    %v91 = vld [vmem:[%s1 + $0xe8] sm:$0xff]
    %v92 = vld [vmem:[%s1 + $0xf0] sm:$0xff]
    %v93 = vld [vmem:[%s1 + $0xf8] sm:$0xff]
    %v94 = vld [vmem:[%s1 + $0x100] sm:$0xff]
    %v95 = vld [vmem:[%s1 + $0x108] sm:$0xff]
    %v96 = vld [vmem:[%s1 + $0x110] sm:$0xff]
    %v97 = vld [vmem:[%s1 + $0x118] sm:$0xff]
    %v98 = vld [vmem:[%s1 + $0x120] sm:$0xff]
    %v99 = vld [vmem:[%s1 + $0x128] sm:$0xff]
    %v100 = vld [vmem:[%s1 + $0x130] sm:$0xff]
    %v101 = vld [vmem:[%s1 + $0x138] sm:$0xff]
    %v102 = vld [vmem:[%s1 + $0x140] sm:$0xff]
    %v103 = vld [vmem:[%s1 + $0x148] sm:$0xff]
    %v104 = vld [vmem:[%s1 + $0x150] sm:$0xff]
    %v105 = vld [vmem:[%s1 + $0x158] sm:$0xff]
    %v106 = vld [vmem:[%s1 + $0x160] sm:$0xff]
    %v107 = vld [vmem:[%s1 + $0x168] sm:$0xff]
    %v108 = vld [vmem:[%s1 + $0x170] sm:$0xff]
    %v109 = vld [vmem:[%s1 + $0x178] sm:$0xff]
    %v110 = vld [vmem:[%s1 + $0x180] sm:$0xff]
    %v111 = vld [vmem:[%s1 + $0x188] sm:$0xff]
    %v112 = vld [vmem:[%s1 + $0x190] sm:$0xff]
    %v113 = vld [vmem:[%s1 + $0x198] sm:$0xff]
    %v114 = vld [vmem:[%s1 + $0x1a0] sm:$0xff]
    %v115 = vld [vmem:[%s1 + $0x1a8] sm:$0xff]
    %v116 = vld [vmem:[%s1 + $0x1b0] sm:$0xff]
    %v117 = vld [vmem:[%s1 + $0x1b8] sm:$0xff]
    %v118 = vld [vmem:[%s1 + $0x1c0] sm:$0xff]
    %v119 = vld [vmem:[%s1 + $0x1c8] sm:$0xff]
    %v120 = vld [vmem:[%s1 + $0x1d0] sm:$0xff]
    %v121 = vld [vmem:[%s1 + $0x1d8] sm:$0xff]
    %v122 = vld [vmem:[%s1 + $0x1e0] sm:$0xff]
    %v123 = vld [vmem:[%s1 + $0x1e8] sm:$0xff]
    %v124 = vld [vmem:[%s1 + $0x1f0] sm:$0xff]
    %v125 = vld [vmem:[%s1 + $0x1f8] sm:$0xff]
    %v126 = vld [vmem:[%s1 + $0x200] sm:$0xff]
    %v127 = vld [vmem:[%s1 + $0x208] sm:$0xff]
    %v128 = vld [vmem:[%s1 + $0x210] sm:$0xff]
    %v129 = vld [vmem:[%s1 + $0x218] sm:$0xff]
    %v130 = vld [vmem:[%s1 + $0x220] sm:$0xff]
    %v131 = vld [vmem:[%s1 + $0x228] sm:$0xff]
    %v132 = vld [vmem:[%s1 + $0x230] sm:$0xff]
    %v133 = vld [vmem:[%s1 + $0x238] sm:$0xff]
    %v134 = vld [vmem:[%s1 + $0x240] sm:$0xff]
    %v135 = vld [vmem:[%s1 + $0x248] sm:$0xff]
    %v136 = vld [vmem:[%s1 + $0x250] sm:$0xff]
    %v137 = vld [vmem:[%s1 + $0x258] sm:$0xff]
    %v138 = vld [vmem:[%s1 + $0x260] sm:$0xff]
    %v139 = vld [vmem:[%s1 + $0x268] sm:$0xff]
    %v140 = vld [vmem:[%s1 + $0x270] sm:$0xff]
    %v141 = vld [vmem:[%s1 + $0x278] sm:$0xff]
    %v142 = vld [vmem:[%s1 + $0x280] sm:$0xff]
    %v143 = vld [vmem:[%s1 + $0x288] sm:$0xff]
    %v144 = vld [vmem:[%s1 + $0x290] sm:$0xff]
    %v145 = vld [vmem:[%s1 + $0x298] sm:$0xff]
    %v146 = vld [vmem:[%s1 + $0x2a0] sm:$0xff]
    %v147 = vld [vmem:[%s1 + $0x2a8] sm:$0xff]
    %v148 = vld [vmem:[%s1 + $0x2b0] sm:$0xff]
    %v149 = vld [vmem:[%s1 + $0x2b8] sm:$0xff]
    %v150 = vld [vmem:[%s1 + $0x2c0] sm:$0xff]
    %v151 = vld [vmem:[%s1 + $0x2c8] sm:$0xff]
    %v152 = vld [vmem:[%s1 + $0x2d0] sm:$0xff]
    %v153 = vld [vmem:[%s1 + $0x2d8] sm:$0xff]
    %v154 = vld [vmem:[%s1 + $0x2e0] sm:$0xff]
    %v155 = vld [vmem:[%s1 + $0x2e8] sm:$0xff]
    %v156 = vld [vmem:[%s1 + $0x2f0] sm:$0xff]
    %v157 = vld [vmem:[%s1 + $0x2f8] sm:$0xff]
    %v158 = vld [vmem:[%s1 + $0x300] sm:$0xff]
    %v159 = vld [vmem:[%s1 + $0x308] sm:$0xff]
    %v160 = vld [vmem:[%s1 + $0x310] sm:$0xff]
    %v161 = vld [vmem:[%s1 + $0x318] sm:$0xff]
    %v162 = vld [vmem:[%s1 + $0x320] sm:$0xff]
    %v163 = vld [vmem:[%s1 + $0x328] sm:$0xff]
    %v164 = vld [vmem:[%s1 + $0x330] sm:$0xff]
    %v165 = vld [vmem:[%s1 + $0x338] sm:$0xff]
    %v166 = vld [vmem:[%s1 + $0x340] sm:$0xff]
    %v167 = vld [vmem:[%s1 + $0x348] sm:$0xff]
    %v168 = vld [vmem:[%s1 + $0x350] sm:$0xff]
    %v169 = vld [vmem:[%s1 + $0x358] sm:$0xff]
    %v170 = vld [vmem:[%s1 + $0x360] sm:$0xff]
    %v171 = vld [vmem:[%s1 + $0x368] sm:$0xff]
    %v172 = vld [vmem:[%s1 + $0x370] sm:$0xff]
    %v173 = vld [vmem:[%s1 + $0x378] sm:$0xff]
    %v174 = vld [vmem:[%s1 + $0x380] sm:$0xff]
    %v175 = vld [vmem:[%s1 + $0x388] sm:$0xff]
    %v176 = vld [vmem:[%s1 + $0x390] sm:$0xff]
    %v177 = vld [vmem:[%s1 + $0x398] sm:$0xff]
    %v178 = vld [vmem:[%s1 + $0x3a0] sm:$0xff]
    %v179 = vld [vmem:[%s1 + $0x3a8] sm:$0xff]
    %v180 = vld [vmem:[%s1 + $0x3b0] sm:$0xff]
    %v181 = vld [vmem:[%s1 + $0x3b8] sm:$0xff]
    %v182 = vld [vmem:[%s1 + $0x3c0] sm:$0xff]
    %v183 = vld [vmem:[%s1 + $0x3c8] sm:$0xff]
    %v184 = vld [vmem:[%s1 + $0x3d0] sm:$0xff]
    %v185 = vld [vmem:[%s1 + $0x3d8] sm:$0xff]
    %v186 = vld [vmem:[%s1 + $0x3e0] sm:$0xff]
    %v187 = vld [vmem:[%s1 + $0x3e8] sm:$0xff]
    %v188 = vld [vmem:[%s1 + $0x3f0] sm:$0xff]
    %v189 = vld [vmem:[%s1 + $0x3f8] sm:$0xff]
    %v190 = vld [vmem:[%s1 + $0x400] sm:$0xff]
    %v191 = vld [vmem:[%s1 + $0x408] sm:$0xff]
    %v192 = vld [vmem:[%s1 + $0x410] sm:$0xff]
    %v193 = vld [vmem:[%s1 + $0x418] sm:$0xff]
    %v194 = vld [vmem:[%s1 + $0x420] sm:$0xff]
    %v195 = vld [vmem:[%s1 + $0x428] sm:$0xff]
    %v196 = vld [vmem:[%s1 + $0x430] sm:$0xff]
    %v197 = vld [vmem:[%s1 + $0x438] sm:$0xff]
    %v198 = vld [vmem:[%s1 + $0x440] sm:$0xff]
    %v199 = vld [vmem:[%s1 + $0x448] sm:$0xff]
    %v200 = vld [vmem:[%s1 + $0x450] sm:$0xff]
    %v201 = vld [vmem:[%s1 + $0x458] sm:$0xff]
    %v202 = vld [vmem:[%s1 + $0x460] sm:$0xff]
    %v203 = vld [vmem:[%s1 + $0x468] sm:$0xff]
    %v204 = vld [vmem:[%s1 + $0x470] sm:$0xff]
    %v205 = vld [vmem:[%s1 + $0x478] sm:$0xff]
    %v206 = vld [vmem:[%s1 + $0x480] sm:$0xff]
    %v207 = vld [vmem:[%s1 + $0x488] sm:$0xff]
    %v208 = vld [vmem:[%s1 + $0x490] sm:$0xff]
    %v209 = vld [vmem:[%s1 + $0x498] sm:$0xff]
    %v210 = vld [vmem:[%s1 + $0x4a0] sm:$0xff]
    %v211 = vld [vmem:[%s1 + $0x4a8] sm:$0xff]
    %v212 = vld [vmem:[%s1 + $0x4b0] sm:$0xff]
    %v213 = vld [vmem:[%s1 + $0x4b8] sm:$0xff]
    %v214 = vld [vmem:[%s1 + $0x4c0] sm:$0xff]
    %v215 = vld [vmem:[%s1 + $0x4c8] sm:$0xff]
    %v216 = vld [vmem:[%s1 + $0x4d0] sm:$0xff]
    %v217 = vld [vmem:[%s1 + $0x4d8] sm:$0xff]
    %v218 = vld [vmem:[%s1 + $0x4e0] sm:$0xff]
    %v219 = vld [vmem:[%s1 + $0x4e8] sm:$0xff]
    %v220 = vld [vmem:[%s1 + $0x4f0] sm:$0xff]
    %v221 = vld [vmem:[%s1 + $0x4f8] sm:$0xff]
    %v222 = vld [vmem:[%s1 + $0x500] sm:$0xff]
    %v223 = vld [vmem:[%s1 + $0x508] sm:$0xff]
    %v224 = vld [vmem:[%s1 + $0x510] sm:$0xff]
    %v225 = vld [vmem:[%s1 + $0x518] sm:$0xff]
    %v226 = vld [vmem:[%s1 + $0x520] sm:$0xff]
    %v227 = vld [vmem:[%s1 + $0x528] sm:$0xff]
    %v228 = vld [vmem:[%s1 + $0x530] sm:$0xff]
    %v229 = vld [vmem:[%s1 + $0x538] sm:$0xff]
    %v230 = vld [vmem:[%s1 + $0x540] sm:$0xff]
    %v231 = vld [vmem:[%s1 + $0x548] sm:$0xff]
    %v232 = vld [vmem:[%s1 + $0x550] sm:$0xff]
    %v233 = vld [vmem:[%s1 + $0x558] sm:$0xff]
    %v234 = vld [vmem:[%s1 + $0x560] sm:$0xff]
    %v235 = vld [vmem:[%s1 + $0x568] sm:$0xff]
    %v236 = vld [vmem:[%s1 + $0x570] sm:$0xff]
    %v237 = vld [vmem:[%s1 + $0x578] sm:$0xff]
    %v238 = vld [vmem:[%s1 + $0x580] sm:$0xff]
    %v239 = vld [vmem:[%s1 + $0x588] sm:$0xff]
    %v240 = vld [vmem:[%s1 + $0x590] sm:$0xff]
    %v241 = vld [vmem:[%s1 + $0x598] sm:$0xff]
    %v242 = vld [vmem:[%s1 + $0x5a0] sm:$0xff]
    %v243 = vld [vmem:[%s1 + $0x5a8] sm:$0xff]
    %v244 = vld [vmem:[%s1 + $0x5b0] sm:$0xff]
    %v245 = vld [vmem:[%s1 + $0x5b8] sm:$0xff]
    %v246 = vld [vmem:[%s1 + $0x5c0] sm:$0xff]
    %v247 = vld [vmem:[%s1 + $0x5c8] sm:$0xff]
    %v248 = vld [vmem:[%s1 + $0x5d0] sm:$0xff]
    %v249 = vld [vmem:[%s1 + $0x5d8] sm:$0xff]
    %v250 = vld [vmem:[%s1 + $0x5e0] sm:$0xff]
    %v251 = vld [vmem:[%s1 + $0x5e8] sm:$0xff]
    %v252 = vld [vmem:[%s1 + $0x5f0] sm:$0xff]
    %v253 = vld [vmem:[%s1 + $0x5f8] sm:$0xff]
    %v254 = vld [vmem:[%s1 + $0x600] sm:$0xff]
    %v255 = vld [vmem:[%s1 + $0x608] sm:$0xff]
    %v256 = vld [vmem:[%s1 + $0x610] sm:$0xff]
    %v257 = vld [vmem:[%s1 + $0x618] sm:$0xff]
    %v258 = vld [vmem:[%s2] sm:$0xf]
    %v260 = vlaneseq
    %v261 = vshrl.u32 %v260, 7
    %v262 = vsub.s32 0, %v261
    %v263 = vrot.slane %v258, %v262
    %v264 = vlaneseq
    %v265 = vshrl.u32 %v264, 7
    %v266 = vsub.s32 1, %v265
    %v267 = vrot.slane %v258, %v266
    %v268 = vlaneseq
    %v269 = vshrl.u32 %v268, 7
    %v270 = vsub.s32 2, %v269
    %v271 = vrot.slane %v258, %v270
    %v272 = vlaneseq
    %v273 = vshrl.u32 %v272, 7
    %v274 = vsub.s32 3, %v273
    %v275 = vrot.slane %v258, %v274
    %v296 = vunpack.c.l.b16 %v46
    %v297 = vunpack.c.h.b16 %v46
    %v298 = vunpack.c.l.b16 %v47
    %v299 = vunpack.c.h.b16 %v47
    %v300 = vunpack.c.l.b16 %v48
    %v301 = vunpack.c.h.b16 %v48
    %v302 = vunpack.c.l.b16 %v49
    %v303 = vunpack.c.l.b16 %v50
    %v304 = vunpack.c.h.b16 %v50
    %v305 = vunpack.c.l.b16 %v51
    %v306 = vunpack.c.h.b16 %v51
    %v307 = vunpack.c.l.b16 %v52
    %v308 = vunpack.c.h.b16 %v52
    %v309 = vunpack.c.l.b16 %v53
    %v310 = vunpack.c.l.b16 %v54
    %v311 = vunpack.c.h.b16 %v54
    %v312 = vunpack.c.l.b16 %v55
    %v313 = vunpack.c.h.b16 %v55
    %v314 = vunpack.c.l.b16 %v56
    %v315 = vunpack.c.h.b16 %v56
    %v316 = vunpack.c.l.b16 %v57
    %v317 = vunpack.c.l.b16 %v58
    %v318 = vunpack.c.h.b16 %v58
    %v319 = vunpack.c.l.b16 %v59
    %v320 = vunpack.c.h.b16 %v59
    %v321 = vunpack.c.l.b16 %v60
    %v322 = vunpack.c.h.b16 %v60
    %v323 = vunpack.c.l.b16 %v61
    %v324 = vpack.c.b16 %v303, %v296
    %v325 = vpack.c.b16 %v304, %v297
    %v326 = vpack.c.b16 %v305, %v298
    %v327 = vpack.c.b16 %v306, %v299
    %v328 = vpack.c.b16 %v307, %v300
    %v329 = vpack.c.b16 %v308, %v301
    %v330 = vpack.c.b16 %v309, %v302
    %v331 = vpack.c.b16 %v317, %v310
    %v332 = vpack.c.b16 %v318, %v311
    %v333 = vpack.c.b16 %v319, %v312
    %v334 = vpack.c.b16 %v320, %v313
    %v335 = vpack.c.b16 %v321, %v314
    %v336 = vpack.c.b16 %v322, %v315
    %v337 = vpack.c.b16 %v323, %v316
    %v546 = vunpack.c.l.b16 %v62
    %v547 = vunpack.c.h.b16 %v62
    %v548 = vunpack.c.l.b16 %v63
    %v549 = vunpack.c.h.b16 %v63
    %v550 = vunpack.c.l.b16 %v64
    %v551 = vunpack.c.h.b16 %v64
    %v552 = vunpack.c.l.b16 %v65
    %v553 = vunpack.c.h.b16 %v65
    %v554 = vunpack.c.l.b16 %v66
    %v555 = vunpack.c.h.b16 %v66
    %v556 = vunpack.c.l.b16 %v67
    %v557 = vunpack.c.h.b16 %v67
    %v558 = vunpack.c.l.b16 %v68
    %v559 = vunpack.c.h.b16 %v68
    %v560 = vunpack.c.l.b16 %v69
    %v561 = vunpack.c.h.b16 %v69
    %v562 = vunpack.c.l.b16 %v70
    %v563 = vunpack.c.h.b16 %v70
    %v564 = vunpack.c.l.b16 %v71
    %v565 = vunpack.c.h.b16 %v71
    %v566 = vunpack.c.l.b16 %v72
    %v567 = vunpack.c.h.b16 %v72
    %v568 = vunpack.c.l.b16 %v73
    %v569 = vunpack.c.h.b16 %v73
    %v570 = vunpack.c.l.b16 %v74
    %v571 = vunpack.c.h.b16 %v74
    %v572 = vunpack.c.l.b16 %v75
    %v573 = vunpack.c.h.b16 %v75
    %v574 = vunpack.c.l.b16 %v76
    %v575 = vunpack.c.h.b16 %v76
    %v576 = vunpack.c.l.b16 %v77
    %v577 = vunpack.c.h.b16 %v77
    %v578 = vunpack.c.l.b16 %v78
    %v579 = vunpack.c.h.b16 %v78
    %v580 = vunpack.c.l.b16 %v79
    %v581 = vunpack.c.h.b16 %v79
    %v582 = vunpack.c.l.b16 %v80
    %v583 = vunpack.c.h.b16 %v80
    %v584 = vunpack.c.l.b16 %v81
    %v585 = vunpack.c.h.b16 %v81
    %v586 = vunpack.c.l.b16 %v82
    %v587 = vunpack.c.h.b16 %v82
    %v588 = vunpack.c.l.b16 %v83
    %v589 = vunpack.c.h.b16 %v83
    %v590 = vunpack.c.l.b16 %v84
    %v591 = vunpack.c.h.b16 %v84
    %v592 = vunpack.c.l.b16 %v85
    %v593 = vunpack.c.h.b16 %v85
    %v594 = vunpack.c.l.b16 %v86
    %v595 = vunpack.c.h.b16 %v86
    %v596 = vunpack.c.l.b16 %v87
    %v597 = vunpack.c.h.b16 %v87
    %v598 = vunpack.c.l.b16 %v88
    %v599 = vunpack.c.h.b16 %v88
    %v600 = vunpack.c.l.b16 %v89
    %v601 = vunpack.c.h.b16 %v89
    %v602 = vunpack.c.l.b16 %v90
    %v603 = vunpack.c.h.b16 %v90
    %v604 = vunpack.c.l.b16 %v91
    %v605 = vunpack.c.h.b16 %v91
    %v606 = vunpack.c.l.b16 %v92
    %v607 = vunpack.c.h.b16 %v92
    %v608 = vunpack.c.l.b16 %v93
    %v609 = vunpack.c.h.b16 %v93
    %v610 = vunpack.c.l.b16 %v94
    %v611 = vunpack.c.h.b16 %v94
    %v612 = vunpack.c.l.b16 %v95
    %v613 = vunpack.c.h.b16 %v95
    %v614 = vunpack.c.l.b16 %v96
    %v615 = vunpack.c.h.b16 %v96
    %v616 = vunpack.c.l.b16 %v97
    %v617 = vunpack.c.h.b16 %v97
    %v618 = vunpack.c.l.b16 %v98
    %v619 = vunpack.c.h.b16 %v98
    %v620 = vunpack.c.l.b16 %v99
    %v621 = vunpack.c.h.b16 %v99
    %v622 = vunpack.c.l.b16 %v100
    %v623 = vunpack.c.h.b16 %v100
    %v624 = vunpack.c.l.b16 %v101
    %v625 = vunpack.c.h.b16 %v101
    %v626 = vunpack.c.l.b16 %v102
    %v627 = vunpack.c.h.b16 %v102
    %v628 = vunpack.c.l.b16 %v103
    %v629 = vunpack.c.h.b16 %v103
    %v630 = vunpack.c.l.b16 %v104
    %v631 = vunpack.c.h.b16 %v104
    %v632 = vunpack.c.l.b16 %v105
    %v633 = vunpack.c.h.b16 %v105
    %v634 = vunpack.c.l.b16 %v106
    %v635 = vunpack.c.h.b16 %v106
    %v636 = vunpack.c.l.b16 %v107
    %v637 = vunpack.c.h.b16 %v107
    %v638 = vunpack.c.l.b16 %v108
    %v639 = vunpack.c.h.b16 %v108
    %v640 = vunpack.c.l.b16 %v109
    %v641 = vunpack.c.h.b16 %v109
    %v642 = vunpack.c.l.b16 %v110
    %v643 = vunpack.c.h.b16 %v110
    %v644 = vunpack.c.l.b16 %v111
    %v645 = vunpack.c.h.b16 %v111
    %v646 = vunpack.c.l.b16 %v112
    %v647 = vunpack.c.h.b16 %v112
    %v648 = vunpack.c.l.b16 %v113
    %v649 = vunpack.c.h.b16 %v113
    %v650 = vunpack.c.l.b16 %v114
    %v651 = vunpack.c.h.b16 %v114
    %v652 = vunpack.c.l.b16 %v115
    %v653 = vunpack.c.h.b16 %v115
    %v654 = vunpack.c.l.b16 %v116
    %v655 = vunpack.c.h.b16 %v116
    %v656 = vunpack.c.l.b16 %v117
    %v657 = vunpack.c.h.b16 %v117
    %v658 = vunpack.c.l.b16 %v118
    %v659 = vunpack.c.h.b16 %v118
    %v660 = vunpack.c.l.b16 %v119
    %v661 = vunpack.c.h.b16 %v119
    %v662 = vunpack.c.l.b16 %v120
    %v663 = vunpack.c.h.b16 %v120
    %v664 = vunpack.c.l.b16 %v121
    %v665 = vunpack.c.h.b16 %v121
    %v666 = vunpack.c.l.b16 %v122
    %v667 = vunpack.c.h.b16 %v122
    %v668 = vunpack.c.l.b16 %v123
    %v669 = vunpack.c.h.b16 %v123
    %v670 = vunpack.c.l.b16 %v124
    %v671 = vunpack.c.h.b16 %v124
    %v672 = vunpack.c.l.b16 %v125
    %v673 = vunpack.c.h.b16 %v125
    %v674 = vunpack.c.l.b16 %v126
    %v675 = vunpack.c.h.b16 %v126
    %v676 = vunpack.c.l.b16 %v127
    %v677 = vunpack.c.h.b16 %v127
    %v678 = vunpack.c.l.b16 %v128
    %v679 = vunpack.c.h.b16 %v128
    %v680 = vunpack.c.l.b16 %v129
    %v681 = vunpack.c.h.b16 %v129
    %v682 = vunpack.c.l.b16 %v130
    %v683 = vunpack.c.h.b16 %v130
    %v684 = vunpack.c.l.b16 %v131
    %v685 = vunpack.c.h.b16 %v131
    %v686 = vunpack.c.l.b16 %v132
    %v687 = vunpack.c.h.b16 %v132
    %v688 = vunpack.c.l.b16 %v133
    %v689 = vunpack.c.h.b16 %v133
    %v690 = vunpack.c.l.b16 %v134
    %v691 = vunpack.c.h.b16 %v134
    %v692 = vunpack.c.l.b16 %v135
    %v693 = vunpack.c.h.b16 %v135
    %v694 = vunpack.c.l.b16 %v136
    %v695 = vunpack.c.h.b16 %v136
    %v696 = vunpack.c.l.b16 %v137
    %v697 = vunpack.c.h.b16 %v137
    %v698 = vunpack.c.l.b16 %v138
    %v699 = vunpack.c.h.b16 %v138
    %v700 = vunpack.c.l.b16 %v139
    %v701 = vunpack.c.h.b16 %v139
    %v702 = vunpack.c.l.b16 %v140
    %v703 = vunpack.c.h.b16 %v140
    %v704 = vunpack.c.l.b16 %v141
    %v705 = vunpack.c.h.b16 %v141
    %v706 = vunpack.c.l.b16 %v142
    %v707 = vunpack.c.h.b16 %v142
    %v708 = vunpack.c.l.b16 %v143
    %v709 = vunpack.c.h.b16 %v143
    %v710 = vunpack.c.l.b16 %v144
    %v711 = vunpack.c.h.b16 %v144
    %v712 = vunpack.c.l.b16 %v145
    %v713 = vunpack.c.h.b16 %v145
    %v714 = vunpack.c.l.b16 %v146
    %v715 = vunpack.c.h.b16 %v146
    %v716 = vunpack.c.l.b16 %v147
    %v717 = vunpack.c.h.b16 %v147
    %v718 = vunpack.c.l.b16 %v148
    %v719 = vunpack.c.h.b16 %v148
    %v720 = vunpack.c.l.b16 %v149
    %v721 = vunpack.c.h.b16 %v149
    %v722 = vunpack.c.l.b16 %v150
    %v723 = vunpack.c.h.b16 %v150
    %v724 = vunpack.c.l.b16 %v151
    %v725 = vunpack.c.h.b16 %v151
    %v726 = vunpack.c.l.b16 %v152
    %v727 = vunpack.c.h.b16 %v152
    %v728 = vunpack.c.l.b16 %v153
    %v729 = vunpack.c.h.b16 %v153
    %v730 = vunpack.c.l.b16 %v154
    %v731 = vunpack.c.h.b16 %v154
    %v732 = vunpack.c.l.b16 %v155
    %v733 = vunpack.c.h.b16 %v155
    %v734 = vunpack.c.l.b16 %v156
    %v735 = vunpack.c.h.b16 %v156
    %v736 = vunpack.c.l.b16 %v157
    %v737 = vunpack.c.h.b16 %v157
    %v738 = vunpack.c.l.b16 %v158
    %v739 = vunpack.c.h.b16 %v158
    %v740 = vunpack.c.l.b16 %v159
    %v741 = vunpack.c.h.b16 %v159
    %v742 = vunpack.c.l.b16 %v160
    %v743 = vunpack.c.h.b16 %v160
    %v744 = vunpack.c.l.b16 %v161
    %v745 = vunpack.c.h.b16 %v161
    %v746 = vunpack.c.l.b16 %v162
    %v747 = vunpack.c.h.b16 %v162
    %v748 = vunpack.c.l.b16 %v163
    %v749 = vunpack.c.h.b16 %v163
    %v750 = vunpack.c.l.b16 %v164
    %v751 = vunpack.c.h.b16 %v164
    %v752 = vunpack.c.l.b16 %v165
    %v753 = vunpack.c.h.b16 %v165
    %v754 = vunpack.c.l.b16 %v166
    %v755 = vunpack.c.h.b16 %v166
    %v756 = vunpack.c.l.b16 %v167
    %v757 = vunpack.c.h.b16 %v167
    %v758 = vunpack.c.l.b16 %v168
    %v759 = vunpack.c.h.b16 %v168
    %v760 = vunpack.c.l.b16 %v169
    %v761 = vunpack.c.h.b16 %v169
    %v762 = vunpack.c.l.b16 %v170
    %v763 = vunpack.c.h.b16 %v170
    %v764 = vunpack.c.l.b16 %v171
    %v765 = vunpack.c.h.b16 %v171
    %v766 = vunpack.c.l.b16 %v172
    %v767 = vunpack.c.h.b16 %v172
    %v768 = vunpack.c.l.b16 %v173
    %v769 = vunpack.c.h.b16 %v173
    %v770 = vunpack.c.l.b16 %v174
    %v771 = vunpack.c.h.b16 %v174
    %v772 = vunpack.c.l.b16 %v175
    %v773 = vunpack.c.h.b16 %v175
    %v774 = vunpack.c.l.b16 %v176
    %v775 = vunpack.c.h.b16 %v176
    %v776 = vunpack.c.l.b16 %v177
    %v777 = vunpack.c.h.b16 %v177
    %v778 = vunpack.c.l.b16 %v178
    %v779 = vunpack.c.h.b16 %v178
    %v780 = vunpack.c.l.b16 %v179
    %v781 = vunpack.c.h.b16 %v179
    %v782 = vunpack.c.l.b16 %v180
    %v783 = vunpack.c.h.b16 %v180
    %v784 = vunpack.c.l.b16 %v181
    %v785 = vunpack.c.h.b16 %v181
    %v786 = vunpack.c.l.b16 %v182
    %v787 = vunpack.c.h.b16 %v182
    %v788 = vunpack.c.l.b16 %v183
    %v789 = vunpack.c.h.b16 %v183
    %v790 = vunpack.c.l.b16 %v184
    %v791 = vunpack.c.h.b16 %v184
    %v792 = vunpack.c.l.b16 %v185
    %v793 = vunpack.c.h.b16 %v185
    %v794 = vunpack.c.l.b16 %v186
    %v795 = vunpack.c.h.b16 %v186
    %v796 = vunpack.c.l.b16 %v187
    %v797 = vunpack.c.h.b16 %v187
    %v798 = vunpack.c.l.b16 %v188
    %v799 = vunpack.c.h.b16 %v188
    %v800 = vunpack.c.l.b16 %v189
    %v801 = vunpack.c.h.b16 %v189
    %v802 = vunpack.c.l.b16 %v190
    %v803 = vunpack.c.h.b16 %v190
    %v804 = vunpack.c.l.b16 %v191
    %v805 = vunpack.c.h.b16 %v191
    %v806 = vunpack.c.l.b16 %v192
    %v807 = vunpack.c.h.b16 %v192
    %v808 = vunpack.c.l.b16 %v193
    %v809 = vunpack.c.h.b16 %v193
    %v810 = vunpack.c.l.b16 %v194
    %v811 = vunpack.c.h.b16 %v194
    %v812 = vunpack.c.l.b16 %v195
    %v813 = vunpack.c.h.b16 %v195
    %v814 = vunpack.c.l.b16 %v196
    %v815 = vunpack.c.h.b16 %v196
    %v816 = vunpack.c.l.b16 %v197
    %v817 = vunpack.c.h.b16 %v197
    %v818 = vunpack.c.l.b16 %v198
    %v819 = vunpack.c.h.b16 %v198
    %v820 = vunpack.c.l.b16 %v199
    %v821 = vunpack.c.h.b16 %v199
    %v822 = vunpack.c.l.b16 %v200
    %v823 = vunpack.c.h.b16 %v200
    %v824 = vunpack.c.l.b16 %v201
    %v825 = vunpack.c.h.b16 %v201
    %v826 = vunpack.c.l.b16 %v202
    %v827 = vunpack.c.h.b16 %v202
    %v828 = vunpack.c.l.b16 %v203
    %v829 = vunpack.c.h.b16 %v203
    %v830 = vunpack.c.l.b16 %v204
    %v831 = vunpack.c.h.b16 %v204
    %v832 = vunpack.c.l.b16 %v205
    %v833 = vunpack.c.h.b16 %v205
    %v834 = vunpack.c.l.b16 %v206
    %v835 = vunpack.c.h.b16 %v206
    %v836 = vunpack.c.l.b16 %v207
    %v837 = vunpack.c.h.b16 %v207
    %v838 = vunpack.c.l.b16 %v208
    %v839 = vunpack.c.h.b16 %v208
    %v840 = vunpack.c.l.b16 %v209
    %v841 = vunpack.c.h.b16 %v209
    %v842 = vunpack.c.l.b16 %v210
    %v843 = vunpack.c.h.b16 %v210
    %v844 = vunpack.c.l.b16 %v211
    %v845 = vunpack.c.h.b16 %v211
    %v846 = vunpack.c.l.b16 %v212
    %v847 = vunpack.c.h.b16 %v212
    %v848 = vunpack.c.l.b16 %v213
    %v849 = vunpack.c.h.b16 %v213
    %v850 = vunpack.c.l.b16 %v214
    %v851 = vunpack.c.h.b16 %v214
    %v852 = vunpack.c.l.b16 %v215
    %v853 = vunpack.c.h.b16 %v215
    %v854 = vunpack.c.l.b16 %v216
    %v855 = vunpack.c.h.b16 %v216
    %v856 = vunpack.c.l.b16 %v217
    %v857 = vunpack.c.h.b16 %v217
    %v858 = vunpack.c.l.b16 %v218
    %v859 = vunpack.c.h.b16 %v218
    %v860 = vunpack.c.l.b16 %v219
    %v861 = vunpack.c.h.b16 %v219
    %v862 = vunpack.c.l.b16 %v220
    %v863 = vunpack.c.h.b16 %v220
    %v864 = vunpack.c.l.b16 %v221
    %v865 = vunpack.c.h.b16 %v221
    %v866 = vunpack.c.l.b16 %v222
    %v867 = vunpack.c.h.b16 %v222
    %v868 = vunpack.c.l.b16 %v223
    %v869 = vunpack.c.h.b16 %v223
    %v870 = vunpack.c.l.b16 %v224
    %v871 = vunpack.c.h.b16 %v224
    %v872 = vunpack.c.l.b16 %v225
    %v873 = vunpack.c.h.b16 %v225
    %v874 = vunpack.c.l.b16 %v226
    %v875 = vunpack.c.h.b16 %v226
    %v876 = vunpack.c.l.b16 %v227
    %v877 = vunpack.c.h.b16 %v227
    %v878 = vunpack.c.l.b16 %v228
    %v879 = vunpack.c.h.b16 %v228
    %v880 = vunpack.c.l.b16 %v229
    %v881 = vunpack.c.h.b16 %v229
    %v882 = vunpack.c.l.b16 %v230
    %v883 = vunpack.c.h.b16 %v230
    %v884 = vunpack.c.l.b16 %v231
    %v885 = vunpack.c.h.b16 %v231
    %v886 = vunpack.c.l.b16 %v232
    %v887 = vunpack.c.h.b16 %v232
    %v888 = vunpack.c.l.b16 %v233
    %v889 = vunpack.c.h.b16 %v233
    %v890 = vunpack.c.l.b16 %v234
    %v891 = vunpack.c.h.b16 %v234
    %v892 = vunpack.c.l.b16 %v235
    %v893 = vunpack.c.h.b16 %v235
    %v894 = vunpack.c.l.b16 %v236
    %v895 = vunpack.c.h.b16 %v236
    %v896 = vunpack.c.l.b16 %v237
    %v897 = vunpack.c.h.b16 %v237
    %v898 = vunpack.c.l.b16 %v238
    %v899 = vunpack.c.h.b16 %v238
    %v900 = vunpack.c.l.b16 %v239
    %v901 = vunpack.c.h.b16 %v239
    %v902 = vunpack.c.l.b16 %v240
    %v903 = vunpack.c.h.b16 %v240
    %v904 = vunpack.c.l.b16 %v241
    %v905 = vunpack.c.h.b16 %v241
    %v906 = vunpack.c.l.b16 %v242
    %v907 = vunpack.c.h.b16 %v242
    %v908 = vunpack.c.l.b16 %v243
    %v909 = vunpack.c.h.b16 %v243
    %v910 = vunpack.c.l.b16 %v244
    %v911 = vunpack.c.h.b16 %v244
    %v912 = vunpack.c.l.b16 %v245
    %v913 = vunpack.c.h.b16 %v245
    %v914 = vunpack.c.l.b16 %v246
    %v915 = vunpack.c.h.b16 %v246
    %v916 = vunpack.c.l.b16 %v247
    %v917 = vunpack.c.h.b16 %v247
    %v918 = vunpack.c.l.b16 %v248
    %v919 = vunpack.c.h.b16 %v248
    %v920 = vunpack.c.l.b16 %v249
    %v921 = vunpack.c.h.b16 %v249
    %v922 = vunpack.c.l.b16 %v250
    %v923 = vunpack.c.h.b16 %v250
    %v924 = vunpack.c.l.b16 %v251
    %v925 = vunpack.c.h.b16 %v251
    %v926 = vunpack.c.l.b16 %v252
    %v927 = vunpack.c.h.b16 %v252
    %v928 = vunpack.c.l.b16 %v253
    %v929 = vunpack.c.h.b16 %v253
    %v930 = vunpack.c.l.b16 %v254
    %v931 = vunpack.c.h.b16 %v254
    %v932 = vunpack.c.l.b16 %v255
    %v933 = vunpack.c.h.b16 %v255
    %v934 = vunpack.c.l.b16 %v256
    %v935 = vunpack.c.h.b16 %v256
    %v936 = vunpack.c.l.b16 %v257
    %v937 = vunpack.c.h.b16 %v257
    %v938 = vpack.c.b16 %v550, %v546
    %v939 = vpack.c.b16 %v551, %v547
    %v940 = vpack.c.b16 %v552, %v548
    %v941 = vpack.c.b16 %v553, %v549
    %v942 = vpack.c.b16 %v558, %v554
    %v943 = vpack.c.b16 %v559, %v555
    %v944 = vpack.c.b16 %v560, %v556
    %v945 = vpack.c.b16 %v561, %v557
    %v946 = vpack.c.b16 %v566, %v562
    %v947 = vpack.c.b16 %v567, %v563
    %v948 = vpack.c.b16 %v568, %v564
    %v949 = vpack.c.b16 %v569, %v565
    %v950 = vpack.c.b16 %v574, %v570
    %v951 = vpack.c.b16 %v575, %v571
    %v952 = vpack.c.b16 %v576, %v572
    %v953 = vpack.c.b16 %v577, %v573
    %v954 = vpack.c.b16 %v582, %v578
    %v955 = vpack.c.b16 %v583, %v579
    %v956 = vpack.c.b16 %v584, %v580
    %v957 = vpack.c.b16 %v585, %v581
    %v958 = vpack.c.b16 %v590, %v586
    %v959 = vpack.c.b16 %v591, %v587
    %v960 = vpack.c.b16 %v592, %v588
    %v961 = vpack.c.b16 %v593, %v589
    %v962 = vpack.c.b16 %v598, %v594
    %v963 = vpack.c.b16 %v599, %v595
    %v964 = vpack.c.b16 %v600, %v596
    %v965 = vpack.c.b16 %v601, %v597
    %v966 = vpack.c.b16 %v606, %v602
    %v967 = vpack.c.b16 %v607, %v603
    %v968 = vpack.c.b16 %v608, %v604
    %v969 = vpack.c.b16 %v609, %v605
    %v970 = vpack.c.b16 %v614, %v610
    %v971 = vpack.c.b16 %v615, %v611
    %v972 = vpack.c.b16 %v616, %v612
    %v973 = vpack.c.b16 %v617, %v613
    %v974 = vpack.c.b16 %v622, %v618
    %v975 = vpack.c.b16 %v623, %v619
    %v976 = vpack.c.b16 %v624, %v620
    %v977 = vpack.c.b16 %v625, %v621
    %v978 = vpack.c.b16 %v630, %v626
    %v979 = vpack.c.b16 %v631, %v627
    %v980 = vpack.c.b16 %v632, %v628
    %v981 = vpack.c.b16 %v633, %v629
    %v982 = vpack.c.b16 %v638, %v634
    %v983 = vpack.c.b16 %v639, %v635
    %v984 = vpack.c.b16 %v640, %v636
    %v985 = vpack.c.b16 %v641, %v637
    %v986 = vpack.c.b16 %v646, %v642
    %v987 = vpack.c.b16 %v647, %v643
    %v988 = vpack.c.b16 %v648, %v644
    %v989 = vpack.c.b16 %v649, %v645
    %v990 = vpack.c.b16 %v654, %v650
    %v991 = vpack.c.b16 %v655, %v651
    %v992 = vpack.c.b16 %v656, %v652
    %v993 = vpack.c.b16 %v657, %v653
    %v994 = vpack.c.b16 %v662, %v658
    %v995 = vpack.c.b16 %v663, %v659
    %v996 = vpack.c.b16 %v664, %v660
    %v997 = vpack.c.b16 %v665, %v661
    %v998 = vpack.c.b16 %v670, %v666
    %v999 = vpack.c.b16 %v671, %v667
    %v1000 = vpack.c.b16 %v672, %v668
    %v1001 = vpack.c.b16 %v673, %v669
    %v1002 = vpack.c.b16 %v678, %v674
    %v1003 = vpack.c.b16 %v679, %v675
    %v1004 = vpack.c.b16 %v680, %v676
    %v1005 = vpack.c.b16 %v681, %v677
    %v1006 = vpack.c.b16 %v686, %v682
    %v1007 = vpack.c.b16 %v687, %v683
    %v1008 = vpack.c.b16 %v688, %v684
    %v1009 = vpack.c.b16 %v689, %v685
    %v1010 = vpack.c.b16 %v694, %v690
    %v1011 = vpack.c.b16 %v695, %v691
    %v1012 = vpack.c.b16 %v696, %v692
    %v1013 = vpack.c.b16 %v697, %v693
    %v1014 = vpack.c.b16 %v702, %v698
    %v1015 = vpack.c.b16 %v703, %v699
    %v1016 = vpack.c.b16 %v704, %v700
    %v1017 = vpack.c.b16 %v705, %v701
    %v1018 = vpack.c.b16 %v710, %v706
    %v1019 = vpack.c.b16 %v711, %v707
    %v1020 = vpack.c.b16 %v712, %v708
    %v1021 = vpack.c.b16 %v713, %v709
    %v1022 = vpack.c.b16 %v718, %v714
    %v1023 = vpack.c.b16 %v719, %v715
    %v1024 = vpack.c.b16 %v720, %v716
    %v1025 = vpack.c.b16 %v721, %v717
    %v1026 = vpack.c.b16 %v726, %v722
    %v1027 = vpack.c.b16 %v727, %v723
    %v1028 = vpack.c.b16 %v728, %v724
    %v1029 = vpack.c.b16 %v729, %v725
    %v1030 = vpack.c.b16 %v734, %v730
    %v1031 = vpack.c.b16 %v735, %v731
    %v1032 = vpack.c.b16 %v736, %v732
    %v1033 = vpack.c.b16 %v737, %v733
    %v1034 = vpack.c.b16 %v742, %v738
    %v1035 = vpack.c.b16 %v743, %v739
    %v1036 = vpack.c.b16 %v744, %v740
    %v1037 = vpack.c.b16 %v745, %v741
    %v1038 = vpack.c.b16 %v750, %v746
    %v1039 = vpack.c.b16 %v751, %v747
    %v1040 = vpack.c.b16 %v752, %v748
    %v1041 = vpack.c.b16 %v753, %v749
    %v1042 = vpack.c.b16 %v758, %v754
    %v1043 = vpack.c.b16 %v759, %v755
    %v1044 = vpack.c.b16 %v760, %v756
    %v1045 = vpack.c.b16 %v761, %v757
    %v1046 = vpack.c.b16 %v766, %v762
    %v1047 = vpack.c.b16 %v767, %v763
    %v1048 = vpack.c.b16 %v768, %v764
    %v1049 = vpack.c.b16 %v769, %v765
    %v1050 = vpack.c.b16 %v774, %v770
    %v1051 = vpack.c.b16 %v775, %v771
    %v1052 = vpack.c.b16 %v776, %v772
    %v1053 = vpack.c.b16 %v777, %v773
    %v1054 = vpack.c.b16 %v782, %v778
    %v1055 = vpack.c.b16 %v783, %v779
    %v1056 = vpack.c.b16 %v784, %v780
    %v1057 = vpack.c.b16 %v785, %v781
    %v1058 = vpack.c.b16 %v790, %v786
    %v1059 = vpack.c.b16 %v791, %v787
    %v1060 = vpack.c.b16 %v792, %v788
    %v1061 = vpack.c.b16 %v793, %v789
    %v1062 = vpack.c.b16 %v798, %v794
    %v1063 = vpack.c.b16 %v799, %v795
    %v1064 = vpack.c.b16 %v800, %v796
    %v1065 = vpack.c.b16 %v801, %v797
    %v1066 = vpack.c.b16 %v806, %v802
    %v1067 = vpack.c.b16 %v807, %v803
    %v1068 = vpack.c.b16 %v808, %v804
    %v1069 = vpack.c.b16 %v809, %v805
    %v1070 = vpack.c.b16 %v814, %v810
    %v1071 = vpack.c.b16 %v815, %v811
    %v1072 = vpack.c.b16 %v816, %v812
    %v1073 = vpack.c.b16 %v817, %v813
    %v1074 = vpack.c.b16 %v822, %v818
    %v1075 = vpack.c.b16 %v823, %v819
    %v1076 = vpack.c.b16 %v824, %v820
    %v1077 = vpack.c.b16 %v825, %v821
    %v1078 = vpack.c.b16 %v830, %v826
    %v1079 = vpack.c.b16 %v831, %v827
    %v1080 = vpack.c.b16 %v832, %v828
    %v1081 = vpack.c.b16 %v833, %v829
    %v1082 = vpack.c.b16 %v838, %v834
    %v1083 = vpack.c.b16 %v839, %v835
    %v1084 = vpack.c.b16 %v840, %v836
    %v1085 = vpack.c.b16 %v841, %v837
    %v1086 = vpack.c.b16 %v846, %v842
    %v1087 = vpack.c.b16 %v847, %v843
    %v1088 = vpack.c.b16 %v848, %v844
    %v1089 = vpack.c.b16 %v849, %v845
    %v1090 = vpack.c.b16 %v854, %v850
    %v1091 = vpack.c.b16 %v855, %v851
    %v1092 = vpack.c.b16 %v856, %v852
    %v1093 = vpack.c.b16 %v857, %v853
    %v1094 = vpack.c.b16 %v862, %v858
    %v1095 = vpack.c.b16 %v863, %v859
    %v1096 = vpack.c.b16 %v864, %v860
    %v1097 = vpack.c.b16 %v865, %v861
    %v1098 = vpack.c.b16 %v870, %v866
    %v1099 = vpack.c.b16 %v871, %v867
    %v1100 = vpack.c.b16 %v872, %v868
    %v1101 = vpack.c.b16 %v873, %v869
    %v1102 = vpack.c.b16 %v878, %v874
    %v1103 = vpack.c.b16 %v879, %v875
    %v1104 = vpack.c.b16 %v880, %v876
    %v1105 = vpack.c.b16 %v881, %v877
    %v1106 = vpack.c.b16 %v886, %v882
    %v1107 = vpack.c.b16 %v887, %v883
    %v1108 = vpack.c.b16 %v888, %v884
    %v1109 = vpack.c.b16 %v889, %v885
    %v1110 = vpack.c.b16 %v894, %v890
    %v1111 = vpack.c.b16 %v895, %v891
    %v1112 = vpack.c.b16 %v896, %v892
    %v1113 = vpack.c.b16 %v897, %v893
    %v1114 = vpack.c.b16 %v902, %v898
    %v1115 = vpack.c.b16 %v903, %v899
    %v1116 = vpack.c.b16 %v904, %v900
    %v1117 = vpack.c.b16 %v905, %v901
    %v1118 = vpack.c.b16 %v910, %v906
    %v1119 = vpack.c.b16 %v911, %v907
    %v1120 = vpack.c.b16 %v912, %v908
    %v1121 = vpack.c.b16 %v913, %v909
    %v1122 = vpack.c.b16 %v918, %v914
    %v1123 = vpack.c.b16 %v919, %v915
    %v1124 = vpack.c.b16 %v920, %v916
    %v1125 = vpack.c.b16 %v921, %v917
    %v1126 = vpack.c.b16 %v926, %v922
    %v1127 = vpack.c.b16 %v927, %v923
    %v1128 = vpack.c.b16 %v928, %v924
    %v1129 = vpack.c.b16 %v929, %v925
    %v1130 = vpack.c.b16 %v934, %v930
    %v1131 = vpack.c.b16 %v935, %v931
    %v1132 = vpack.c.b16 %v936, %v932
    %v1133 = vpack.c.b16 %v937, %v933
    %vm1330 = vcmask 130048
    %v1332 = vsel %vm1330, %v330, 0
    %v1335 = vsel %vm1330, %v337, 0
    %1337 = vmatprep.subr.bf16.mxu0 %v939
    %1338 = vmatpush1.bf16.msra.mxu0 %v938
    %1339 = vmatprep.subr.bf16.mxu0 %v943
    %1340 = vmatpush1.bf16.msra.mxu0 %v942
    %1341 = vmatprep.subr.bf16.mxu0 %v947
    %1342 = vmatpush1.bf16.msra.mxu0 %v946
    %1343 = vmatprep.subr.bf16.mxu0 %v951
    %1344 = vmatpush1.bf16.msra.mxu0 %v950
    %1345 = vmatprep.subr.bf16.mxu0 %v955
    %1346 = vmatpush1.bf16.msra.mxu0 %v954
    %1347 = vmatprep.subr.bf16.mxu0 %v959
    %1348 = vmatpush1.bf16.msra.mxu0 %v958
    %1349 = vmatprep.subr.bf16.mxu0 %v963
    %1350 = vmatpush1.bf16.msra.mxu0 %v962
    %1351 = vmatprep.subr.bf16.mxu0 %v967
    %1352 = vmatpush1.bf16.msra.mxu0 %v966
    %1353 = vmatprep.subr.bf16.mxu0 %v971
    %1354 = vmatpush1.bf16.msra.mxu0 %v970
    %1355 = vmatprep.subr.bf16.mxu0 %v975
    %1356 = vmatpush1.bf16.msra.mxu0 %v974
    %1357 = vmatprep.subr.bf16.mxu0 %v979
    %1358 = vmatpush1.bf16.msra.mxu0 %v978
    %1359 = vmatprep.subr.bf16.mxu0 %v983
    %1360 = vmatpush1.bf16.msra.mxu0 %v982
    %1361 = vmatprep.subr.bf16.mxu0 %v987
    %1362 = vmatpush1.bf16.msra.mxu0 %v986
    %1363 = vmatprep.subr.bf16.mxu0 %v991
    %1364 = vmatpush1.bf16.msra.mxu0 %v990
    %1365 = vmatprep.subr.bf16.mxu0 %v995
    %1366 = vmatpush1.bf16.msra.mxu0 %v994
    %1367 = vmatprep.subr.bf16.mxu0 %v999
    %1368 = vmatpush1.bf16.msra.mxu0 %v998
    %1369 = vmatprep.mubr.bf16.mxu0 %v325
    %1370 = vmatmul.mubr.bf16.gmra.mrb[0].mxu0 %v324
    %v1371 = vpop.f32.mrb[0].mxu0
    %v1372 = vadd.f32 %v263, %v1371
    %v1373 = vpop.f32.mrb[0].mxu0
    %v1374 = vadd.f32 %v267, %v1373
    %v1375 = vpop.f32.mrb[0].mxu0
    %v1376 = vadd.f32 %v263, %v1375
    %v1377 = vpop.f32.mrb[0].mxu0
    %v1378 = vadd.f32 %v267, %v1377
    %1379 = vmatprep.mubr.bf16.mxu0 %v332
    %1380 = vmatmul.mubr.bf16.gmra.mrb[0].mxu0 %v331
    %v1381 = vpop.f32.mrb[0].mxu0
    %v1382 = vadd.f32 %v263, %v1381
    %v1383 = vpop.f32.mrb[0].mxu0
    %v1384 = vadd.f32 %v267, %v1383
    %v1385 = vpop.f32.mrb[0].mxu0
    %v1386 = vadd.f32 %v263, %v1385
    %v1387 = vpop.f32.mrb[0].mxu0
    %v1388 = vadd.f32 %v267, %v1387
    %1389 = vdwg.mxu0
    %1390 = vmatprep.subr.bf16.mxu0 %v1003
    %1391 = vmatpush1.bf16.msra.mxu0 %v1002
    %1392 = vmatprep.subr.bf16.mxu0 %v1007
    %1393 = vmatpush1.bf16.msra.mxu0 %v1006
    %1394 = vmatprep.subr.bf16.mxu0 %v1011
    %1395 = vmatpush1.bf16.msra.mxu0 %v1010
    %1396 = vmatprep.subr.bf16.mxu0 %v1015
    %1397 = vmatpush1.bf16.msra.mxu0 %v1014
    %1398 = vmatprep.subr.bf16.mxu0 %v1019
    %1399 = vmatpush1.bf16.msra.mxu0 %v1018
    %1400 = vmatprep.subr.bf16.mxu0 %v1023
    %1401 = vmatpush1.bf16.msra.mxu0 %v1022
    %1402 = vmatprep.subr.bf16.mxu0 %v1027
    %1403 = vmatpush1.bf16.msra.mxu0 %v1026
    %1404 = vmatprep.subr.bf16.mxu0 %v1031
    %1405 = vmatpush1.bf16.msra.mxu0 %v1030
    %1406 = vmatprep.subr.bf16.mxu0 %v1035
    %1407 = vmatpush1.bf16.msra.mxu0 %v1034
    %1408 = vmatprep.subr.bf16.mxu0 %v1039
    %1409 = vmatpush1.bf16.msra.mxu0 %v1038
    %1410 = vmatprep.subr.bf16.mxu0 %v1043
    %1411 = vmatpush1.bf16.msra.mxu0 %v1042
    %1412 = vmatprep.subr.bf16.mxu0 %v1047
    %1413 = vmatpush1.bf16.msra.mxu0 %v1046
    %1414 = vmatprep.subr.bf16.mxu0 %v1051
    %1415 = vmatpush1.bf16.msra.mxu0 %v1050
    %1416 = vmatprep.subr.bf16.mxu0 %v1055
    %1417 = vmatpush1.bf16.msra.mxu0 %v1054
    %1418 = vmatprep.subr.bf16.mxu0 %v1059
    %1419 = vmatpush1.bf16.msra.mxu0 %v1058
    %1420 = vmatprep.subr.bf16.mxu0 %v1063
    %1421 = vmatpush1.bf16.msra.mxu0 %v1062
    %1422 = vmatprep.mubr.bf16.mxu0 %v327
    %1423 = vmatmul.mubr.bf16.gmra.mrb[0].mxu0 %v326
    %v1424 = vpop.f32.mrb[0].mxu0
    %v1425 = vadd.f32 %v1372, %v1424
    %v1426 = vpop.f32.mrb[0].mxu0
    %v1427 = vadd.f32 %v1374, %v1426
    %v1428 = vpop.f32.mrb[0].mxu0
    %v1429 = vadd.f32 %v1376, %v1428
    %v1430 = vpop.f32.mrb[0].mxu0
    %v1431 = vadd.f32 %v1378, %v1430
    %1432 = vmatprep.mubr.bf16.mxu0 %v334
    %1433 = vmatmul.mubr.bf16.gmra.mrb[0].mxu0 %v333
    %v1434 = vpop.f32.mrb[0].mxu0
    %v1435 = vadd.f32 %v1382, %v1434
    %v1436 = vpop.f32.mrb[0].mxu0
    %v1437 = vadd.f32 %v1384, %v1436
    %v1438 = vpop.f32.mrb[0].mxu0
    %v1439 = vadd.f32 %v1386, %v1438
    %v1440 = vpop.f32.mrb[0].mxu0
    %v1441 = vadd.f32 %v1388, %v1440
    %1442 = vdwg.mxu0
    %1443 = vmatprep.subr.bf16.mxu0 %v1067
    %1444 = vmatpush1.bf16.msra.mxu0 %v1066
    %1445 = vmatprep.subr.bf16.mxu0 %v1071
    %1446 = vmatpush1.bf16.msra.mxu0 %v1070
    %1447 = vmatprep.subr.bf16.mxu0 %v1075
    %1448 = vmatpush1.bf16.msra.mxu0 %v1074
    %1449 = vmatprep.subr.bf16.mxu0 %v1079
    %1450 = vmatpush1.bf16.msra.mxu0 %v1078
    %1451 = vmatprep.subr.bf16.mxu0 %v1083
    %1452 = vmatpush1.bf16.msra.mxu0 %v1082
    %1453 = vmatprep.subr.bf16.mxu0 %v1087
    %1454 = vmatpush1.bf16.msra.mxu0 %v1086
    %1455 = vmatprep.subr.bf16.mxu0 %v1091
    %1456 = vmatpush1.bf16.msra.mxu0 %v1090
    %1457 = vmatprep.subr.bf16.mxu0 %v1095
    %1458 = vmatpush1.bf16.msra.mxu0 %v1094
    %1459 = vmatprep.subr.bf16.mxu0 %v1099
    %1460 = vmatpush1.bf16.msra.mxu0 %v1098
    %1461 = vmatprep.subr.bf16.mxu0 %v1103
    %1462 = vmatpush1.bf16.msra.mxu0 %v1102
    %1463 = vmatprep.subr.bf16.mxu0 %v1107
    %1464 = vmatpush1.bf16.msra.mxu0 %v1106
    %1465 = vmatprep.subr.bf16.mxu0 %v1111
    %1466 = vmatpush1.bf16.msra.mxu0 %v1110
    %1467 = vmatprep.subr.bf16.mxu0 %v1115
    %1468 = vmatpush1.bf16.msra.mxu0 %v1114
    %1469 = vmatprep.subr.bf16.mxu0 %v1119
    %1470 = vmatpush1.bf16.msra.mxu0 %v1118
    %1471 = vmatprep.subr.bf16.mxu0 %v1123
    %1472 = vmatpush1.bf16.msra.mxu0 %v1122
    %1473 = vmatprep.subr.bf16.mxu0 %v1127
    %1474 = vmatpush1.bf16.msra.mxu0 %v1126
    %1475 = vmatprep.mubr.bf16.mxu0 %v329
    %1476 = vmatmul.mubr.bf16.gmra.mrb[0].mxu0 %v328
    %v1477 = vpop.f32.mrb[0].mxu0
    %v1478 = vadd.f32 %v1425, %v1477
    %v1479 = vpop.f32.mrb[0].mxu0
    %v1480 = vadd.f32 %v1427, %v1479
    %v1481 = vpop.f32.mrb[0].mxu0
    %v1482 = vadd.f32 %v1429, %v1481
    %v1483 = vpop.f32.mrb[0].mxu0
    %v1484 = vadd.f32 %v1431, %v1483
    %1485 = vmatprep.mubr.bf16.mxu0 %v336
    %1486 = vmatmul.mubr.bf16.gmra.mrb[0].mxu0 %v335
    %v1487 = vpop.f32.mrb[0].mxu0
    %v1488 = vadd.f32 %v1435, %v1487
    %v1489 = vpop.f32.mrb[0].mxu0
    %v1490 = vadd.f32 %v1437, %v1489
    %v1491 = vpop.f32.mrb[0].mxu0
    %v1492 = vadd.f32 %v1439, %v1491
    %v1493 = vpop.f32.mrb[0].mxu0
    %v1494 = vadd.f32 %v1441, %v1493
    %1495 = vdwg.mxu0
    %1496 = vmatprep.subr.bf16.mxu0 %v1131
    %1497 = vmatpush1.bf16.msra.mxu0 %v1130
    %1498 = vmatprep.subr.bf16.mxu0 0
    %1499 = vmatpush1.bf16.msra.mxu0 0
    %1500 = vmatprep.subr.bf16.mxu0 0
    %1501 = vmatpush1.bf16.msra.mxu0 0
    %1502 = vmatprep.subr.bf16.mxu0 0
    %1503 = vmatpush1.bf16.msra.mxu0 0
    %1504 = vmatprep.subr.bf16.mxu0 0
    %1505 = vmatpush1.bf16.msra.mxu0 0
    %1506 = vmatprep.subr.bf16.mxu0 0
    %1507 = vmatpush1.bf16.msra.mxu0 0
    %1508 = vmatprep.subr.bf16.mxu0 0
    %1509 = vmatpush1.bf16.msra.mxu0 0
    %1510 = vmatprep.subr.bf16.mxu0 0
    %1511 = vmatpush1.bf16.msra.mxu0 0
    %1512 = vmatprep.subr.bf16.mxu0 0
    %1513 = vmatpush1.bf16.msra.mxu0 0
    %1514 = vmatprep.subr.bf16.mxu0 0
    %1515 = vmatpush1.bf16.msra.mxu0 0
    %1516 = vmatprep.subr.bf16.mxu0 0
    %1517 = vmatpush1.bf16.msra.mxu0 0
    %1518 = vmatprep.subr.bf16.mxu0 0
    %1519 = vmatpush1.bf16.msra.mxu0 0
    %1520 = vmatprep.subr.bf16.mxu0 0
    %1521 = vmatpush1.bf16.msra.mxu0 0
    %1522 = vmatprep.subr.bf16.mxu0 0
    %1523 = vmatpush1.bf16.msra.mxu0 0
    %1524 = vmatprep.subr.bf16.mxu0 0
    %1525 = vmatpush1.bf16.msra.mxu0 0
    %1526 = vmatprep.subr.bf16.mxu0 0
    %1527 = vmatpush1.bf16.msra.mxu0 0
    %1528 = vmatprep.mubr.bf16.mxu0 0
    %1529 = vmatmul.mubr.bf16.gmra.mrb[0].mxu0 %v1332
    %v1530 = vpop.f32.mrb[0].mxu0
    %v1531 = vadd.f32 %v1478, %v1530
    %v1532 = vpop.f32.mrb[0].mxu0
    %v1533 = vadd.f32 %v1480, %v1532
    %v1534 = vpop.f32.mrb[0].mxu0
    %v1535 = vadd.f32 %v1482, %v1534
    %v1536 = vpop.f32.mrb[0].mxu0
    %v1537 = vadd.f32 %v1484, %v1536
    %1538 = vmatprep.mubr.bf16.mxu0 0
    %1539 = vmatmul.mubr.bf16.gmra.mrb[0].mxu0 %v1335
    %v1540 = vpop.f32.mrb[0].mxu0
    %v1541 = vadd.f32 %v1488, %v1540
    %v1542 = vpop.f32.mrb[0].mxu0
    %v1543 = vadd.f32 %v1490, %v1542
    %v1544 = vpop.f32.mrb[0].mxu0
    %v1545 = vadd.f32 %v1492, %v1544
    %v1546 = vpop.f32.mrb[0].mxu0
    %v1547 = vadd.f32 %v1494, %v1546
    %1548 = vdwg.mxu0
    %1549 = vmatprep.subr.bf16.mxu0 %v941
    %1550 = vmatpush1.bf16.msra.mxu0 %v940
    %1551 = vmatprep.subr.bf16.mxu0 %v945
    %1552 = vmatpush1.bf16.msra.mxu0 %v944
    %1553 = vmatprep.subr.bf16.mxu0 %v949
    %1554 = vmatpush1.bf16.msra.mxu0 %v948
    %1555 = vmatprep.subr.bf16.mxu0 %v953
    %1556 = vmatpush1.bf16.msra.mxu0 %v952
    %1557 = vmatprep.subr.bf16.mxu0 %v957
    %1558 = vmatpush1.bf16.msra.mxu0 %v956
    %1559 = vmatprep.subr.bf16.mxu0 %v961
    %1560 = vmatpush1.bf16.msra.mxu0 %v960
    %1561 = vmatprep.subr.bf16.mxu0 %v965
    %1562 = vmatpush1.bf16.msra.mxu0 %v964
    %1563 = vmatprep.subr.bf16.mxu0 %v969
    %1564 = vmatpush1.bf16.msra.mxu0 %v968
    %1565 = vmatprep.subr.bf16.mxu0 %v973
    %1566 = vmatpush1.bf16.msra.mxu0 %v972
    %1567 = vmatprep.subr.bf16.mxu0 %v977
    %1568 = vmatpush1.bf16.msra.mxu0 %v976
    %1569 = vmatprep.subr.bf16.mxu0 %v981
    %1570 = vmatpush1.bf16.msra.mxu0 %v980
    %1571 = vmatprep.subr.bf16.mxu0 %v985
    %1572 = vmatpush1.bf16.msra.mxu0 %v984
    %1573 = vmatprep.subr.bf16.mxu0 %v989
    %1574 = vmatpush1.bf16.msra.mxu0 %v988
    %1575 = vmatprep.subr.bf16.mxu0 %v993
    %1576 = vmatpush1.bf16.msra.mxu0 %v992
    %1577 = vmatprep.subr.bf16.mxu0 %v997
    %1578 = vmatpush1.bf16.msra.mxu0 %v996
    %1579 = vmatprep.subr.bf16.mxu0 %v1001
    %1580 = vmatpush1.bf16.msra.mxu0 %v1000
    %1581 = vmatprep.mubr.bf16.mxu0 %v325
    %1582 = vmatmul.mubr.bf16.gmra.mrb[0].mxu0 %v324
    %v1583 = vpop.f32.mrb[0].mxu0
    %v1584 = vadd.f32 %v271, %v1583
    %v1585 = vpop.f32.mrb[0].mxu0
    %v1586 = vadd.f32 %v275, %v1585
    %v1587 = vpop.f32.mrb[0].mxu0
    %v1588 = vadd.f32 %v271, %v1587
    %v1589 = vpop.f32.mrb[0].mxu0
    %v1590 = vadd.f32 %v275, %v1589
    %1591 = vmatprep.mubr.bf16.mxu0 %v332
    %1592 = vmatmul.mubr.bf16.gmra.mrb[0].mxu0 %v331
    %v1593 = vpop.f32.mrb[0].mxu0
    %v1594 = vadd.f32 %v271, %v1593
    %v1595 = vpop.f32.mrb[0].mxu0
    %v1596 = vadd.f32 %v275, %v1595
    %v1597 = vpop.f32.mrb[0].mxu0
    %v1598 = vadd.f32 %v271, %v1597
    %v1599 = vpop.f32.mrb[0].mxu0
    %v1600 = vadd.f32 %v275, %v1599
    %1601 = vdwg.mxu0
    %1602 = vmatprep.subr.bf16.mxu0 %v1005
    %1603 = vmatpush1.bf16.msra.mxu0 %v1004
    %1604 = vmatprep.subr.bf16.mxu0 %v1009
    %1605 = vmatpush1.bf16.msra.mxu0 %v1008
    %1606 = vmatprep.subr.bf16.mxu0 %v1013
    %1607 = vmatpush1.bf16.msra.mxu0 %v1012
    %1608 = vmatprep.subr.bf16.mxu0 %v1017
    %1609 = vmatpush1.bf16.msra.mxu0 %v1016
    %1610 = vmatprep.subr.bf16.mxu0 %v1021
    %1611 = vmatpush1.bf16.msra.mxu0 %v1020
    %1612 = vmatprep.subr.bf16.mxu0 %v1025
    %1613 = vmatpush1.bf16.msra.mxu0 %v1024
    %1614 = vmatprep.subr.bf16.mxu0 %v1029
    %1615 = vmatpush1.bf16.msra.mxu0 %v1028
    %1616 = vmatprep.subr.bf16.mxu0 %v1033
    %1617 = vmatpush1.bf16.msra.mxu0 %v1032
    %1618 = vmatprep.subr.bf16.mxu0 %v1037
    %1619 = vmatpush1.bf16.msra.mxu0 %v1036
    %1620 = vmatprep.subr.bf16.mxu0 %v1041
    %1621 = vmatpush1.bf16.msra.mxu0 %v1040
    %1622 = vmatprep.subr.bf16.mxu0 %v1045
    %1623 = vmatpush1.bf16.msra.mxu0 %v1044
    %1624 = vmatprep.subr.bf16.mxu0 %v1049
    %1625 = vmatpush1.bf16.msra.mxu0 %v1048
    %1626 = vmatprep.subr.bf16.mxu0 %v1053
    %1627 = vmatpush1.bf16.msra.mxu0 %v1052
    %1628 = vmatprep.subr.bf16.mxu0 %v1057
    %1629 = vmatpush1.bf16.msra.mxu0 %v1056
    %1630 = vmatprep.subr.bf16.mxu0 %v1061
    %1631 = vmatpush1.bf16.msra.mxu0 %v1060
    %1632 = vmatprep.subr.bf16.mxu0 %v1065
    %1633 = vmatpush1.bf16.msra.mxu0 %v1064
    %1634 = vmatprep.mubr.bf16.mxu0 %v327
    %1635 = vmatmul.mubr.bf16.gmra.mrb[0].mxu0 %v326
    %v1636 = vpop.f32.mrb[0].mxu0
    %v1637 = vadd.f32 %v1584, %v1636
    %v1638 = vpop.f32.mrb[0].mxu0
    %v1639 = vadd.f32 %v1586, %v1638
    %v1640 = vpop.f32.mrb[0].mxu0
    %v1641 = vadd.f32 %v1588, %v1640
    %v1642 = vpop.f32.mrb[0].mxu0
    %v1643 = vadd.f32 %v1590, %v1642
    %1644 = vmatprep.mubr.bf16.mxu0 %v334
    %1645 = vmatmul.mubr.bf16.gmra.mrb[0].mxu0 %v333
    %v1646 = vpop.f32.mrb[0].mxu0
    %v1647 = vadd.f32 %v1594, %v1646
    %v1648 = vpop.f32.mrb[0].mxu0
    %v1649 = vadd.f32 %v1596, %v1648
    %v1650 = vpop.f32.mrb[0].mxu0
    %v1651 = vadd.f32 %v1598, %v1650
    %v1652 = vpop.f32.mrb[0].mxu0
    %v1653 = vadd.f32 %v1600, %v1652
    %1654 = vdwg.mxu0
    %1655 = vmatprep.subr.bf16.mxu0 %v1069
    %1656 = vmatpush1.bf16.msra.mxu0 %v1068
    %1657 = vmatprep.subr.bf16.mxu0 %v1073
    %1658 = vmatpush1.bf16.msra.mxu0 %v1072
    %1659 = vmatprep.subr.bf16.mxu0 %v1077
    %1660 = vmatpush1.bf16.msra.mxu0 %v1076
    %1661 = vmatprep.subr.bf16.mxu0 %v1081
    %1662 = vmatpush1.bf16.msra.mxu0 %v1080
    %1663 = vmatprep.subr.bf16.mxu0 %v1085
    %1664 = vmatpush1.bf16.msra.mxu0 %v1084
    %1665 = vmatprep.subr.bf16.mxu0 %v1089
    %1666 = vmatpush1.bf16.msra.mxu0 %v1088
    %1667 = vmatprep.subr.bf16.mxu0 %v1093
    %1668 = vmatpush1.bf16.msra.mxu0 %v1092
    %1669 = vmatprep.subr.bf16.mxu0 %v1097
    %1670 = vmatpush1.bf16.msra.mxu0 %v1096
    %1671 = vmatprep.subr.bf16.mxu0 %v1101
    %1672 = vmatpush1.bf16.msra.mxu0 %v1100
    %1673 = vmatprep.subr.bf16.mxu0 %v1105
    %1674 = vmatpush1.bf16.msra.mxu0 %v1104
    %1675 = vmatprep.subr.bf16.mxu0 %v1109
    %1676 = vmatpush1.bf16.msra.mxu0 %v1108
    %1677 = vmatprep.subr.bf16.mxu0 %v1113
    %1678 = vmatpush1.bf16.msra.mxu0 %v1112
    %1679 = vmatprep.subr.bf16.mxu0 %v1117
    %1680 = vmatpush1.bf16.msra.mxu0 %v1116
    %1681 = vmatprep.subr.bf16.mxu0 %v1121
    %1682 = vmatpush1.bf16.msra.mxu0 %v1120
    %1683 = vmatprep.subr.bf16.mxu0 %v1125
    %1684 = vmatpush1.bf16.msra.mxu0 %v1124
    %1685 = vmatprep.subr.bf16.mxu0 %v1129
    %1686 = vmatpush1.bf16.msra.mxu0 %v1128
    %1687 = vmatprep.mubr.bf16.mxu0 %v329
    %1688 = vmatmul.mubr.bf16.gmra.mrb[0].mxu0 %v328
    %v1689 = vpop.f32.mrb[0].mxu0
    %v1690 = vadd.f32 %v1637, %v1689
    %v1691 = vpop.f32.mrb[0].mxu0
    %v1692 = vadd.f32 %v1639, %v1691
    %v1693 = vpop.f32.mrb[0].mxu0
    %v1694 = vadd.f32 %v1641, %v1693
    %v1695 = vpop.f32.mrb[0].mxu0
    %v1696 = vadd.f32 %v1643, %v1695
    %1697 = vmatprep.mubr.bf16.mxu0 %v336
    %1698 = vmatmul.mubr.bf16.gmra.mrb[0].mxu0 %v335
    %v1699 = vpop.f32.mrb[0].mxu0
    %v1700 = vadd.f32 %v1647, %v1699
    %v1701 = vpop.f32.mrb[0].mxu0
    %v1702 = vadd.f32 %v1649, %v1701
    %v1703 = vpop.f32.mrb[0].mxu0
    %v1704 = vadd.f32 %v1651, %v1703
    %v1705 = vpop.f32.mrb[0].mxu0
    %v1706 = vadd.f32 %v1653, %v1705
    %1707 = vdwg.mxu0
    %1708 = vmatprep.subr.bf16.mxu0 %v1133
    %1709 = vmatpush1.bf16.msra.mxu0 %v1132
    %1710 = vmatprep.subr.bf16.mxu0 0
    %1711 = vmatpush1.bf16.msra.mxu0 0
    %1712 = vmatprep.subr.bf16.mxu0 0
    %1713 = vmatpush1.bf16.msra.mxu0 0
    %1714 = vmatprep.subr.bf16.mxu0 0
    %1715 = vmatpush1.bf16.msra.mxu0 0
    %1716 = vmatprep.subr.bf16.mxu0 0
    %1717 = vmatpush1.bf16.msra.mxu0 0
    %1718 = vmatprep.subr.bf16.mxu0 0
    %1719 = vmatpush1.bf16.msra.mxu0 0
    %1720 = vmatprep.subr.bf16.mxu0 0
    %1721 = vmatpush1.bf16.msra.mxu0 0
    %1722 = vmatprep.subr.bf16.mxu0 0
    %1723 = vmatpush1.bf16.msra.mxu0 0
    %1724 = vmatprep.subr.bf16.mxu0 0
    %1725 = vmatpush1.bf16.msra.mxu0 0
    %1726 = vmatprep.subr.bf16.mxu0 0
    %1727 = vmatpush1.bf16.msra.mxu0 0
    %1728 = vmatprep.subr.bf16.mxu0 0
    %1729 = vmatpush1.bf16.msra.mxu0 0
    %1730 = vmatprep.subr.bf16.mxu0 0
    %1731 = vmatpush1.bf16.msra.mxu0 0
    %1732 = vmatprep.subr.bf16.mxu0 0
    %1733 = vmatpush1.bf16.msra.mxu0 0
    %1734 = vmatprep.subr.bf16.mxu0 0
    %1735 = vmatpush1.bf16.msra.mxu0 0
    %1736 = vmatprep.subr.bf16.mxu0 0
    %1737 = vmatpush1.bf16.msra.mxu0 0
    %1738 = vmatprep.subr.bf16.mxu0 0
    %1739 = vmatpush1.bf16.msra.mxu0 0
    %1740 = vmatprep.mubr.bf16.mxu0 0
    %1741 = vmatmul.mubr.bf16.gmra.mrb[0].mxu0 %v1332
    %v1742 = vpop.f32.mrb[0].mxu0
    %v1743 = vadd.f32 %v1690, %v1742
    %v1744 = vpop.f32.mrb[0].mxu0
    %v1745 = vadd.f32 %v1692, %v1744
    %v1746 = vpop.f32.mrb[0].mxu0
    %v1747 = vadd.f32 %v1694, %v1746
    %v1748 = vpop.f32.mrb[0].mxu0
    %v1749 = vadd.f32 %v1696, %v1748
    %1750 = vmatprep.mubr.bf16.mxu0 0
    %1751 = vmatmul.mubr.bf16.gmra.mrb[0].mxu0 %v1335
    %v1752 = vpop.f32.mrb[0].mxu0
    %v1753 = vadd.f32 %v1700, %v1752
    %v1754 = vpop.f32.mrb[0].mxu0
    %v1755 = vadd.f32 %v1702, %v1754
    %v1756 = vpop.f32.mrb[0].mxu0
    %v1757 = vadd.f32 %v1704, %v1756
    %v1758 = vpop.f32.mrb[0].mxu0
    %v1759 = vadd.f32 %v1706, %v1758
    %1760 = vdwg.mxu0
    %v1761 = vmax.f32 %v1531, 0.0
    %v1762 = vmax.f32 %v1533, 0.0
    %v1763 = vmax.f32 %v1743, 0.0
    %v1764 = vmax.f32 %v1745, 0.0
    %v1765 = vmax.f32 %v1535, 0.0
    %v1766 = vmax.f32 %v1537, 0.0
    %v1767 = vmax.f32 %v1747, 0.0
    %v1768 = vmax.f32 %v1749, 0.0
    %v1769 = vmax.f32 %v1541, 0.0
    %v1770 = vmax.f32 %v1543, 0.0
    %v1771 = vmax.f32 %v1753, 0.0
    %v1772 = vmax.f32 %v1755, 0.0
    %v1773 = vmax.f32 %v1545, 0.0
    %v1774 = vmax.f32 %v1547, 0.0
    %v1775 = vmax.f32 %v1757, 0.0
    %v1776 = vmax.f32 %v1759, 0.0
    %v1777 = vpack.c.bf16 %v1765, %v1761
    %v1778 = vpack.c.bf16 %v1766, %v1762
    %v1779 = vpack.c.bf16 %v1767, %v1763
    %v1780 = vpack.c.bf16 %v1768, %v1764
    %v1781 = vpack.c.bf16 %v1773, %v1769
    %v1782 = vpack.c.bf16 %v1774, %v1770
    %v1783 = vpack.c.bf16 %v1775, %v1771
    %v1784 = vpack.c.bf16 %v1776, %v1772
    %v1785 = vld [vmem:[%s3] sm:$0xf]
    %v1786 = vld [vmem:[%s3 + $0x4] sm:$0xf]
    %v1787 = vld [vmem:[%s3 + $0x8] sm:$0xf]
    %v1788 = vld [vmem:[%s3 + $0xc] sm:$0xf]
    %v1789 = vld [vmem:[%s3 + $0x10] sm:$0xf]
    %v1790 = vld [vmem:[%s3 + $0x14] sm:$0xf]
    %v1791 = vld [vmem:[%s3 + $0x18] sm:$0xf]
    %v1792 = vld [vmem:[%s3 + $0x1c] sm:$0xf]
    %v1793 = vld [vmem:[%s3 + $0x20] sm:$0xf]
    %v1794 = vld [vmem:[%s3 + $0x24] sm:$0xf]
    %v1795 = vld [vmem:[%s3 + $0x28] sm:$0xf]
    %v1796 = vld [vmem:[%s3 + $0x2c] sm:$0xf]
    %v1797 = vld [vmem:[%s3 + $0x30] sm:$0xf]
    %v1798 = vld [vmem:[%s3 + $0x34] sm:$0xf]
    %v1799 = vld [vmem:[%s3 + $0x38] sm:$0xf]
    %v1800 = vld [vmem:[%s3 + $0x3c] sm:$0xf]
    %v1801 = vld [vmem:[%s3 + $0x40] sm:$0xf]
    %v1802 = vld [vmem:[%s3 + $0x44] sm:$0xf]
    %v1803 = vld [vmem:[%s3 + $0x48] sm:$0xf]
    %v1804 = vld [vmem:[%s3 + $0x4c] sm:$0xf]
    %v1805 = vld [vmem:[%s3 + $0x50] sm:$0xf]
    %v1806 = vld [vmem:[%s3 + $0x54] sm:$0xf]
    %v1807 = vld [vmem:[%s3 + $0x58] sm:$0xf]
    %v1808 = vld [vmem:[%s3 + $0x5c] sm:$0xf]
    %v1809 = vld [vmem:[%s3 + $0x60] sm:$0xf]
    %v1810 = vld [vmem:[%s3 + $0x64] sm:$0xf]
    %v1811 = vld [vmem:[%s3 + $0x68] sm:$0xf]
    %v1812 = vld [vmem:[%s3 + $0x6c] sm:$0xf]
    %v1813 = vld [vmem:[%s3 + $0x70] sm:$0xf]
    %v1814 = vld [vmem:[%s3 + $0x74] sm:$0xf]
    %v1815 = vld [vmem:[%s3 + $0x78] sm:$0xf]
    %v1816 = vld [vmem:[%s3 + $0x7c] sm:$0xf]
    %v1817 = vld [vmem:[%s3 + $0x80] sm:$0xf]
    %v1818 = vld [vmem:[%s3 + $0x84] sm:$0xf]
    %v1819 = vld [vmem:[%s3 + $0x88] sm:$0xf]
    %v1820 = vld [vmem:[%s3 + $0x8c] sm:$0xf]
    %v1821 = vld [vmem:[%s3 + $0x90] sm:$0xf]
    %v1822 = vld [vmem:[%s3 + $0x94] sm:$0xf]
    %v1823 = vld [vmem:[%s3 + $0x98] sm:$0xf]
    %v1824 = vld [vmem:[%s3 + $0x9c] sm:$0xf]
    %v1825 = vld [vmem:[%s3 + $0xa0] sm:$0xf]
    %v1826 = vld [vmem:[%s3 + $0xa4] sm:$0xf]
    %v1827 = vld [vmem:[%s3 + $0xa8] sm:$0xf]
    %v1828 = vld [vmem:[%s3 + $0xac] sm:$0xf]
    %v1829 = vld [vmem:[%s3 + $0xb0] sm:$0xf]
    %v1830 = vld [vmem:[%s3 + $0xb4] sm:$0xf]
    %v1831 = vld [vmem:[%s3 + $0xb8] sm:$0xf]
    %v1832 = vld [vmem:[%s3 + $0xbc] sm:$0xf]
    %v1833 = vld [vmem:[%s3 + $0xc0] sm:$0xf]
    %v1834 = vld [vmem:[%s3 + $0xc4] sm:$0xf]
    %v1835 = vld [vmem:[%s4] sm:$0x1]
    %v1837 = vlaneseq
    %v1838 = vshrl.u32 %v1837, 7
    %v1839 = vsub.s32 0, %v1838
    %v1840 = vrot.slane %v1835, %v1839
    %v1892 = vunpack.c.l.b16 %v1785
    %v1893 = vunpack.c.l.b16 %v1786
    %v1894 = vunpack.c.l.b16 %v1787
    %v1895 = vunpack.c.l.b16 %v1788
    %v1896 = vunpack.c.l.b16 %v1789
    %v1897 = vunpack.c.l.b16 %v1790
    %v1898 = vunpack.c.l.b16 %v1791
    %v1899 = vunpack.c.l.b16 %v1792
    %v1900 = vunpack.c.l.b16 %v1793
    %v1901 = vunpack.c.l.b16 %v1794
    %v1902 = vunpack.c.l.b16 %v1795
    %v1903 = vunpack.c.l.b16 %v1796
    %v1904 = vunpack.c.l.b16 %v1797
    %v1905 = vunpack.c.l.b16 %v1798
    %v1906 = vunpack.c.l.b16 %v1799
    %v1907 = vunpack.c.l.b16 %v1800
    %v1908 = vunpack.c.l.b16 %v1801
    %v1909 = vunpack.c.l.b16 %v1802
    %v1910 = vunpack.c.l.b16 %v1803
    %v1911 = vunpack.c.l.b16 %v1804
    %v1912 = vunpack.c.l.b16 %v1805
    %v1913 = vunpack.c.l.b16 %v1806
    %v1914 = vunpack.c.l.b16 %v1807
    %v1915 = vunpack.c.l.b16 %v1808
    %v1916 = vunpack.c.l.b16 %v1809
    %v1917 = vunpack.c.l.b16 %v1810
    %v1918 = vunpack.c.l.b16 %v1811
    %v1919 = vunpack.c.l.b16 %v1812
    %v1920 = vunpack.c.l.b16 %v1813
    %v1921 = vunpack.c.l.b16 %v1814
    %v1922 = vunpack.c.l.b16 %v1815
    %v1923 = vunpack.c.l.b16 %v1816
    %v1924 = vunpack.c.l.b16 %v1817
    %v1925 = vunpack.c.l.b16 %v1818
    %v1926 = vunpack.c.l.b16 %v1819
    %v1927 = vunpack.c.l.b16 %v1820
    %v1928 = vunpack.c.l.b16 %v1821
    %v1929 = vunpack.c.l.b16 %v1822
    %v1930 = vunpack.c.l.b16 %v1823
    %v1931 = vunpack.c.l.b16 %v1824
    %v1932 = vunpack.c.l.b16 %v1825
    %v1933 = vunpack.c.l.b16 %v1826
    %v1934 = vunpack.c.l.b16 %v1827
    %v1935 = vunpack.c.l.b16 %v1828
    %v1936 = vunpack.c.l.b16 %v1829
    %v1937 = vunpack.c.l.b16 %v1830
    %v1938 = vunpack.c.l.b16 %v1831
    %v1939 = vunpack.c.l.b16 %v1832
    %v1940 = vunpack.c.l.b16 %v1833
    %v1941 = vunpack.c.l.b16 %v1834
    %v1942 = vpack.c.b16 %v1893, %v1892
    %v1943 = vpack.c.b16 %v1895, %v1894
    %v1944 = vpack.c.b16 %v1897, %v1896
    %v1945 = vpack.c.b16 %v1899, %v1898
    %v1946 = vpack.c.b16 %v1901, %v1900
    %v1947 = vpack.c.b16 %v1903, %v1902
    %v1948 = vpack.c.b16 %v1905, %v1904
    %v1949 = vpack.c.b16 %v1907, %v1906
    %v1950 = vpack.c.b16 %v1909, %v1908
    %v1951 = vpack.c.b16 %v1911, %v1910
    %v1952 = vpack.c.b16 %v1913, %v1912
    %v1953 = vpack.c.b16 %v1915, %v1914
    %v1954 = vpack.c.b16 %v1917, %v1916
    %v1955 = vpack.c.b16 %v1919, %v1918
    %v1956 = vpack.c.b16 %v1921, %v1920
    %v1957 = vpack.c.b16 %v1923, %v1922
    %v1958 = vpack.c.b16 %v1925, %v1924
    %v1959 = vpack.c.b16 %v1927, %v1926
    %v1960 = vpack.c.b16 %v1929, %v1928
    %v1961 = vpack.c.b16 %v1931, %v1930
    %v1962 = vpack.c.b16 %v1933, %v1932
    %v1963 = vpack.c.b16 %v1935, %v1934
    %v1964 = vpack.c.b16 %v1937, %v1936
    %v1965 = vpack.c.b16 %v1939, %v1938
    %v1966 = vpack.c.b16 %v1941, %v1940
    %v1993 = vsel %vm1330, %v1780, 0
    %v1996 = vsel %vm1330, %v1784, 0
    %1998 = vmatprep.subr.bf16.mxu0 0
    %1999 = vmatpush1.bf16.msra.mxu0 %v1942
    %2000 = vmatprep.subr.bf16.mxu0 0
    %2001 = vmatpush1.bf16.msra.mxu0 %v1943
    %2002 = vmatprep.subr.bf16.mxu0 0
    %2003 = vmatpush1.bf16.msra.mxu0 %v1944
    %2004 = vmatprep.subr.bf16.mxu0 0
    %2005 = vmatpush1.bf16.msra.mxu0 %v1945
    %2006 = vmatprep.subr.bf16.mxu0 0
    %2007 = vmatpush1.bf16.msra.mxu0 %v1946
    %2008 = vmatprep.subr.bf16.mxu0 0
    %2009 = vmatpush1.bf16.msra.mxu0 %v1947
    %2010 = vmatprep.subr.bf16.mxu0 0
    %2011 = vmatpush1.bf16.msra.mxu0 %v1948
    %2012 = vmatprep.subr.bf16.mxu0 0
    %2013 = vmatpush1.bf16.msra.mxu0 %v1949
    %2014 = vmatprep.subr.bf16.mxu0 0
    %2015 = vmatpush1.bf16.msra.mxu0 %v1950
    %2016 = vmatprep.subr.bf16.mxu0 0
    %2017 = vmatpush1.bf16.msra.mxu0 %v1951
    %2018 = vmatprep.subr.bf16.mxu0 0
    %2019 = vmatpush1.bf16.msra.mxu0 %v1952
    %2020 = vmatprep.subr.bf16.mxu0 0
    %2021 = vmatpush1.bf16.msra.mxu0 %v1953
    %2022 = vmatprep.subr.bf16.mxu0 0
    %2023 = vmatpush1.bf16.msra.mxu0 %v1954
    %2024 = vmatprep.subr.bf16.mxu0 0
    %2025 = vmatpush1.bf16.msra.mxu0 %v1955
    %2026 = vmatprep.subr.bf16.mxu0 0
    %2027 = vmatpush1.bf16.msra.mxu0 %v1956
    %2028 = vmatprep.subr.bf16.mxu0 0
    %2029 = vmatpush1.bf16.msra.mxu0 %v1957
    %2030 = vmatprep.mubr.bf16.mxu0 %v1778
    %2031 = vmatmul.mubr.bf16.gmra.mrb[0].mxu0 %v1777
    %v2032 = vpop.f32.mrb[0].mxu0
    %v2033 = vadd.f32 %v1840, %v2032
    %v2034 = vpop.f32.mrb[0].mxu0
    %v2035 = vpop.f32.mrb[0].mxu0
    %v2036 = vadd.f32 %v1840, %v2035
    %v2037 = vpop.f32.mrb[0].mxu0
    %2038 = vmatprep.mubr.bf16.mxu0 %v1782
    %2039 = vmatmul.mubr.bf16.gmra.mrb[0].mxu0 %v1781
    %v2040 = vpop.f32.mrb[0].mxu0
    %v2041 = vadd.f32 %v1840, %v2040
    %v2042 = vpop.f32.mrb[0].mxu0
    %v2043 = vpop.f32.mrb[0].mxu0
    %v2044 = vadd.f32 %v1840, %v2043
    %v2045 = vpop.f32.mrb[0].mxu0
    %2046 = vdwg.mxu0
    %2047 = vmatprep.subr.bf16.mxu0 0
    %2048 = vmatpush1.bf16.msra.mxu0 %v1958
    %2049 = vmatprep.subr.bf16.mxu0 0
    %2050 = vmatpush1.bf16.msra.mxu0 %v1959
    %2051 = vmatprep.subr.bf16.mxu0 0
    %2052 = vmatpush1.bf16.msra.mxu0 %v1960
    %2053 = vmatprep.subr.bf16.mxu0 0
    %2054 = vmatpush1.bf16.msra.mxu0 %v1961
    %2055 = vmatprep.subr.bf16.mxu0 0
    %2056 = vmatpush1.bf16.msra.mxu0 %v1962
    %2057 = vmatprep.subr.bf16.mxu0 0
    %2058 = vmatpush1.bf16.msra.mxu0 %v1963
    %2059 = vmatprep.subr.bf16.mxu0 0
    %2060 = vmatpush1.bf16.msra.mxu0 %v1964
    %2061 = vmatprep.subr.bf16.mxu0 0
    %2062 = vmatpush1.bf16.msra.mxu0 %v1965
    %2063 = vmatprep.subr.bf16.mxu0 0
    %2064 = vmatpush1.bf16.msra.mxu0 %v1966
    %2065 = vmatprep.subr.bf16.mxu0 0
    %2066 = vmatpush1.bf16.msra.mxu0 0
    %2067 = vmatprep.subr.bf16.mxu0 0
    %2068 = vmatpush1.bf16.msra.mxu0 0
    %2069 = vmatprep.subr.bf16.mxu0 0
    %2070 = vmatpush1.bf16.msra.mxu0 0
    %2071 = vmatprep.subr.bf16.mxu0 0
    %2072 = vmatpush1.bf16.msra.mxu0 0
    %2073 = vmatprep.subr.bf16.mxu0 0
    %2074 = vmatpush1.bf16.msra.mxu0 0
    %2075 = vmatprep.subr.bf16.mxu0 0
    %2076 = vmatpush1.bf16.msra.mxu0 0
    %2077 = vmatprep.subr.bf16.mxu0 0
    %2078 = vmatpush1.bf16.msra.mxu0 0
    %2079 = vmatprep.mubr.bf16.mxu0 %v1993
    %2080 = vmatmul.mubr.bf16.gmra.mrb[0].mxu0 %v1779
    %v2081 = vpop.f32.mrb[0].mxu0
    %v2082 = vadd.f32 %v2033, %v2081
    %v2083 = vpop.f32.mrb[0].mxu0
    %v2084 = vpop.f32.mrb[0].mxu0
    %v2085 = vadd.f32 %v2036, %v2084
    %v2086 = vpop.f32.mrb[0].mxu0
    %2087 = vmatprep.mubr.bf16.mxu0 %v1996
    %2088 = vmatmul.mubr.bf16.gmra.mrb[0].mxu0 %v1783
    %v2089 = vpop.f32.mrb[0].mxu0
    %v2090 = vadd.f32 %v2041, %v2089
    %v2091 = vpop.f32.mrb[0].mxu0
    %v2092 = vpop.f32.mrb[0].mxu0
    %v2093 = vadd.f32 %v2044, %v2092
    %v2094 = vpop.f32.mrb[0].mxu0
    %2095 = vdwg.mxu0
    %vm2096 = vcmask 80896
    %2097 = vst.msk [vmem:[%s13] sm:$0xff] %vm2096, %v2082
    %2098 = vst.msk [vmem:[%s13 + $0x8] sm:$0xff] %vm2096, %v2085
    %2099 = vst.msk [vmem:[%s13 + $0x10] sm:$0xff] %vm2096, %v2090
    %2100 = vst.msk [vmem:[%s13 + $0x18] sm:$0xff] %vm2096, %v2093
    %v2101 = vpack.c.bf16 %v2085, %v2082
    %v2102 = vpack.c.bf16 %v2093, %v2090
    %v2103 = vld [vmem:[%s6] sm:$0xf]
    %v2104 = vld [vmem:[%s6 + $0x4] sm:$0x1]
    %v2107 = vunpack.c.l.b16 %v2103
    %v2108 = vunpack.c.l.b16 %v2104
    %v2109 = vpack.c.b16 %v2108, %v2107
    %v2111 = vsel %vm2096, %v2101, 0
    %v2114 = vsel %vm2096, %v2102, 0
    %vm2116 = vcmask 1044480
    %v2118 = vsel %vm2116, %v2109, 0
    %2120 = vmatprep.subr.bf16.mxu0 0
    %2121 = vmatpush1.bf16.msra.mxu0 %v2118
    %2122 = vmatprep.subr.bf16.mxu0 0
    %2123 = vmatpush1.bf16.msra.mxu0 0
    %2124 = vmatprep.subr.bf16.mxu0 0
    %2125 = vmatpush1.bf16.msra.mxu0 0
    %2126 = vmatprep.subr.bf16.mxu0 0
    %2127 = vmatpush1.bf16.msra.mxu0 0
    %2128 = vmatprep.subr.bf16.mxu0 0
    %2129 = vmatpush1.bf16.msra.mxu0 0
    %2130 = vmatprep.subr.bf16.mxu0 0
    %2131 = vmatpush1.bf16.msra.mxu0 0
    %2132 = vmatprep.subr.bf16.mxu0 0
    %2133 = vmatpush1.bf16.msra.mxu0 0
    %2134 = vmatprep.subr.bf16.mxu0 0
    %2135 = vmatpush1.bf16.msra.mxu0 0
    %2136 = vmatprep.subr.bf16.mxu0 0
    %2137 = vmatpush1.bf16.msra.mxu0 0
    %2138 = vmatprep.subr.bf16.mxu0 0
    %2139 = vmatpush1.bf16.msra.mxu0 0
    %2140 = vmatprep.subr.bf16.mxu0 0
    %2141 = vmatpush1.bf16.msra.mxu0 0
    %2142 = vmatprep.subr.bf16.mxu0 0
    %2143 = vmatpush1.bf16.msra.mxu0 0
    %2144 = vmatprep.subr.bf16.mxu0 0
    %2145 = vmatpush1.bf16.msra.mxu0 0
    %2146 = vmatprep.subr.bf16.mxu0 0
    %2147 = vmatpush1.bf16.msra.mxu0 0
    %2148 = vmatprep.subr.bf16.mxu0 0
    %2149 = vmatpush1.bf16.msra.mxu0 0
    %2150 = vmatprep.subr.bf16.mxu0 0
    %2151 = vmatpush1.bf16.msra.mxu0 0
    %2152 = vmatprep.mubr.bf16.mxu0 0
    %2153 = vmatmul.mubr.bf16.gmra.mrb[0].mxu0 %v2111
    %v2154 = vpop.f32.mrb[0].mxu0
    %v2155 = vadd.f32 0.0, %v2154
    %v2156 = vpop.f32.mrb[0].mxu0
    %v2157 = vpop.f32.mrb[0].mxu0
    %v2158 = vadd.f32 0.0, %v2157
    %v2159 = vpop.f32.mrb[0].mxu0
    %2160 = vmatprep.mubr.bf16.mxu0 0
    %2161 = vmatmul.mubr.bf16.gmra.mrb[0].mxu0 %v2114
    %v2162 = vpop.f32.mrb[0].mxu0
    %v2163 = vadd.f32 0.0, %v2162
    %v2164 = vpop.f32.mrb[0].mxu0
    %v2165 = vpop.f32.mrb[0].mxu0
    %v2166 = vadd.f32 0.0, %v2165
    %v2167 = vpop.f32.mrb[0].mxu0
    %2168 = vdwg.mxu0
    %v2169 = vld [vmem:[%s7] sm:$0x1]
    %v2170 = vmul.f32 %v2155, 2.0
    %v2171 = vmul.f32 %v2158, 2.0
    %v2172 = vmul.f32 %v2163, 2.0
    %v2173 = vmul.f32 %v2166, 2.0
    %v2175 = vlaneseq
    %v2176 = vshrl.u32 %v2175, 7
    %v2177 = vsub.s32 0, %v2176
    %v2178 = vrot.slane %v2169, %v2177
    %v2180 = vsub.f32 %v2178, %v2170
    %v2181 = vsub.f32 %v2178, %v2171
    %v2182 = vsub.f32 %v2178, %v2172
    %v2183 = vsub.f32 %v2178, %v2173
    %v2184 = vlaneseq
    %v2185 = vand.u32 %v2184, 127
    %v2186 = vcvt.s32.f32 %v2185
    %vm2187 = vcmask 523264
    %v2188 = vsel %vm2187, %v2180, inf
    %2189 = vmin.xlane.f32.xlu0 %v2188
    %v2190 = vpop.xlane.xlu0 %2189
    %v2191 = vsel %vm2187, %v2181, inf
    %2192 = vmin.xlane.f32.xlu0 %v2191
    %v2193 = vpop.xlane.xlu0 %2192
    %v2194 = vsel %vm2187, %v2182, inf
    %2195 = vmin.xlane.f32.xlu0 %v2194
    %v2196 = vpop.xlane.xlu0 %2195
    %v2197 = vsel %vm2187, %v2183, inf
    %2198 = vmin.xlane.f32.xlu0 %v2197
    %v2199 = vpop.xlane.xlu0 %2198
    %vm2200 = vcmp.eq.f32.partialorder %v2180, %v2190
    %vm2201 = vcmp.eq.f32.partialorder %v2181, %v2193
    %vm2202 = vcmp.eq.f32.partialorder %v2182, %v2196
    %vm2203 = vcmp.eq.f32.partialorder %v2183, %v2199
    %v2204 = vsel %vm2200, %v2186, 64.0
    %v2205 = vsel %vm2201, %v2186, 64.0
    %v2206 = vsel %vm2202, %v2186, 64.0
    %v2207 = vsel %vm2203, %v2186, 64.0
    %v2208 = vsel %vm2187, %v2204, inf
    %2209 = vmin.xlane.f32.xlu0 %v2208
    %v2210 = vpop.xlane.xlu0 %2209
    %v2211 = vsel %vm2187, %v2205, inf
    %2212 = vmin.xlane.f32.xlu0 %v2211
    %v2213 = vpop.xlane.xlu0 %2212
    %v2214 = vsel %vm2187, %v2206, inf
    %2215 = vmin.xlane.f32.xlu0 %v2214
    %v2216 = vpop.xlane.xlu0 %2215
    %v2217 = vsel %vm2187, %v2207, inf
    %2218 = vmin.xlane.f32.xlu0 %v2217
    %v2219 = vpop.xlane.xlu0 %2218
    %vm2220 = vcmp.eq.f32.partialorder %v2186, %v2210
    %vm2221 = vcmp.eq.f32.partialorder %v2186, %v2213
    %vm2222 = vcmp.eq.f32.partialorder %v2186, %v2216
    %vm2223 = vcmp.eq.f32.partialorder %v2186, %v2219
    %v2224 = vsel %vm2220, 1, 0
    %v2225 = vsel %vm2221, 1, 0
    %v2226 = vsel %vm2222, 1, 0
    %v2227 = vsel %vm2223, 1, 0
    %v2228 = vcvt.s32.f32 %v2224
    %v2229 = vcvt.s32.f32 %v2225
    %v2230 = vcvt.s32.f32 %v2226
    %v2231 = vcvt.s32.f32 %v2227
    %v2232 = vpack.c.bf16 %v2229, %v2228
    %v2233 = vpack.c.bf16 %v2231, %v2230
    %v2234 = vld [vmem:[%s5] sm:$0xf]
    %v2235 = vld [vmem:[%s5 + $0x4] sm:$0xf]
    %v2236 = vld [vmem:[%s5 + $0x8] sm:$0xf]
    %v2237 = vld [vmem:[%s5 + $0xc] sm:$0xf]
    %v2238 = vld [vmem:[%s5 + $0x10] sm:$0xf]
    %v2239 = vld [vmem:[%s5 + $0x14] sm:$0xf]
    %v2240 = vld [vmem:[%s5 + $0x18] sm:$0xf]
    %v2241 = vld [vmem:[%s5 + $0x1c] sm:$0xf]
    %v2250 = vunpack.c.l.b16 %v2234
    %v2251 = vunpack.c.l.b16 %v2235
    %v2252 = vunpack.c.l.b16 %v2236
    %v2253 = vunpack.c.l.b16 %v2237
    %v2254 = vunpack.c.l.b16 %v2238
    %v2255 = vunpack.c.l.b16 %v2239
    %v2256 = vunpack.c.l.b16 %v2240
    %v2257 = vunpack.c.l.b16 %v2241
    %v2258 = vpack.c.b16 %v2251, %v2250
    %v2259 = vpack.c.b16 %v2253, %v2252
    %v2260 = vpack.c.b16 %v2255, %v2254
    %v2261 = vpack.c.b16 %v2257, %v2256
    %v2267 = vsel %vm2187, %v2232, 0
    %v2270 = vsel %vm2187, %v2233, 0
    %2272 = vmatprep.subr.bf16.mxu0 0
    %2273 = vmatpush1.bf16.msra.mxu0 %v2258
    %2274 = vmatprep.subr.bf16.mxu0 0
    %2275 = vmatpush1.bf16.msra.mxu0 %v2259
    %2276 = vmatprep.subr.bf16.mxu0 0
    %2277 = vmatpush1.bf16.msra.mxu0 %v2260
    %2278 = vmatprep.subr.bf16.mxu0 0
    %2279 = vmatpush1.bf16.msra.mxu0 %v2261
    %2280 = vmatprep.subr.bf16.mxu0 0
    %2281 = vmatpush1.bf16.msra.mxu0 0
    %2282 = vmatprep.subr.bf16.mxu0 0
    %2283 = vmatpush1.bf16.msra.mxu0 0
    %2284 = vmatprep.subr.bf16.mxu0 0
    %2285 = vmatpush1.bf16.msra.mxu0 0
    %2286 = vmatprep.subr.bf16.mxu0 0
    %2287 = vmatpush1.bf16.msra.mxu0 0
    %2288 = vmatprep.subr.bf16.mxu0 0
    %2289 = vmatpush1.bf16.msra.mxu0 0
    %2290 = vmatprep.subr.bf16.mxu0 0
    %2291 = vmatpush1.bf16.msra.mxu0 0
    %2292 = vmatprep.subr.bf16.mxu0 0
    %2293 = vmatpush1.bf16.msra.mxu0 0
    %2294 = vmatprep.subr.bf16.mxu0 0
    %2295 = vmatpush1.bf16.msra.mxu0 0
    %2296 = vmatprep.subr.bf16.mxu0 0
    %2297 = vmatpush1.bf16.msra.mxu0 0
    %2298 = vmatprep.subr.bf16.mxu0 0
    %2299 = vmatpush1.bf16.msra.mxu0 0
    %2300 = vmatprep.subr.bf16.mxu0 0
    %2301 = vmatpush1.bf16.msra.mxu0 0
    %2302 = vmatprep.subr.bf16.mxu0 0
    %2303 = vmatpush1.bf16.msra.mxu0 0
    %2304 = vmatprep.mubr.bf16.mxu0 0
    %2305 = vmatmul.mubr.bf16.gmra.mrb[0].mxu0 %v2267
    %v2306 = vpop.f32.mrb[0].mxu0
    %v2307 = vadd.f32 0.0, %v2306
    %v2308 = vpop.f32.mrb[0].mxu0
    %v2309 = vpop.f32.mrb[0].mxu0
    %v2310 = vadd.f32 0.0, %v2309
    %v2311 = vpop.f32.mrb[0].mxu0
    %2312 = vmatprep.mubr.bf16.mxu0 0
    %2313 = vmatmul.mubr.bf16.gmra.mrb[0].mxu0 %v2270
    %v2314 = vpop.f32.mrb[0].mxu0
    %v2315 = vadd.f32 0.0, %v2314
    %v2316 = vpop.f32.mrb[0].mxu0
    %v2317 = vpop.f32.mrb[0].mxu0
    %v2318 = vadd.f32 0.0, %v2317
    %v2319 = vpop.f32.mrb[0].mxu0
    %2320 = vdwg.mxu0
    %2321 = vst.msk [vmem:[%s14] sm:$0xff] %vm2096, %v2307
    %2322 = vst.msk [vmem:[%s14 + $0x8] sm:$0xff] %vm2096, %v2310
    %2323 = vst.msk [vmem:[%s14 + $0x10] sm:$0xff] %vm2096, %v2315
    %2324 = vst.msk [vmem:[%s14 + $0x18] sm:$0xff] %vm2096, %v2318
    %v2325 = vld [vmem:[%s8] sm:$0xff]
    %v2326 = vld [vmem:[%s8 + $0x8] sm:$0xff]
    %v2327 = vld [vmem:[%s8 + $0x10] sm:$0xff]
    %v2328 = vld [vmem:[%s8 + $0x18] sm:$0xff]
    %v2329 = vld [vmem:[%s8 + $0x20] sm:$0xff]
    %v2330 = vld [vmem:[%s8 + $0x28] sm:$0xff]
    %v2331 = vld [vmem:[%s8 + $0x30] sm:$0xff]
    %v2332 = vld [vmem:[%s8 + $0x38] sm:$0xff]
    %v2333 = vld [vmem:[%s8 + $0x40] sm:$0xff]
    %v2334 = vld [vmem:[%s8 + $0x48] sm:$0xff]
    %v2335 = vld [vmem:[%s8 + $0x50] sm:$0xff]
    %v2336 = vld [vmem:[%s8 + $0x58] sm:$0xff]
    %v2337 = vld [vmem:[%s8 + $0x60] sm:$0xff]
    %v2338 = vld [vmem:[%s8 + $0x68] sm:$0xff]
    %v2339 = vld [vmem:[%s8 + $0x70] sm:$0xff]
    %v2340 = vld [vmem:[%s8 + $0x78] sm:$0xff]
    %v2341 = vld [vmem:[%s9] sm:$0xf]
    %v2343 = vlaneseq
    %v2344 = vshrl.u32 %v2343, 7
    %v2345 = vsub.s32 0, %v2344
    %v2346 = vrot.slane %v2341, %v2345
    %v2347 = vlaneseq
    %v2348 = vshrl.u32 %v2347, 7
    %v2349 = vsub.s32 1, %v2348
    %v2350 = vrot.slane %v2341, %v2349
    %v2351 = vlaneseq
    %v2352 = vshrl.u32 %v2351, 7
    %v2353 = vsub.s32 2, %v2352
    %v2354 = vrot.slane %v2341, %v2353
    %v2355 = vlaneseq
    %v2356 = vshrl.u32 %v2355, 7
    %v2357 = vsub.s32 3, %v2356
    %v2358 = vrot.slane %v2341, %v2357
    %v2379 = vunpack.c.l.b16 %v2325
    %v2380 = vunpack.c.h.b16 %v2325
    %v2381 = vunpack.c.l.b16 %v2326
    %v2382 = vunpack.c.h.b16 %v2326
    %v2383 = vunpack.c.l.b16 %v2327
    %v2384 = vunpack.c.h.b16 %v2327
    %v2385 = vunpack.c.l.b16 %v2328
    %v2386 = vunpack.c.h.b16 %v2328
    %v2387 = vunpack.c.l.b16 %v2329
    %v2388 = vunpack.c.h.b16 %v2329
    %v2389 = vunpack.c.l.b16 %v2330
    %v2390 = vunpack.c.h.b16 %v2330
    %v2391 = vunpack.c.l.b16 %v2331
    %v2392 = vunpack.c.h.b16 %v2331
    %v2393 = vunpack.c.l.b16 %v2332
    %v2394 = vunpack.c.h.b16 %v2332
    %v2395 = vunpack.c.l.b16 %v2333
    %v2396 = vunpack.c.h.b16 %v2333
    %v2397 = vunpack.c.l.b16 %v2334
    %v2398 = vunpack.c.h.b16 %v2334
    %v2399 = vunpack.c.l.b16 %v2335
    %v2400 = vunpack.c.h.b16 %v2335
    %v2401 = vunpack.c.l.b16 %v2336
    %v2402 = vunpack.c.h.b16 %v2336
    %v2403 = vunpack.c.l.b16 %v2337
    %v2404 = vunpack.c.h.b16 %v2337
    %v2405 = vunpack.c.l.b16 %v2338
    %v2406 = vunpack.c.h.b16 %v2338
    %v2407 = vunpack.c.l.b16 %v2339
    %v2408 = vunpack.c.h.b16 %v2339
    %v2409 = vunpack.c.l.b16 %v2340
    %v2410 = vunpack.c.h.b16 %v2340
    %v2411 = vpack.c.b16 %v2383, %v2379
    %v2412 = vpack.c.b16 %v2384, %v2380
    %v2413 = vpack.c.b16 %v2385, %v2381
    %v2414 = vpack.c.b16 %v2386, %v2382
    %v2415 = vpack.c.b16 %v2391, %v2387
    %v2416 = vpack.c.b16 %v2392, %v2388
    %v2417 = vpack.c.b16 %v2393, %v2389
    %v2418 = vpack.c.b16 %v2394, %v2390
    %v2419 = vpack.c.b16 %v2399, %v2395
    %v2420 = vpack.c.b16 %v2400, %v2396
    %v2421 = vpack.c.b16 %v2401, %v2397
    %v2422 = vpack.c.b16 %v2402, %v2398
    %v2423 = vpack.c.b16 %v2407, %v2403
    %v2424 = vpack.c.b16 %v2408, %v2404
    %v2425 = vpack.c.b16 %v2409, %v2405
    %v2426 = vpack.c.b16 %v2410, %v2406
    %2443 = vmatprep.subr.bf16.mxu0 %v2412
    %2444 = vmatpush1.bf16.msra.mxu0 %v2411
    %2445 = vmatprep.subr.bf16.mxu0 %v2416
    %2446 = vmatpush1.bf16.msra.mxu0 %v2415
    %2447 = vmatprep.subr.bf16.mxu0 %v2420
    %2448 = vmatpush1.bf16.msra.mxu0 %v2419
    %2449 = vmatprep.subr.bf16.mxu0 %v2424
    %2450 = vmatpush1.bf16.msra.mxu0 %v2423
    %2451 = vmatprep.subr.bf16.mxu0 0
    %2452 = vmatpush1.bf16.msra.mxu0 0
    %2453 = vmatprep.subr.bf16.mxu0 0
    %2454 = vmatpush1.bf16.msra.mxu0 0
    %2455 = vmatprep.subr.bf16.mxu0 0
    %2456 = vmatpush1.bf16.msra.mxu0 0
    %2457 = vmatprep.subr.bf16.mxu0 0
    %2458 = vmatpush1.bf16.msra.mxu0 0
    %2459 = vmatprep.subr.bf16.mxu0 0
    %2460 = vmatpush1.bf16.msra.mxu0 0
    %2461 = vmatprep.subr.bf16.mxu0 0
    %2462 = vmatpush1.bf16.msra.mxu0 0
    %2463 = vmatprep.subr.bf16.mxu0 0
    %2464 = vmatpush1.bf16.msra.mxu0 0
    %2465 = vmatprep.subr.bf16.mxu0 0
    %2466 = vmatpush1.bf16.msra.mxu0 0
    %2467 = vmatprep.subr.bf16.mxu0 0
    %2468 = vmatpush1.bf16.msra.mxu0 0
    %2469 = vmatprep.subr.bf16.mxu0 0
    %2470 = vmatpush1.bf16.msra.mxu0 0
    %2471 = vmatprep.subr.bf16.mxu0 0
    %2472 = vmatpush1.bf16.msra.mxu0 0
    %2473 = vmatprep.subr.bf16.mxu0 0
    %2474 = vmatpush1.bf16.msra.mxu0 0
    %2475 = vmatprep.mubr.bf16.mxu0 0
    %2476 = vmatmul.mubr.bf16.gmra.mrb[0].mxu0 %v2267
    %v2477 = vpop.f32.mrb[0].mxu0
    %v2478 = vadd.f32 %v2346, %v2477
    %v2479 = vpop.f32.mrb[0].mxu0
    %v2480 = vadd.f32 %v2350, %v2479
    %v2481 = vpop.f32.mrb[0].mxu0
    %v2482 = vadd.f32 %v2346, %v2481
    %v2483 = vpop.f32.mrb[0].mxu0
    %v2484 = vadd.f32 %v2350, %v2483
    %2485 = vmatprep.mubr.bf16.mxu0 0
    %2486 = vmatmul.mubr.bf16.gmra.mrb[0].mxu0 %v2270
    %v2487 = vpop.f32.mrb[0].mxu0
    %v2488 = vadd.f32 %v2346, %v2487
    %v2489 = vpop.f32.mrb[0].mxu0
    %v2490 = vadd.f32 %v2350, %v2489
    %v2491 = vpop.f32.mrb[0].mxu0
    %v2492 = vadd.f32 %v2346, %v2491
    %v2493 = vpop.f32.mrb[0].mxu0
    %v2494 = vadd.f32 %v2350, %v2493
    %2495 = vdwg.mxu0
    %2496 = vmatprep.subr.bf16.mxu0 %v2414
    %2497 = vmatpush1.bf16.msra.mxu0 %v2413
    %2498 = vmatprep.subr.bf16.mxu0 %v2418
    %2499 = vmatpush1.bf16.msra.mxu0 %v2417
    %2500 = vmatprep.subr.bf16.mxu0 %v2422
    %2501 = vmatpush1.bf16.msra.mxu0 %v2421
    %2502 = vmatprep.subr.bf16.mxu0 %v2426
    %2503 = vmatpush1.bf16.msra.mxu0 %v2425
    %2504 = vmatprep.subr.bf16.mxu0 0
    %2505 = vmatpush1.bf16.msra.mxu0 0
    %2506 = vmatprep.subr.bf16.mxu0 0
    %2507 = vmatpush1.bf16.msra.mxu0 0
    %2508 = vmatprep.subr.bf16.mxu0 0
    %2509 = vmatpush1.bf16.msra.mxu0 0
    %2510 = vmatprep.subr.bf16.mxu0 0
    %2511 = vmatpush1.bf16.msra.mxu0 0
    %2512 = vmatprep.subr.bf16.mxu0 0
    %2513 = vmatpush1.bf16.msra.mxu0 0
    %2514 = vmatprep.subr.bf16.mxu0 0
    %2515 = vmatpush1.bf16.msra.mxu0 0
    %2516 = vmatprep.subr.bf16.mxu0 0
    %2517 = vmatpush1.bf16.msra.mxu0 0
    %2518 = vmatprep.subr.bf16.mxu0 0
    %2519 = vmatpush1.bf16.msra.mxu0 0
    %2520 = vmatprep.subr.bf16.mxu0 0
    %2521 = vmatpush1.bf16.msra.mxu0 0
    %2522 = vmatprep.subr.bf16.mxu0 0
    %2523 = vmatpush1.bf16.msra.mxu0 0
    %2524 = vmatprep.subr.bf16.mxu0 0
    %2525 = vmatpush1.bf16.msra.mxu0 0
    %2526 = vmatprep.subr.bf16.mxu0 0
    %2527 = vmatpush1.bf16.msra.mxu0 0
    %2528 = vmatprep.mubr.bf16.mxu0 0
    %2529 = vmatmul.mubr.bf16.gmra.mrb[0].mxu0 %v2267
    %v2530 = vpop.f32.mrb[0].mxu0
    %v2531 = vadd.f32 %v2354, %v2530
    %v2532 = vpop.f32.mrb[0].mxu0
    %v2533 = vadd.f32 %v2358, %v2532
    %v2534 = vpop.f32.mrb[0].mxu0
    %v2535 = vadd.f32 %v2354, %v2534
    %v2536 = vpop.f32.mrb[0].mxu0
    %v2537 = vadd.f32 %v2358, %v2536
    %2538 = vmatprep.mubr.bf16.mxu0 0
    %2539 = vmatmul.mubr.bf16.gmra.mrb[0].mxu0 %v2270
    %v2540 = vpop.f32.mrb[0].mxu0
    %v2541 = vadd.f32 %v2354, %v2540
    %v2542 = vpop.f32.mrb[0].mxu0
    %v2543 = vadd.f32 %v2358, %v2542
    %v2544 = vpop.f32.mrb[0].mxu0
    %v2545 = vadd.f32 %v2354, %v2544
    %v2546 = vpop.f32.mrb[0].mxu0
    %v2547 = vadd.f32 %v2358, %v2546
    %2548 = vdwg.mxu0
    %v2549 = vmax.f32 %v2478, 0.0
    %v2550 = vmax.f32 %v2480, 0.0
    %v2551 = vmax.f32 %v2531, 0.0
    %v2552 = vmax.f32 %v2533, 0.0
    %v2553 = vmax.f32 %v2482, 0.0
    %v2554 = vmax.f32 %v2484, 0.0
    %v2555 = vmax.f32 %v2535, 0.0
    %v2556 = vmax.f32 %v2537, 0.0
    %v2557 = vmax.f32 %v2488, 0.0
    %v2558 = vmax.f32 %v2490, 0.0
    %v2559 = vmax.f32 %v2541, 0.0
    %v2560 = vmax.f32 %v2543, 0.0
    %v2561 = vmax.f32 %v2492, 0.0
    %v2562 = vmax.f32 %v2494, 0.0
    %v2563 = vmax.f32 %v2545, 0.0
    %v2564 = vmax.f32 %v2547, 0.0
    %v2565 = vpack.c.bf16 %v2553, %v2549
    %v2566 = vpack.c.bf16 %v2554, %v2550
    %v2567 = vpack.c.bf16 %v2555, %v2551
    %v2568 = vpack.c.bf16 %v2556, %v2552
    %v2569 = vpack.c.bf16 %v2561, %v2557
    %v2570 = vpack.c.bf16 %v2562, %v2558
    %v2571 = vpack.c.bf16 %v2563, %v2559
    %v2572 = vpack.c.bf16 %v2564, %v2560
    %v2573 = vld [vmem:[%s10] sm:$0xff]
    %v2574 = vld [vmem:[%s10 + $0x8] sm:$0xff]
    %v2575 = vld [vmem:[%s10 + $0x10] sm:$0xff]
    %v2576 = vld [vmem:[%s10 + $0x18] sm:$0xf]
    %v2577 = vld [vmem:[%s10 + $0x1c] sm:$0xff]
    %v2578 = vld [vmem:[%s10 + $0x24] sm:$0xff]
    %v2579 = vld [vmem:[%s10 + $0x2c] sm:$0xff]
    %v2580 = vld [vmem:[%s10 + $0x34] sm:$0xf]
    %v2581 = vld [vmem:[%s10 + $0x38] sm:$0xff]
    %v2582 = vld [vmem:[%s10 + $0x40] sm:$0xff]
    %v2583 = vld [vmem:[%s10 + $0x48] sm:$0xff]
    %v2584 = vld [vmem:[%s10 + $0x50] sm:$0xf]
    %v2585 = vld [vmem:[%s10 + $0x54] sm:$0xff]
    %v2586 = vld [vmem:[%s10 + $0x5c] sm:$0xff]
    %v2587 = vld [vmem:[%s10 + $0x64] sm:$0xff]
    %v2588 = vld [vmem:[%s10 + $0x6c] sm:$0xf]
    %v2589 = vld [vmem:[%s10 + $0x70] sm:$0xff]
    %v2590 = vld [vmem:[%s10 + $0x78] sm:$0xff]
    %v2591 = vld [vmem:[%s10 + $0x80] sm:$0xff]
    %v2592 = vld [vmem:[%s10 + $0x88] sm:$0xf]
    %v2593 = vld [vmem:[%s10 + $0x8c] sm:$0xff]
    %v2594 = vld [vmem:[%s10 + $0x94] sm:$0xff]
    %v2595 = vld [vmem:[%s10 + $0x9c] sm:$0xff]
    %v2596 = vld [vmem:[%s10 + $0xa4] sm:$0xf]
    %v2597 = vld [vmem:[%s10 + $0xa8] sm:$0xff]
    %v2598 = vld [vmem:[%s10 + $0xb0] sm:$0xff]
    %v2599 = vld [vmem:[%s10 + $0xb8] sm:$0xff]
    %v2600 = vld [vmem:[%s10 + $0xc0] sm:$0xf]
    %v2601 = vld [vmem:[%s10 + $0xc4] sm:$0xff]
    %v2602 = vld [vmem:[%s10 + $0xcc] sm:$0xff]
    %v2603 = vld [vmem:[%s10 + $0xd4] sm:$0xff]
    %v2604 = vld [vmem:[%s10 + $0xdc] sm:$0xf]
    %v2605 = vld [vmem:[%s10 + $0xe0] sm:$0xff]
    %v2606 = vld [vmem:[%s10 + $0xe8] sm:$0xff]
    %v2607 = vld [vmem:[%s10 + $0xf0] sm:$0xff]
    %v2608 = vld [vmem:[%s10 + $0xf8] sm:$0xf]
    %v2609 = vld [vmem:[%s10 + $0xfc] sm:$0xff]
    %v2610 = vld [vmem:[%s10 + $0x104] sm:$0xff]
    %v2611 = vld [vmem:[%s10 + $0x10c] sm:$0xff]
    %v2612 = vld [vmem:[%s10 + $0x114] sm:$0xf]
    %v2613 = vld [vmem:[%s10 + $0x118] sm:$0xff]
    %v2614 = vld [vmem:[%s10 + $0x120] sm:$0xff]
    %v2615 = vld [vmem:[%s10 + $0x128] sm:$0xff]
    %v2616 = vld [vmem:[%s10 + $0x130] sm:$0xf]
    %v2617 = vld [vmem:[%s10 + $0x134] sm:$0xff]
    %v2618 = vld [vmem:[%s10 + $0x13c] sm:$0xff]
    %v2619 = vld [vmem:[%s10 + $0x144] sm:$0xff]
    %v2620 = vld [vmem:[%s10 + $0x14c] sm:$0xf]
    %v2621 = vld [vmem:[%s10 + $0x150] sm:$0xff]
    %v2622 = vld [vmem:[%s10 + $0x158] sm:$0xff]
    %v2623 = vld [vmem:[%s10 + $0x160] sm:$0xff]
    %v2624 = vld [vmem:[%s10 + $0x168] sm:$0xf]
    %v2625 = vld [vmem:[%s10 + $0x16c] sm:$0xff]
    %v2626 = vld [vmem:[%s10 + $0x174] sm:$0xff]
    %v2627 = vld [vmem:[%s10 + $0x17c] sm:$0xff]
    %v2628 = vld [vmem:[%s10 + $0x184] sm:$0xf]
    %v2629 = vld [vmem:[%s10 + $0x188] sm:$0xff]
    %v2630 = vld [vmem:[%s10 + $0x190] sm:$0xff]
    %v2631 = vld [vmem:[%s10 + $0x198] sm:$0xff]
    %v2632 = vld [vmem:[%s10 + $0x1a0] sm:$0xf]
    %v2633 = vld [vmem:[%s10 + $0x1a4] sm:$0xff]
    %v2634 = vld [vmem:[%s10 + $0x1ac] sm:$0xff]
    %v2635 = vld [vmem:[%s10 + $0x1b4] sm:$0xff]
    %v2636 = vld [vmem:[%s10 + $0x1bc] sm:$0xf]
    %v2637 = vld [vmem:[%s10 + $0x1c0] sm:$0xff]
    %v2638 = vld [vmem:[%s10 + $0x1c8] sm:$0xff]
    %v2639 = vld [vmem:[%s10 + $0x1d0] sm:$0xff]
    %v2640 = vld [vmem:[%s10 + $0x1d8] sm:$0xf]
    %v2641 = vld [vmem:[%s10 + $0x1dc] sm:$0xff]
    %v2642 = vld [vmem:[%s10 + $0x1e4] sm:$0xff]
    %v2643 = vld [vmem:[%s10 + $0x1ec] sm:$0xff]
    %v2644 = vld [vmem:[%s10 + $0x1f4] sm:$0xf]
    %v2645 = vld [vmem:[%s10 + $0x1f8] sm:$0xff]
    %v2646 = vld [vmem:[%s10 + $0x200] sm:$0xff]
    %v2647 = vld [vmem:[%s10 + $0x208] sm:$0xff]
    %v2648 = vld [vmem:[%s10 + $0x210] sm:$0xf]
    %v2649 = vld [vmem:[%s10 + $0x214] sm:$0xff]
    %v2650 = vld [vmem:[%s10 + $0x21c] sm:$0xff]
    %v2651 = vld [vmem:[%s10 + $0x224] sm:$0xff]
    %v2652 = vld [vmem:[%s10 + $0x22c] sm:$0xf]
    %v2653 = vld [vmem:[%s10 + $0x230] sm:$0xff]
    %v2654 = vld [vmem:[%s10 + $0x238] sm:$0xff]
    %v2655 = vld [vmem:[%s10 + $0x240] sm:$0xff]
    %v2656 = vld [vmem:[%s10 + $0x248] sm:$0xf]
    %v2657 = vld [vmem:[%s10 + $0x24c] sm:$0xff]
    %v2658 = vld [vmem:[%s10 + $0x254] sm:$0xff]
    %v2659 = vld [vmem:[%s10 + $0x25c] sm:$0xff]
    %v2660 = vld [vmem:[%s10 + $0x264] sm:$0xf]
    %v2661 = vld [vmem:[%s10 + $0x268] sm:$0xff]
    %v2662 = vld [vmem:[%s10 + $0x270] sm:$0xff]
    %v2663 = vld [vmem:[%s10 + $0x278] sm:$0xff]
    %v2664 = vld [vmem:[%s10 + $0x280] sm:$0xf]
    %v2665 = vld [vmem:[%s10 + $0x284] sm:$0xff]
    %v2666 = vld [vmem:[%s10 + $0x28c] sm:$0xff]
    %v2667 = vld [vmem:[%s10 + $0x294] sm:$0xff]
    %v2668 = vld [vmem:[%s10 + $0x29c] sm:$0xf]
    %v2669 = vld [vmem:[%s10 + $0x2a0] sm:$0xff]
    %v2670 = vld [vmem:[%s10 + $0x2a8] sm:$0xff]
    %v2671 = vld [vmem:[%s10 + $0x2b0] sm:$0xff]
    %v2672 = vld [vmem:[%s10 + $0x2b8] sm:$0xf]
    %v2673 = vld [vmem:[%s10 + $0x2bc] sm:$0xff]
    %v2674 = vld [vmem:[%s10 + $0x2c4] sm:$0xff]
    %v2675 = vld [vmem:[%s10 + $0x2cc] sm:$0xff]
    %v2676 = vld [vmem:[%s10 + $0x2d4] sm:$0xf]
    %v2677 = vld [vmem:[%s10 + $0x2d8] sm:$0xff]
    %v2678 = vld [vmem:[%s10 + $0x2e0] sm:$0xff]
    %v2679 = vld [vmem:[%s10 + $0x2e8] sm:$0xff]
    %v2680 = vld [vmem:[%s10 + $0x2f0] sm:$0xf]
    %v2681 = vld [vmem:[%s10 + $0x2f4] sm:$0xff]
    %v2682 = vld [vmem:[%s10 + $0x2fc] sm:$0xff]
    %v2683 = vld [vmem:[%s10 + $0x304] sm:$0xff]
    %v2684 = vld [vmem:[%s10 + $0x30c] sm:$0xf]
    %v2685 = vld [vmem:[%s10 + $0x310] sm:$0xff]
    %v2686 = vld [vmem:[%s10 + $0x318] sm:$0xff]
    %v2687 = vld [vmem:[%s10 + $0x320] sm:$0xff]
    %v2688 = vld [vmem:[%s10 + $0x328] sm:$0xf]
    %v2689 = vld [vmem:[%s10 + $0x32c] sm:$0xff]
    %v2690 = vld [vmem:[%s10 + $0x334] sm:$0xff]
    %v2691 = vld [vmem:[%s10 + $0x33c] sm:$0xff]
    %v2692 = vld [vmem:[%s10 + $0x344] sm:$0xf]
    %v2693 = vld [vmem:[%s10 + $0x348] sm:$0xff]
    %v2694 = vld [vmem:[%s10 + $0x350] sm:$0xff]
    %v2695 = vld [vmem:[%s10 + $0x358] sm:$0xff]
    %v2696 = vld [vmem:[%s10 + $0x360] sm:$0xf]
    %v2697 = vld [vmem:[%s10 + $0x364] sm:$0xff]
    %v2698 = vld [vmem:[%s10 + $0x36c] sm:$0xff]
    %v2699 = vld [vmem:[%s10 + $0x374] sm:$0xff]
    %v2700 = vld [vmem:[%s10 + $0x37c] sm:$0xf]
    %v2701 = vld [vmem:[%s10 + $0x380] sm:$0xff]
    %v2702 = vld [vmem:[%s10 + $0x388] sm:$0xff]
    %v2703 = vld [vmem:[%s10 + $0x390] sm:$0xff]
    %v2704 = vld [vmem:[%s10 + $0x398] sm:$0xf]
    %v2705 = vld [vmem:[%s10 + $0x39c] sm:$0xff]
    %v2706 = vld [vmem:[%s10 + $0x3a4] sm:$0xff]
    %v2707 = vld [vmem:[%s10 + $0x3ac] sm:$0xff]
    %v2708 = vld [vmem:[%s10 + $0x3b4] sm:$0xf]
    %v2709 = vld [vmem:[%s10 + $0x3b8] sm:$0xff]
    %v2710 = vld [vmem:[%s10 + $0x3c0] sm:$0xff]
    %v2711 = vld [vmem:[%s10 + $0x3c8] sm:$0xff]
    %v2712 = vld [vmem:[%s10 + $0x3d0] sm:$0xf]
    %v2713 = vld [vmem:[%s10 + $0x3d4] sm:$0xff]
    %v2714 = vld [vmem:[%s10 + $0x3dc] sm:$0xff]
    %v2715 = vld [vmem:[%s10 + $0x3e4] sm:$0xff]
    %v2716 = vld [vmem:[%s10 + $0x3ec] sm:$0xf]
    %v2717 = vld [vmem:[%s10 + $0x3f0] sm:$0xff]
    %v2718 = vld [vmem:[%s10 + $0x3f8] sm:$0xff]
    %v2719 = vld [vmem:[%s10 + $0x400] sm:$0xff]
    %v2720 = vld [vmem:[%s10 + $0x408] sm:$0xf]
    %v2721 = vld [vmem:[%s10 + $0x40c] sm:$0xff]
    %v2722 = vld [vmem:[%s10 + $0x414] sm:$0xff]
    %v2723 = vld [vmem:[%s10 + $0x41c] sm:$0xff]
    %v2724 = vld [vmem:[%s10 + $0x424] sm:$0xf]
    %v2725 = vld [vmem:[%s10 + $0x428] sm:$0xff]
    %v2726 = vld [vmem:[%s10 + $0x430] sm:$0xff]
    %v2727 = vld [vmem:[%s10 + $0x438] sm:$0xff]
    %v2728 = vld [vmem:[%s10 + $0x440] sm:$0xf]
    %v2729 = vld [vmem:[%s10 + $0x444] sm:$0xff]
    %v2730 = vld [vmem:[%s10 + $0x44c] sm:$0xff]
    %v2731 = vld [vmem:[%s10 + $0x454] sm:$0xff]
    %v2732 = vld [vmem:[%s10 + $0x45c] sm:$0xf]
    %v2733 = vld [vmem:[%s10 + $0x460] sm:$0xff]
    %v2734 = vld [vmem:[%s10 + $0x468] sm:$0xff]
    %v2735 = vld [vmem:[%s10 + $0x470] sm:$0xff]
    %v2736 = vld [vmem:[%s10 + $0x478] sm:$0xf]
    %v2737 = vld [vmem:[%s10 + $0x47c] sm:$0xff]
    %v2738 = vld [vmem:[%s10 + $0x484] sm:$0xff]
    %v2739 = vld [vmem:[%s10 + $0x48c] sm:$0xff]
    %v2740 = vld [vmem:[%s10 + $0x494] sm:$0xf]
    %v2741 = vld [vmem:[%s10 + $0x498] sm:$0xff]
    %v2742 = vld [vmem:[%s10 + $0x4a0] sm:$0xff]
    %v2743 = vld [vmem:[%s10 + $0x4a8] sm:$0xff]
    %v2744 = vld [vmem:[%s10 + $0x4b0] sm:$0xf]
    %v2745 = vld [vmem:[%s10 + $0x4b4] sm:$0xff]
    %v2746 = vld [vmem:[%s10 + $0x4bc] sm:$0xff]
    %v2747 = vld [vmem:[%s10 + $0x4c4] sm:$0xff]
    %v2748 = vld [vmem:[%s10 + $0x4cc] sm:$0xf]
    %v2749 = vld [vmem:[%s10 + $0x4d0] sm:$0xff]
    %v2750 = vld [vmem:[%s10 + $0x4d8] sm:$0xff]
    %v2751 = vld [vmem:[%s10 + $0x4e0] sm:$0xff]
    %v2752 = vld [vmem:[%s10 + $0x4e8] sm:$0xf]
    %v2753 = vld [vmem:[%s10 + $0x4ec] sm:$0xff]
    %v2754 = vld [vmem:[%s10 + $0x4f4] sm:$0xff]
    %v2755 = vld [vmem:[%s10 + $0x4fc] sm:$0xff]
    %v2756 = vld [vmem:[%s10 + $0x504] sm:$0xf]
    %v2757 = vld [vmem:[%s10 + $0x508] sm:$0xff]
    %v2758 = vld [vmem:[%s10 + $0x510] sm:$0xff]
    %v2759 = vld [vmem:[%s10 + $0x518] sm:$0xff]
    %v2760 = vld [vmem:[%s10 + $0x520] sm:$0xf]
    %v2761 = vld [vmem:[%s10 + $0x524] sm:$0xff]
    %v2762 = vld [vmem:[%s10 + $0x52c] sm:$0xff]
    %v2763 = vld [vmem:[%s10 + $0x534] sm:$0xff]
    %v2764 = vld [vmem:[%s10 + $0x53c] sm:$0xf]
    %v2765 = vld [vmem:[%s10 + $0x540] sm:$0xff]
    %v2766 = vld [vmem:[%s10 + $0x548] sm:$0xff]
    %v2767 = vld [vmem:[%s10 + $0x550] sm:$0xff]
    %v2768 = vld [vmem:[%s10 + $0x558] sm:$0xf]
    %v2769 = vld [vmem:[%s10 + $0x55c] sm:$0xff]
    %v2770 = vld [vmem:[%s10 + $0x564] sm:$0xff]
    %v2771 = vld [vmem:[%s10 + $0x56c] sm:$0xff]
    %v2772 = vld [vmem:[%s10 + $0x574] sm:$0xf]
    %v2773 = vld [vmem:[%s11] sm:$0x7f]
    %v2775 = vlaneseq
    %v2776 = vshrl.u32 %v2775, 7
    %v2777 = vsub.s32 0, %v2776
    %v2778 = vrot.slane %v2773, %v2777
    %v2779 = vlaneseq
    %v2780 = vshrl.u32 %v2779, 7
    %v2781 = vsub.s32 1, %v2780
    %v2782 = vrot.slane %v2773, %v2781
    %v2783 = vlaneseq
    %v2784 = vshrl.u32 %v2783, 7
    %v2785 = vsub.s32 2, %v2784
    %v2786 = vrot.slane %v2773, %v2785
    %v2787 = vlaneseq
    %v2788 = vshrl.u32 %v2787, 7
    %v2789 = vsub.s32 3, %v2788
    %v2790 = vrot.slane %v2773, %v2789
    %v2791 = vlaneseq
    %v2792 = vshrl.u32 %v2791, 7
    %v2793 = vsub.s32 4, %v2792
    %v2794 = vrot.slane %v2773, %v2793
    %v2795 = vlaneseq
    %v2796 = vshrl.u32 %v2795, 7
    %v2797 = vsub.s32 5, %v2796
    %v2798 = vrot.slane %v2773, %v2797
    %v2799 = vlaneseq
    %v2800 = vshrl.u32 %v2799, 7
    %v2801 = vsub.s32 6, %v2800
    %v2802 = vrot.slane %v2773, %v2801
    %v3010 = vunpack.c.l.b16 %v2573
    %v3011 = vunpack.c.h.b16 %v2573
    %v3012 = vunpack.c.l.b16 %v2574
    %v3013 = vunpack.c.h.b16 %v2574
    %v3014 = vunpack.c.l.b16 %v2575
    %v3015 = vunpack.c.h.b16 %v2575
    %v3016 = vunpack.c.l.b16 %v2576
    %v3017 = vunpack.c.l.b16 %v2577
    %v3018 = vunpack.c.h.b16 %v2577
    %v3019 = vunpack.c.l.b16 %v2578
    %v3020 = vunpack.c.h.b16 %v2578
    %v3021 = vunpack.c.l.b16 %v2579
    %v3022 = vunpack.c.h.b16 %v2579
    %v3023 = vunpack.c.l.b16 %v2580
    %v3024 = vunpack.c.l.b16 %v2581
    %v3025 = vunpack.c.h.b16 %v2581
    %v3026 = vunpack.c.l.b16 %v2582
    %v3027 = vunpack.c.h.b16 %v2582
    %v3028 = vunpack.c.l.b16 %v2583
    %v3029 = vunpack.c.h.b16 %v2583
    %v3030 = vunpack.c.l.b16 %v2584
    %v3031 = vunpack.c.l.b16 %v2585
    %v3032 = vunpack.c.h.b16 %v2585
    %v3033 = vunpack.c.l.b16 %v2586
    %v3034 = vunpack.c.h.b16 %v2586
    %v3035 = vunpack.c.l.b16 %v2587
    %v3036 = vunpack.c.h.b16 %v2587
    %v3037 = vunpack.c.l.b16 %v2588
    %v3038 = vunpack.c.l.b16 %v2589
    %v3039 = vunpack.c.h.b16 %v2589
    %v3040 = vunpack.c.l.b16 %v2590
    %v3041 = vunpack.c.h.b16 %v2590
    %v3042 = vunpack.c.l.b16 %v2591
    %v3043 = vunpack.c.h.b16 %v2591
    %v3044 = vunpack.c.l.b16 %v2592
    %v3045 = vunpack.c.l.b16 %v2593
    %v3046 = vunpack.c.h.b16 %v2593
    %v3047 = vunpack.c.l.b16 %v2594
    %v3048 = vunpack.c.h.b16 %v2594
    %v3049 = vunpack.c.l.b16 %v2595
    %v3050 = vunpack.c.h.b16 %v2595
    %v3051 = vunpack.c.l.b16 %v2596
    %v3052 = vunpack.c.l.b16 %v2597
    %v3053 = vunpack.c.h.b16 %v2597
    %v3054 = vunpack.c.l.b16 %v2598
    %v3055 = vunpack.c.h.b16 %v2598
    %v3056 = vunpack.c.l.b16 %v2599
    %v3057 = vunpack.c.h.b16 %v2599
    %v3058 = vunpack.c.l.b16 %v2600
    %v3059 = vunpack.c.l.b16 %v2601
    %v3060 = vunpack.c.h.b16 %v2601
    %v3061 = vunpack.c.l.b16 %v2602
    %v3062 = vunpack.c.h.b16 %v2602
    %v3063 = vunpack.c.l.b16 %v2603
    %v3064 = vunpack.c.h.b16 %v2603
    %v3065 = vunpack.c.l.b16 %v2604
    %v3066 = vunpack.c.l.b16 %v2605
    %v3067 = vunpack.c.h.b16 %v2605
    %v3068 = vunpack.c.l.b16 %v2606
    %v3069 = vunpack.c.h.b16 %v2606
    %v3070 = vunpack.c.l.b16 %v2607
    %v3071 = vunpack.c.h.b16 %v2607
    %v3072 = vunpack.c.l.b16 %v2608
    %v3073 = vunpack.c.l.b16 %v2609
    %v3074 = vunpack.c.h.b16 %v2609
    %v3075 = vunpack.c.l.b16 %v2610
    %v3076 = vunpack.c.h.b16 %v2610
    %v3077 = vunpack.c.l.b16 %v2611
    %v3078 = vunpack.c.h.b16 %v2611
    %v3079 = vunpack.c.l.b16 %v2612
    %v3080 = vunpack.c.l.b16 %v2613
    %v3081 = vunpack.c.h.b16 %v2613
    %v3082 = vunpack.c.l.b16 %v2614
    %v3083 = vunpack.c.h.b16 %v2614
    %v3084 = vunpack.c.l.b16 %v2615
    %v3085 = vunpack.c.h.b16 %v2615
    %v3086 = vunpack.c.l.b16 %v2616
    %v3087 = vunpack.c.l.b16 %v2617
    %v3088 = vunpack.c.h.b16 %v2617
    %v3089 = vunpack.c.l.b16 %v2618
    %v3090 = vunpack.c.h.b16 %v2618
    %v3091 = vunpack.c.l.b16 %v2619
    %v3092 = vunpack.c.h.b16 %v2619
    %v3093 = vunpack.c.l.b16 %v2620
    %v3094 = vunpack.c.l.b16 %v2621
    %v3095 = vunpack.c.h.b16 %v2621
    %v3096 = vunpack.c.l.b16 %v2622
    %v3097 = vunpack.c.h.b16 %v2622
    %v3098 = vunpack.c.l.b16 %v2623
    %v3099 = vunpack.c.h.b16 %v2623
    %v3100 = vunpack.c.l.b16 %v2624
    %v3101 = vunpack.c.l.b16 %v2625
    %v3102 = vunpack.c.h.b16 %v2625
    %v3103 = vunpack.c.l.b16 %v2626
    %v3104 = vunpack.c.h.b16 %v2626
    %v3105 = vunpack.c.l.b16 %v2627
    %v3106 = vunpack.c.h.b16 %v2627
    %v3107 = vunpack.c.l.b16 %v2628
    %v3108 = vunpack.c.l.b16 %v2629
    %v3109 = vunpack.c.h.b16 %v2629
    %v3110 = vunpack.c.l.b16 %v2630
    %v3111 = vunpack.c.h.b16 %v2630
    %v3112 = vunpack.c.l.b16 %v2631
    %v3113 = vunpack.c.h.b16 %v2631
    %v3114 = vunpack.c.l.b16 %v2632
    %v3115 = vunpack.c.l.b16 %v2633
    %v3116 = vunpack.c.h.b16 %v2633
    %v3117 = vunpack.c.l.b16 %v2634
    %v3118 = vunpack.c.h.b16 %v2634
    %v3119 = vunpack.c.l.b16 %v2635
    %v3120 = vunpack.c.h.b16 %v2635
    %v3121 = vunpack.c.l.b16 %v2636
    %v3122 = vunpack.c.l.b16 %v2637
    %v3123 = vunpack.c.h.b16 %v2637
    %v3124 = vunpack.c.l.b16 %v2638
    %v3125 = vunpack.c.h.b16 %v2638
    %v3126 = vunpack.c.l.b16 %v2639
    %v3127 = vunpack.c.h.b16 %v2639
    %v3128 = vunpack.c.l.b16 %v2640
    %v3129 = vunpack.c.l.b16 %v2641
    %v3130 = vunpack.c.h.b16 %v2641
    %v3131 = vunpack.c.l.b16 %v2642
    %v3132 = vunpack.c.h.b16 %v2642
    %v3133 = vunpack.c.l.b16 %v2643
    %v3134 = vunpack.c.h.b16 %v2643
    %v3135 = vunpack.c.l.b16 %v2644
    %v3136 = vunpack.c.l.b16 %v2645
    %v3137 = vunpack.c.h.b16 %v2645
    %v3138 = vunpack.c.l.b16 %v2646
    %v3139 = vunpack.c.h.b16 %v2646
    %v3140 = vunpack.c.l.b16 %v2647
    %v3141 = vunpack.c.h.b16 %v2647
    %v3142 = vunpack.c.l.b16 %v2648
    %v3143 = vunpack.c.l.b16 %v2649
    %v3144 = vunpack.c.h.b16 %v2649
    %v3145 = vunpack.c.l.b16 %v2650
    %v3146 = vunpack.c.h.b16 %v2650
    %v3147 = vunpack.c.l.b16 %v2651
    %v3148 = vunpack.c.h.b16 %v2651
    %v3149 = vunpack.c.l.b16 %v2652
    %v3150 = vunpack.c.l.b16 %v2653
    %v3151 = vunpack.c.h.b16 %v2653
    %v3152 = vunpack.c.l.b16 %v2654
    %v3153 = vunpack.c.h.b16 %v2654
    %v3154 = vunpack.c.l.b16 %v2655
    %v3155 = vunpack.c.h.b16 %v2655
    %v3156 = vunpack.c.l.b16 %v2656
    %v3157 = vunpack.c.l.b16 %v2657
    %v3158 = vunpack.c.h.b16 %v2657
    %v3159 = vunpack.c.l.b16 %v2658
    %v3160 = vunpack.c.h.b16 %v2658
    %v3161 = vunpack.c.l.b16 %v2659
    %v3162 = vunpack.c.h.b16 %v2659
    %v3163 = vunpack.c.l.b16 %v2660
    %v3164 = vunpack.c.l.b16 %v2661
    %v3165 = vunpack.c.h.b16 %v2661
    %v3166 = vunpack.c.l.b16 %v2662
    %v3167 = vunpack.c.h.b16 %v2662
    %v3168 = vunpack.c.l.b16 %v2663
    %v3169 = vunpack.c.h.b16 %v2663
    %v3170 = vunpack.c.l.b16 %v2664
    %v3171 = vunpack.c.l.b16 %v2665
    %v3172 = vunpack.c.h.b16 %v2665
    %v3173 = vunpack.c.l.b16 %v2666
    %v3174 = vunpack.c.h.b16 %v2666
    %v3175 = vunpack.c.l.b16 %v2667
    %v3176 = vunpack.c.h.b16 %v2667
    %v3177 = vunpack.c.l.b16 %v2668
    %v3178 = vunpack.c.l.b16 %v2669
    %v3179 = vunpack.c.h.b16 %v2669
    %v3180 = vunpack.c.l.b16 %v2670
    %v3181 = vunpack.c.h.b16 %v2670
    %v3182 = vunpack.c.l.b16 %v2671
    %v3183 = vunpack.c.h.b16 %v2671
    %v3184 = vunpack.c.l.b16 %v2672
    %v3185 = vunpack.c.l.b16 %v2673
    %v3186 = vunpack.c.h.b16 %v2673
    %v3187 = vunpack.c.l.b16 %v2674
    %v3188 = vunpack.c.h.b16 %v2674
    %v3189 = vunpack.c.l.b16 %v2675
    %v3190 = vunpack.c.h.b16 %v2675
    %v3191 = vunpack.c.l.b16 %v2676
    %v3192 = vunpack.c.l.b16 %v2677
    %v3193 = vunpack.c.h.b16 %v2677
    %v3194 = vunpack.c.l.b16 %v2678
    %v3195 = vunpack.c.h.b16 %v2678
    %v3196 = vunpack.c.l.b16 %v2679
    %v3197 = vunpack.c.h.b16 %v2679
    %v3198 = vunpack.c.l.b16 %v2680
    %v3199 = vunpack.c.l.b16 %v2681
    %v3200 = vunpack.c.h.b16 %v2681
    %v3201 = vunpack.c.l.b16 %v2682
    %v3202 = vunpack.c.h.b16 %v2682
    %v3203 = vunpack.c.l.b16 %v2683
    %v3204 = vunpack.c.h.b16 %v2683
    %v3205 = vunpack.c.l.b16 %v2684
    %v3206 = vunpack.c.l.b16 %v2685
    %v3207 = vunpack.c.h.b16 %v2685
    %v3208 = vunpack.c.l.b16 %v2686
    %v3209 = vunpack.c.h.b16 %v2686
    %v3210 = vunpack.c.l.b16 %v2687
    %v3211 = vunpack.c.h.b16 %v2687
    %v3212 = vunpack.c.l.b16 %v2688
    %v3213 = vunpack.c.l.b16 %v2689
    %v3214 = vunpack.c.h.b16 %v2689
    %v3215 = vunpack.c.l.b16 %v2690
    %v3216 = vunpack.c.h.b16 %v2690
    %v3217 = vunpack.c.l.b16 %v2691
    %v3218 = vunpack.c.h.b16 %v2691
    %v3219 = vunpack.c.l.b16 %v2692
    %v3220 = vunpack.c.l.b16 %v2693
    %v3221 = vunpack.c.h.b16 %v2693
    %v3222 = vunpack.c.l.b16 %v2694
    %v3223 = vunpack.c.h.b16 %v2694
    %v3224 = vunpack.c.l.b16 %v2695
    %v3225 = vunpack.c.h.b16 %v2695
    %v3226 = vunpack.c.l.b16 %v2696
    %v3227 = vunpack.c.l.b16 %v2697
    %v3228 = vunpack.c.h.b16 %v2697
    %v3229 = vunpack.c.l.b16 %v2698
    %v3230 = vunpack.c.h.b16 %v2698
    %v3231 = vunpack.c.l.b16 %v2699
    %v3232 = vunpack.c.h.b16 %v2699
    %v3233 = vunpack.c.l.b16 %v2700
    %v3234 = vunpack.c.l.b16 %v2701
    %v3235 = vunpack.c.h.b16 %v2701
    %v3236 = vunpack.c.l.b16 %v2702
    %v3237 = vunpack.c.h.b16 %v2702
    %v3238 = vunpack.c.l.b16 %v2703
    %v3239 = vunpack.c.h.b16 %v2703
    %v3240 = vunpack.c.l.b16 %v2704
    %v3241 = vunpack.c.l.b16 %v2705
    %v3242 = vunpack.c.h.b16 %v2705
    %v3243 = vunpack.c.l.b16 %v2706
    %v3244 = vunpack.c.h.b16 %v2706
    %v3245 = vunpack.c.l.b16 %v2707
    %v3246 = vunpack.c.h.b16 %v2707
    %v3247 = vunpack.c.l.b16 %v2708
    %v3248 = vunpack.c.l.b16 %v2709
    %v3249 = vunpack.c.h.b16 %v2709
    %v3250 = vunpack.c.l.b16 %v2710
    %v3251 = vunpack.c.h.b16 %v2710
    %v3252 = vunpack.c.l.b16 %v2711
    %v3253 = vunpack.c.h.b16 %v2711
    %v3254 = vunpack.c.l.b16 %v2712
    %v3255 = vunpack.c.l.b16 %v2713
    %v3256 = vunpack.c.h.b16 %v2713
    %v3257 = vunpack.c.l.b16 %v2714
    %v3258 = vunpack.c.h.b16 %v2714
    %v3259 = vunpack.c.l.b16 %v2715
    %v3260 = vunpack.c.h.b16 %v2715
    %v3261 = vunpack.c.l.b16 %v2716
    %v3262 = vunpack.c.l.b16 %v2717
    %v3263 = vunpack.c.h.b16 %v2717
    %v3264 = vunpack.c.l.b16 %v2718
    %v3265 = vunpack.c.h.b16 %v2718
    %v3266 = vunpack.c.l.b16 %v2719
    %v3267 = vunpack.c.h.b16 %v2719
    %v3268 = vunpack.c.l.b16 %v2720
    %v3269 = vunpack.c.l.b16 %v2721
    %v3270 = vunpack.c.h.b16 %v2721
    %v3271 = vunpack.c.l.b16 %v2722
    %v3272 = vunpack.c.h.b16 %v2722
    %v3273 = vunpack.c.l.b16 %v2723
    %v3274 = vunpack.c.h.b16 %v2723
    %v3275 = vunpack.c.l.b16 %v2724
    %v3276 = vunpack.c.l.b16 %v2725
    %v3277 = vunpack.c.h.b16 %v2725
    %v3278 = vunpack.c.l.b16 %v2726
    %v3279 = vunpack.c.h.b16 %v2726
    %v3280 = vunpack.c.l.b16 %v2727
    %v3281 = vunpack.c.h.b16 %v2727
    %v3282 = vunpack.c.l.b16 %v2728
    %v3283 = vunpack.c.l.b16 %v2729
    %v3284 = vunpack.c.h.b16 %v2729
    %v3285 = vunpack.c.l.b16 %v2730
    %v3286 = vunpack.c.h.b16 %v2730
    %v3287 = vunpack.c.l.b16 %v2731
    %v3288 = vunpack.c.h.b16 %v2731
    %v3289 = vunpack.c.l.b16 %v2732
    %v3290 = vunpack.c.l.b16 %v2733
    %v3291 = vunpack.c.h.b16 %v2733
    %v3292 = vunpack.c.l.b16 %v2734
    %v3293 = vunpack.c.h.b16 %v2734
    %v3294 = vunpack.c.l.b16 %v2735
    %v3295 = vunpack.c.h.b16 %v2735
    %v3296 = vunpack.c.l.b16 %v2736
    %v3297 = vunpack.c.l.b16 %v2737
    %v3298 = vunpack.c.h.b16 %v2737
    %v3299 = vunpack.c.l.b16 %v2738
    %v3300 = vunpack.c.h.b16 %v2738
    %v3301 = vunpack.c.l.b16 %v2739
    %v3302 = vunpack.c.h.b16 %v2739
    %v3303 = vunpack.c.l.b16 %v2740
    %v3304 = vunpack.c.l.b16 %v2741
    %v3305 = vunpack.c.h.b16 %v2741
    %v3306 = vunpack.c.l.b16 %v2742
    %v3307 = vunpack.c.h.b16 %v2742
    %v3308 = vunpack.c.l.b16 %v2743
    %v3309 = vunpack.c.h.b16 %v2743
    %v3310 = vunpack.c.l.b16 %v2744
    %v3311 = vunpack.c.l.b16 %v2745
    %v3312 = vunpack.c.h.b16 %v2745
    %v3313 = vunpack.c.l.b16 %v2746
    %v3314 = vunpack.c.h.b16 %v2746
    %v3315 = vunpack.c.l.b16 %v2747
    %v3316 = vunpack.c.h.b16 %v2747
    %v3317 = vunpack.c.l.b16 %v2748
    %v3318 = vunpack.c.l.b16 %v2749
    %v3319 = vunpack.c.h.b16 %v2749
    %v3320 = vunpack.c.l.b16 %v2750
    %v3321 = vunpack.c.h.b16 %v2750
    %v3322 = vunpack.c.l.b16 %v2751
    %v3323 = vunpack.c.h.b16 %v2751
    %v3324 = vunpack.c.l.b16 %v2752
    %v3325 = vunpack.c.l.b16 %v2753
    %v3326 = vunpack.c.h.b16 %v2753
    %v3327 = vunpack.c.l.b16 %v2754
    %v3328 = vunpack.c.h.b16 %v2754
    %v3329 = vunpack.c.l.b16 %v2755
    %v3330 = vunpack.c.h.b16 %v2755
    %v3331 = vunpack.c.l.b16 %v2756
    %v3332 = vunpack.c.l.b16 %v2757
    %v3333 = vunpack.c.h.b16 %v2757
    %v3334 = vunpack.c.l.b16 %v2758
    %v3335 = vunpack.c.h.b16 %v2758
    %v3336 = vunpack.c.l.b16 %v2759
    %v3337 = vunpack.c.h.b16 %v2759
    %v3338 = vunpack.c.l.b16 %v2760
    %v3339 = vunpack.c.l.b16 %v2761
    %v3340 = vunpack.c.h.b16 %v2761
    %v3341 = vunpack.c.l.b16 %v2762
    %v3342 = vunpack.c.h.b16 %v2762
    %v3343 = vunpack.c.l.b16 %v2763
    %v3344 = vunpack.c.h.b16 %v2763
    %v3345 = vunpack.c.l.b16 %v2764
    %v3346 = vunpack.c.l.b16 %v2765
    %v3347 = vunpack.c.h.b16 %v2765
    %v3348 = vunpack.c.l.b16 %v2766
    %v3349 = vunpack.c.h.b16 %v2766
    %v3350 = vunpack.c.l.b16 %v2767
    %v3351 = vunpack.c.h.b16 %v2767
    %v3352 = vunpack.c.l.b16 %v2768
    %v3353 = vunpack.c.l.b16 %v2769
    %v3354 = vunpack.c.h.b16 %v2769
    %v3355 = vunpack.c.l.b16 %v2770
    %v3356 = vunpack.c.h.b16 %v2770
    %v3357 = vunpack.c.l.b16 %v2771
    %v3358 = vunpack.c.h.b16 %v2771
    %v3359 = vunpack.c.l.b16 %v2772
    %v3360 = vpack.c.b16 %v3017, %v3010
    %v3361 = vpack.c.b16 %v3018, %v3011
    %v3362 = vpack.c.b16 %v3019, %v3012
    %v3363 = vpack.c.b16 %v3020, %v3013
    %v3364 = vpack.c.b16 %v3021, %v3014
    %v3365 = vpack.c.b16 %v3022, %v3015
    %v3366 = vpack.c.b16 %v3023, %v3016
    %v3367 = vpack.c.b16 %v3031, %v3024
    %v3368 = vpack.c.b16 %v3032, %v3025
    %v3369 = vpack.c.b16 %v3033, %v3026
    %v3370 = vpack.c.b16 %v3034, %v3027
    %v3371 = vpack.c.b16 %v3035, %v3028
    %v3372 = vpack.c.b16 %v3036, %v3029
    %v3373 = vpack.c.b16 %v3037, %v3030
    %v3374 = vpack.c.b16 %v3045, %v3038
    %v3375 = vpack.c.b16 %v3046, %v3039
    %v3376 = vpack.c.b16 %v3047, %v3040
    %v3377 = vpack.c.b16 %v3048, %v3041
    %v3378 = vpack.c.b16 %v3049, %v3042
    %v3379 = vpack.c.b16 %v3050, %v3043
    %v3380 = vpack.c.b16 %v3051, %v3044
    %v3381 = vpack.c.b16 %v3059, %v3052
    %v3382 = vpack.c.b16 %v3060, %v3053
    %v3383 = vpack.c.b16 %v3061, %v3054
    %v3384 = vpack.c.b16 %v3062, %v3055
    %v3385 = vpack.c.b16 %v3063, %v3056
    %v3386 = vpack.c.b16 %v3064, %v3057
    %v3387 = vpack.c.b16 %v3065, %v3058
    %v3388 = vpack.c.b16 %v3073, %v3066
    %v3389 = vpack.c.b16 %v3074, %v3067
    %v3390 = vpack.c.b16 %v3075, %v3068
    %v3391 = vpack.c.b16 %v3076, %v3069
    %v3392 = vpack.c.b16 %v3077, %v3070
    %v3393 = vpack.c.b16 %v3078, %v3071
    %v3394 = vpack.c.b16 %v3079, %v3072
    %v3395 = vpack.c.b16 %v3087, %v3080
    %v3396 = vpack.c.b16 %v3088, %v3081
    %v3397 = vpack.c.b16 %v3089, %v3082
    %v3398 = vpack.c.b16 %v3090, %v3083
    %v3399 = vpack.c.b16 %v3091, %v3084
    %v3400 = vpack.c.b16 %v3092, %v3085
    %v3401 = vpack.c.b16 %v3093, %v3086
    %v3402 = vpack.c.b16 %v3101, %v3094
    %v3403 = vpack.c.b16 %v3102, %v3095
    %v3404 = vpack.c.b16 %v3103, %v3096
    %v3405 = vpack.c.b16 %v3104, %v3097
    %v3406 = vpack.c.b16 %v3105, %v3098
    %v3407 = vpack.c.b16 %v3106, %v3099
    %v3408 = vpack.c.b16 %v3107, %v3100
    %v3409 = vpack.c.b16 %v3115, %v3108
    %v3410 = vpack.c.b16 %v3116, %v3109
    %v3411 = vpack.c.b16 %v3117, %v3110
    %v3412 = vpack.c.b16 %v3118, %v3111
    %v3413 = vpack.c.b16 %v3119, %v3112
    %v3414 = vpack.c.b16 %v3120, %v3113
    %v3415 = vpack.c.b16 %v3121, %v3114
    %v3416 = vpack.c.b16 %v3129, %v3122
    %v3417 = vpack.c.b16 %v3130, %v3123
    %v3418 = vpack.c.b16 %v3131, %v3124
    %v3419 = vpack.c.b16 %v3132, %v3125
    %v3420 = vpack.c.b16 %v3133, %v3126
    %v3421 = vpack.c.b16 %v3134, %v3127
    %v3422 = vpack.c.b16 %v3135, %v3128
    %v3423 = vpack.c.b16 %v3143, %v3136
    %v3424 = vpack.c.b16 %v3144, %v3137
    %v3425 = vpack.c.b16 %v3145, %v3138
    %v3426 = vpack.c.b16 %v3146, %v3139
    %v3427 = vpack.c.b16 %v3147, %v3140
    %v3428 = vpack.c.b16 %v3148, %v3141
    %v3429 = vpack.c.b16 %v3149, %v3142
    %v3430 = vpack.c.b16 %v3157, %v3150
    %v3431 = vpack.c.b16 %v3158, %v3151
    %v3432 = vpack.c.b16 %v3159, %v3152
    %v3433 = vpack.c.b16 %v3160, %v3153
    %v3434 = vpack.c.b16 %v3161, %v3154
    %v3435 = vpack.c.b16 %v3162, %v3155
    %v3436 = vpack.c.b16 %v3163, %v3156
    %v3437 = vpack.c.b16 %v3171, %v3164
    %v3438 = vpack.c.b16 %v3172, %v3165
    %v3439 = vpack.c.b16 %v3173, %v3166
    %v3440 = vpack.c.b16 %v3174, %v3167
    %v3441 = vpack.c.b16 %v3175, %v3168
    %v3442 = vpack.c.b16 %v3176, %v3169
    %v3443 = vpack.c.b16 %v3177, %v3170
    %v3444 = vpack.c.b16 %v3185, %v3178
    %v3445 = vpack.c.b16 %v3186, %v3179
    %v3446 = vpack.c.b16 %v3187, %v3180
    %v3447 = vpack.c.b16 %v3188, %v3181
    %v3448 = vpack.c.b16 %v3189, %v3182
    %v3449 = vpack.c.b16 %v3190, %v3183
    %v3450 = vpack.c.b16 %v3191, %v3184
    %v3451 = vpack.c.b16 %v3199, %v3192
    %v3452 = vpack.c.b16 %v3200, %v3193
    %v3453 = vpack.c.b16 %v3201, %v3194
    %v3454 = vpack.c.b16 %v3202, %v3195
    %v3455 = vpack.c.b16 %v3203, %v3196
    %v3456 = vpack.c.b16 %v3204, %v3197
    %v3457 = vpack.c.b16 %v3205, %v3198
    %v3458 = vpack.c.b16 %v3213, %v3206
    %v3459 = vpack.c.b16 %v3214, %v3207
    %v3460 = vpack.c.b16 %v3215, %v3208
    %v3461 = vpack.c.b16 %v3216, %v3209
    %v3462 = vpack.c.b16 %v3217, %v3210
    %v3463 = vpack.c.b16 %v3218, %v3211
    %v3464 = vpack.c.b16 %v3219, %v3212
    %v3465 = vpack.c.b16 %v3227, %v3220
    %v3466 = vpack.c.b16 %v3228, %v3221
    %v3467 = vpack.c.b16 %v3229, %v3222
    %v3468 = vpack.c.b16 %v3230, %v3223
    %v3469 = vpack.c.b16 %v3231, %v3224
    %v3470 = vpack.c.b16 %v3232, %v3225
    %v3471 = vpack.c.b16 %v3233, %v3226
    %v3472 = vpack.c.b16 %v3241, %v3234
    %v3473 = vpack.c.b16 %v3242, %v3235
    %v3474 = vpack.c.b16 %v3243, %v3236
    %v3475 = vpack.c.b16 %v3244, %v3237
    %v3476 = vpack.c.b16 %v3245, %v3238
    %v3477 = vpack.c.b16 %v3246, %v3239
    %v3478 = vpack.c.b16 %v3247, %v3240
    %v3479 = vpack.c.b16 %v3255, %v3248
    %v3480 = vpack.c.b16 %v3256, %v3249
    %v3481 = vpack.c.b16 %v3257, %v3250
    %v3482 = vpack.c.b16 %v3258, %v3251
    %v3483 = vpack.c.b16 %v3259, %v3252
    %v3484 = vpack.c.b16 %v3260, %v3253
    %v3485 = vpack.c.b16 %v3261, %v3254
    %v3486 = vpack.c.b16 %v3269, %v3262
    %v3487 = vpack.c.b16 %v3270, %v3263
    %v3488 = vpack.c.b16 %v3271, %v3264
    %v3489 = vpack.c.b16 %v3272, %v3265
    %v3490 = vpack.c.b16 %v3273, %v3266
    %v3491 = vpack.c.b16 %v3274, %v3267
    %v3492 = vpack.c.b16 %v3275, %v3268
    %v3493 = vpack.c.b16 %v3283, %v3276
    %v3494 = vpack.c.b16 %v3284, %v3277
    %v3495 = vpack.c.b16 %v3285, %v3278
    %v3496 = vpack.c.b16 %v3286, %v3279
    %v3497 = vpack.c.b16 %v3287, %v3280
    %v3498 = vpack.c.b16 %v3288, %v3281
    %v3499 = vpack.c.b16 %v3289, %v3282
    %v3500 = vpack.c.b16 %v3297, %v3290
    %v3501 = vpack.c.b16 %v3298, %v3291
    %v3502 = vpack.c.b16 %v3299, %v3292
    %v3503 = vpack.c.b16 %v3300, %v3293
    %v3504 = vpack.c.b16 %v3301, %v3294
    %v3505 = vpack.c.b16 %v3302, %v3295
    %v3506 = vpack.c.b16 %v3303, %v3296
    %v3507 = vpack.c.b16 %v3311, %v3304
    %v3508 = vpack.c.b16 %v3312, %v3305
    %v3509 = vpack.c.b16 %v3313, %v3306
    %v3510 = vpack.c.b16 %v3314, %v3307
    %v3511 = vpack.c.b16 %v3315, %v3308
    %v3512 = vpack.c.b16 %v3316, %v3309
    %v3513 = vpack.c.b16 %v3317, %v3310
    %v3514 = vpack.c.b16 %v3325, %v3318
    %v3515 = vpack.c.b16 %v3326, %v3319
    %v3516 = vpack.c.b16 %v3327, %v3320
    %v3517 = vpack.c.b16 %v3328, %v3321
    %v3518 = vpack.c.b16 %v3329, %v3322
    %v3519 = vpack.c.b16 %v3330, %v3323
    %v3520 = vpack.c.b16 %v3331, %v3324
    %v3521 = vpack.c.b16 %v3339, %v3332
    %v3522 = vpack.c.b16 %v3340, %v3333
    %v3523 = vpack.c.b16 %v3341, %v3334
    %v3524 = vpack.c.b16 %v3342, %v3335
    %v3525 = vpack.c.b16 %v3343, %v3336
    %v3526 = vpack.c.b16 %v3344, %v3337
    %v3527 = vpack.c.b16 %v3345, %v3338
    %v3528 = vpack.c.b16 %v3353, %v3346
    %v3529 = vpack.c.b16 %v3354, %v3347
    %v3530 = vpack.c.b16 %v3355, %v3348
    %v3531 = vpack.c.b16 %v3356, %v3349
    %v3532 = vpack.c.b16 %v3357, %v3350
    %v3533 = vpack.c.b16 %v3358, %v3351
    %v3534 = vpack.c.b16 %v3359, %v3352
    %v3711 = vsel %vm1330, %v2568, 0
    %v3714 = vsel %vm1330, %v2572, 0
    %3716 = vmatprep.subr.bf16.mxu0 %v3361
    %3717 = vmatpush1.bf16.msra.mxu0 %v3360
    %3718 = vmatprep.subr.bf16.mxu0 %v3368
    %3719 = vmatpush1.bf16.msra.mxu0 %v3367
    %3720 = vmatprep.subr.bf16.mxu0 %v3375
    %3721 = vmatpush1.bf16.msra.mxu0 %v3374
    %3722 = vmatprep.subr.bf16.mxu0 %v3382
    %3723 = vmatpush1.bf16.msra.mxu0 %v3381
    %3724 = vmatprep.subr.bf16.mxu0 %v3389
    %3725 = vmatpush1.bf16.msra.mxu0 %v3388
    %3726 = vmatprep.subr.bf16.mxu0 %v3396
    %3727 = vmatpush1.bf16.msra.mxu0 %v3395
    %3728 = vmatprep.subr.bf16.mxu0 %v3403
    %3729 = vmatpush1.bf16.msra.mxu0 %v3402
    %3730 = vmatprep.subr.bf16.mxu0 %v3410
    %3731 = vmatpush1.bf16.msra.mxu0 %v3409
    %3732 = vmatprep.subr.bf16.mxu0 %v3417
    %3733 = vmatpush1.bf16.msra.mxu0 %v3416
    %3734 = vmatprep.subr.bf16.mxu0 %v3424
    %3735 = vmatpush1.bf16.msra.mxu0 %v3423
    %3736 = vmatprep.subr.bf16.mxu0 %v3431
    %3737 = vmatpush1.bf16.msra.mxu0 %v3430
    %3738 = vmatprep.subr.bf16.mxu0 %v3438
    %3739 = vmatpush1.bf16.msra.mxu0 %v3437
    %3740 = vmatprep.subr.bf16.mxu0 %v3445
    %3741 = vmatpush1.bf16.msra.mxu0 %v3444
    %3742 = vmatprep.subr.bf16.mxu0 %v3452
    %3743 = vmatpush1.bf16.msra.mxu0 %v3451
    %3744 = vmatprep.subr.bf16.mxu0 %v3459
    %3745 = vmatpush1.bf16.msra.mxu0 %v3458
    %3746 = vmatprep.subr.bf16.mxu0 %v3466
    %3747 = vmatpush1.bf16.msra.mxu0 %v3465
    %3748 = vmatprep.mubr.bf16.mxu0 %v2566
    %3749 = vmatmul.mubr.bf16.gmra.mrb[0].mxu0 %v2565
    %v3750 = vpop.f32.mrb[0].mxu0
    %v3751 = vadd.f32 %v2778, %v3750
    %v3752 = vpop.f32.mrb[0].mxu0
    %v3753 = vadd.f32 %v2782, %v3752
    %v3754 = vpop.f32.mrb[0].mxu0
    %v3755 = vadd.f32 %v2778, %v3754
    %v3756 = vpop.f32.mrb[0].mxu0
    %v3757 = vadd.f32 %v2782, %v3756
    %3758 = vmatprep.mubr.bf16.mxu0 %v2570
    %3759 = vmatmul.mubr.bf16.gmra.mrb[0].mxu0 %v2569
    %v3760 = vpop.f32.mrb[0].mxu0
    %v3761 = vadd.f32 %v2778, %v3760
    %v3762 = vpop.f32.mrb[0].mxu0
    %v3763 = vadd.f32 %v2782, %v3762
    %v3764 = vpop.f32.mrb[0].mxu0
    %v3765 = vadd.f32 %v2778, %v3764
    %v3766 = vpop.f32.mrb[0].mxu0
    %v3767 = vadd.f32 %v2782, %v3766
    %3768 = vdwg.mxu0
    %3769 = vmatprep.subr.bf16.mxu0 %v3473
    %3770 = vmatpush1.bf16.msra.mxu0 %v3472
    %3771 = vmatprep.subr.bf16.mxu0 %v3480
    %3772 = vmatpush1.bf16.msra.mxu0 %v3479
    %3773 = vmatprep.subr.bf16.mxu0 %v3487
    %3774 = vmatpush1.bf16.msra.mxu0 %v3486
    %3775 = vmatprep.subr.bf16.mxu0 %v3494
    %3776 = vmatpush1.bf16.msra.mxu0 %v3493
    %3777 = vmatprep.subr.bf16.mxu0 %v3501
    %3778 = vmatpush1.bf16.msra.mxu0 %v3500
    %3779 = vmatprep.subr.bf16.mxu0 %v3508
    %3780 = vmatpush1.bf16.msra.mxu0 %v3507
    %3781 = vmatprep.subr.bf16.mxu0 %v3515
    %3782 = vmatpush1.bf16.msra.mxu0 %v3514
    %3783 = vmatprep.subr.bf16.mxu0 %v3522
    %3784 = vmatpush1.bf16.msra.mxu0 %v3521
    %3785 = vmatprep.subr.bf16.mxu0 %v3529
    %3786 = vmatpush1.bf16.msra.mxu0 %v3528
    %3787 = vmatprep.subr.bf16.mxu0 0
    %3788 = vmatpush1.bf16.msra.mxu0 0
    %3789 = vmatprep.subr.bf16.mxu0 0
    %3790 = vmatpush1.bf16.msra.mxu0 0
    %3791 = vmatprep.subr.bf16.mxu0 0
    %3792 = vmatpush1.bf16.msra.mxu0 0
    %3793 = vmatprep.subr.bf16.mxu0 0
    %3794 = vmatpush1.bf16.msra.mxu0 0
    %3795 = vmatprep.subr.bf16.mxu0 0
    %3796 = vmatpush1.bf16.msra.mxu0 0
    %3797 = vmatprep.subr.bf16.mxu0 0
    %3798 = vmatpush1.bf16.msra.mxu0 0
    %3799 = vmatprep.subr.bf16.mxu0 0
    %3800 = vmatpush1.bf16.msra.mxu0 0
    %3801 = vmatprep.mubr.bf16.mxu0 %v3711
    %3802 = vmatmul.mubr.bf16.gmra.mrb[0].mxu0 %v2567
    %v3803 = vpop.f32.mrb[0].mxu0
    %v3804 = vadd.f32 %v3751, %v3803
    %v3805 = vpop.f32.mrb[0].mxu0
    %v3806 = vadd.f32 %v3753, %v3805
    %v3807 = vpop.f32.mrb[0].mxu0
    %v3808 = vadd.f32 %v3755, %v3807
    %v3809 = vpop.f32.mrb[0].mxu0
    %v3810 = vadd.f32 %v3757, %v3809
    %3811 = vmatprep.mubr.bf16.mxu0 %v3714
    %3812 = vmatmul.mubr.bf16.gmra.mrb[0].mxu0 %v2571
    %v3813 = vpop.f32.mrb[0].mxu0
    %v3814 = vadd.f32 %v3761, %v3813
    %v3815 = vpop.f32.mrb[0].mxu0
    %v3816 = vadd.f32 %v3763, %v3815
    %v3817 = vpop.f32.mrb[0].mxu0
    %v3818 = vadd.f32 %v3765, %v3817
    %v3819 = vpop.f32.mrb[0].mxu0
    %v3820 = vadd.f32 %v3767, %v3819
    %3821 = vdwg.mxu0
    %3822 = vmatprep.subr.bf16.mxu0 %v3363
    %3823 = vmatpush1.bf16.msra.mxu0 %v3362
    %3824 = vmatprep.subr.bf16.mxu0 %v3370
    %3825 = vmatpush1.bf16.msra.mxu0 %v3369
    %3826 = vmatprep.subr.bf16.mxu0 %v3377
    %3827 = vmatpush1.bf16.msra.mxu0 %v3376
    %3828 = vmatprep.subr.bf16.mxu0 %v3384
    %3829 = vmatpush1.bf16.msra.mxu0 %v3383
    %3830 = vmatprep.subr.bf16.mxu0 %v3391
    %3831 = vmatpush1.bf16.msra.mxu0 %v3390
    %3832 = vmatprep.subr.bf16.mxu0 %v3398
    %3833 = vmatpush1.bf16.msra.mxu0 %v3397
    %3834 = vmatprep.subr.bf16.mxu0 %v3405
    %3835 = vmatpush1.bf16.msra.mxu0 %v3404
    %3836 = vmatprep.subr.bf16.mxu0 %v3412
    %3837 = vmatpush1.bf16.msra.mxu0 %v3411
    %3838 = vmatprep.subr.bf16.mxu0 %v3419
    %3839 = vmatpush1.bf16.msra.mxu0 %v3418
    %3840 = vmatprep.subr.bf16.mxu0 %v3426
    %3841 = vmatpush1.bf16.msra.mxu0 %v3425
    %3842 = vmatprep.subr.bf16.mxu0 %v3433
    %3843 = vmatpush1.bf16.msra.mxu0 %v3432
    %3844 = vmatprep.subr.bf16.mxu0 %v3440
    %3845 = vmatpush1.bf16.msra.mxu0 %v3439
    %3846 = vmatprep.subr.bf16.mxu0 %v3447
    %3847 = vmatpush1.bf16.msra.mxu0 %v3446
    %3848 = vmatprep.subr.bf16.mxu0 %v3454
    %3849 = vmatpush1.bf16.msra.mxu0 %v3453
    %3850 = vmatprep.subr.bf16.mxu0 %v3461
    %3851 = vmatpush1.bf16.msra.mxu0 %v3460
    %3852 = vmatprep.subr.bf16.mxu0 %v3468
    %3853 = vmatpush1.bf16.msra.mxu0 %v3467
    %3854 = vmatprep.mubr.bf16.mxu0 %v2566
    %3855 = vmatmul.mubr.bf16.gmra.mrb[0].mxu0 %v2565
    %v3856 = vpop.f32.mrb[0].mxu0
    %v3857 = vadd.f32 %v2786, %v3856
    %v3858 = vpop.f32.mrb[0].mxu0
    %v3859 = vadd.f32 %v2790, %v3858
    %v3860 = vpop.f32.mrb[0].mxu0
    %v3861 = vadd.f32 %v2786, %v3860
    %v3862 = vpop.f32.mrb[0].mxu0
    %v3863 = vadd.f32 %v2790, %v3862
    %3864 = vmatprep.mubr.bf16.mxu0 %v2570
    %3865 = vmatmul.mubr.bf16.gmra.mrb[0].mxu0 %v2569
    %v3866 = vpop.f32.mrb[0].mxu0
    %v3867 = vadd.f32 %v2786, %v3866
    %v3868 = vpop.f32.mrb[0].mxu0
    %v3869 = vadd.f32 %v2790, %v3868
    %v3870 = vpop.f32.mrb[0].mxu0
    %v3871 = vadd.f32 %v2786, %v3870
    %v3872 = vpop.f32.mrb[0].mxu0
    %v3873 = vadd.f32 %v2790, %v3872
    %3874 = vdwg.mxu0
    %3875 = vmatprep.subr.bf16.mxu0 %v3475
    %3876 = vmatpush1.bf16.msra.mxu0 %v3474
    %3877 = vmatprep.subr.bf16.mxu0 %v3482
    %3878 = vmatpush1.bf16.msra.mxu0 %v3481
    %3879 = vmatprep.subr.bf16.mxu0 %v3489
    %3880 = vmatpush1.bf16.msra.mxu0 %v3488
    %3881 = vmatprep.subr.bf16.mxu0 %v3496
    %3882 = vmatpush1.bf16.msra.mxu0 %v3495
    %3883 = vmatprep.subr.bf16.mxu0 %v3503
    %3884 = vmatpush1.bf16.msra.mxu0 %v3502
    %3885 = vmatprep.subr.bf16.mxu0 %v3510
    %3886 = vmatpush1.bf16.msra.mxu0 %v3509
    %3887 = vmatprep.subr.bf16.mxu0 %v3517
    %3888 = vmatpush1.bf16.msra.mxu0 %v3516
    %3889 = vmatprep.subr.bf16.mxu0 %v3524
    %3890 = vmatpush1.bf16.msra.mxu0 %v3523
    %3891 = vmatprep.subr.bf16.mxu0 %v3531
    %3892 = vmatpush1.bf16.msra.mxu0 %v3530
    %3893 = vmatprep.subr.bf16.mxu0 0
    %3894 = vmatpush1.bf16.msra.mxu0 0
    %3895 = vmatprep.subr.bf16.mxu0 0
    %3896 = vmatpush1.bf16.msra.mxu0 0
    %3897 = vmatprep.subr.bf16.mxu0 0
    %3898 = vmatpush1.bf16.msra.mxu0 0
    %3899 = vmatprep.subr.bf16.mxu0 0
    %3900 = vmatpush1.bf16.msra.mxu0 0
    %3901 = vmatprep.subr.bf16.mxu0 0
    %3902 = vmatpush1.bf16.msra.mxu0 0
    %3903 = vmatprep.subr.bf16.mxu0 0
    %3904 = vmatpush1.bf16.msra.mxu0 0
    %3905 = vmatprep.subr.bf16.mxu0 0
    %3906 = vmatpush1.bf16.msra.mxu0 0
    %3907 = vmatprep.mubr.bf16.mxu0 %v3711
    %3908 = vmatmul.mubr.bf16.gmra.mrb[0].mxu0 %v2567
    %v3909 = vpop.f32.mrb[0].mxu0
    %v3910 = vadd.f32 %v3857, %v3909
    %v3911 = vpop.f32.mrb[0].mxu0
    %v3912 = vadd.f32 %v3859, %v3911
    %v3913 = vpop.f32.mrb[0].mxu0
    %v3914 = vadd.f32 %v3861, %v3913
    %v3915 = vpop.f32.mrb[0].mxu0
    %v3916 = vadd.f32 %v3863, %v3915
    %3917 = vmatprep.mubr.bf16.mxu0 %v3714
    %3918 = vmatmul.mubr.bf16.gmra.mrb[0].mxu0 %v2571
    %v3919 = vpop.f32.mrb[0].mxu0
    %v3920 = vadd.f32 %v3867, %v3919
    %v3921 = vpop.f32.mrb[0].mxu0
    %v3922 = vadd.f32 %v3869, %v3921
    %v3923 = vpop.f32.mrb[0].mxu0
    %v3924 = vadd.f32 %v3871, %v3923
    %v3925 = vpop.f32.mrb[0].mxu0
    %v3926 = vadd.f32 %v3873, %v3925
    %3927 = vdwg.mxu0
    %3928 = vmatprep.subr.bf16.mxu0 %v3365
    %3929 = vmatpush1.bf16.msra.mxu0 %v3364
    %3930 = vmatprep.subr.bf16.mxu0 %v3372
    %3931 = vmatpush1.bf16.msra.mxu0 %v3371
    %3932 = vmatprep.subr.bf16.mxu0 %v3379
    %3933 = vmatpush1.bf16.msra.mxu0 %v3378
    %3934 = vmatprep.subr.bf16.mxu0 %v3386
    %3935 = vmatpush1.bf16.msra.mxu0 %v3385
    %3936 = vmatprep.subr.bf16.mxu0 %v3393
    %3937 = vmatpush1.bf16.msra.mxu0 %v3392
    %3938 = vmatprep.subr.bf16.mxu0 %v3400
    %3939 = vmatpush1.bf16.msra.mxu0 %v3399
    %3940 = vmatprep.subr.bf16.mxu0 %v3407
    %3941 = vmatpush1.bf16.msra.mxu0 %v3406
    %3942 = vmatprep.subr.bf16.mxu0 %v3414
    %3943 = vmatpush1.bf16.msra.mxu0 %v3413
    %3944 = vmatprep.subr.bf16.mxu0 %v3421
    %3945 = vmatpush1.bf16.msra.mxu0 %v3420
    %3946 = vmatprep.subr.bf16.mxu0 %v3428
    %3947 = vmatpush1.bf16.msra.mxu0 %v3427
    %3948 = vmatprep.subr.bf16.mxu0 %v3435
    %3949 = vmatpush1.bf16.msra.mxu0 %v3434
    %3950 = vmatprep.subr.bf16.mxu0 %v3442
    %3951 = vmatpush1.bf16.msra.mxu0 %v3441
    %3952 = vmatprep.subr.bf16.mxu0 %v3449
    %3953 = vmatpush1.bf16.msra.mxu0 %v3448
    %3954 = vmatprep.subr.bf16.mxu0 %v3456
    %3955 = vmatpush1.bf16.msra.mxu0 %v3455
    %3956 = vmatprep.subr.bf16.mxu0 %v3463
    %3957 = vmatpush1.bf16.msra.mxu0 %v3462
    %3958 = vmatprep.subr.bf16.mxu0 %v3470
    %3959 = vmatpush1.bf16.msra.mxu0 %v3469
    %3960 = vmatprep.mubr.bf16.mxu0 %v2566
    %3961 = vmatmul.mubr.bf16.gmra.mrb[0].mxu0 %v2565
    %v3962 = vpop.f32.mrb[0].mxu0
    %v3963 = vadd.f32 %v2794, %v3962
    %v3964 = vpop.f32.mrb[0].mxu0
    %v3965 = vadd.f32 %v2798, %v3964
    %v3966 = vpop.f32.mrb[0].mxu0
    %v3967 = vadd.f32 %v2794, %v3966
    %v3968 = vpop.f32.mrb[0].mxu0
    %v3969 = vadd.f32 %v2798, %v3968
    %3970 = vmatprep.mubr.bf16.mxu0 %v2570
    %3971 = vmatmul.mubr.bf16.gmra.mrb[0].mxu0 %v2569
    %v3972 = vpop.f32.mrb[0].mxu0
    %v3973 = vadd.f32 %v2794, %v3972
    %v3974 = vpop.f32.mrb[0].mxu0
    %v3975 = vadd.f32 %v2798, %v3974
    %v3976 = vpop.f32.mrb[0].mxu0
    %v3977 = vadd.f32 %v2794, %v3976
    %v3978 = vpop.f32.mrb[0].mxu0
    %v3979 = vadd.f32 %v2798, %v3978
    %3980 = vdwg.mxu0
    %3981 = vmatprep.subr.bf16.mxu0 %v3477
    %3982 = vmatpush1.bf16.msra.mxu0 %v3476
    %3983 = vmatprep.subr.bf16.mxu0 %v3484
    %3984 = vmatpush1.bf16.msra.mxu0 %v3483
    %3985 = vmatprep.subr.bf16.mxu0 %v3491
    %3986 = vmatpush1.bf16.msra.mxu0 %v3490
    %3987 = vmatprep.subr.bf16.mxu0 %v3498
    %3988 = vmatpush1.bf16.msra.mxu0 %v3497
    %3989 = vmatprep.subr.bf16.mxu0 %v3505
    %3990 = vmatpush1.bf16.msra.mxu0 %v3504
    %3991 = vmatprep.subr.bf16.mxu0 %v3512
    %3992 = vmatpush1.bf16.msra.mxu0 %v3511
    %3993 = vmatprep.subr.bf16.mxu0 %v3519
    %3994 = vmatpush1.bf16.msra.mxu0 %v3518
    %3995 = vmatprep.subr.bf16.mxu0 %v3526
    %3996 = vmatpush1.bf16.msra.mxu0 %v3525
    %3997 = vmatprep.subr.bf16.mxu0 %v3533
    %3998 = vmatpush1.bf16.msra.mxu0 %v3532
    %3999 = vmatprep.subr.bf16.mxu0 0
    %4000 = vmatpush1.bf16.msra.mxu0 0
    %4001 = vmatprep.subr.bf16.mxu0 0
    %4002 = vmatpush1.bf16.msra.mxu0 0
    %4003 = vmatprep.subr.bf16.mxu0 0
    %4004 = vmatpush1.bf16.msra.mxu0 0
    %4005 = vmatprep.subr.bf16.mxu0 0
    %4006 = vmatpush1.bf16.msra.mxu0 0
    %4007 = vmatprep.subr.bf16.mxu0 0
    %4008 = vmatpush1.bf16.msra.mxu0 0
    %4009 = vmatprep.subr.bf16.mxu0 0
    %4010 = vmatpush1.bf16.msra.mxu0 0
    %4011 = vmatprep.subr.bf16.mxu0 0
    %4012 = vmatpush1.bf16.msra.mxu0 0
    %4013 = vmatprep.mubr.bf16.mxu0 %v3711
    %4014 = vmatmul.mubr.bf16.gmra.mrb[0].mxu0 %v2567
    %v4015 = vpop.f32.mrb[0].mxu0
    %v4016 = vadd.f32 %v3963, %v4015
    %v4017 = vpop.f32.mrb[0].mxu0
    %v4018 = vadd.f32 %v3965, %v4017
    %v4019 = vpop.f32.mrb[0].mxu0
    %v4020 = vadd.f32 %v3967, %v4019
    %v4021 = vpop.f32.mrb[0].mxu0
    %v4022 = vadd.f32 %v3969, %v4021
    %4023 = vmatprep.mubr.bf16.mxu0 %v3714
    %4024 = vmatmul.mubr.bf16.gmra.mrb[0].mxu0 %v2571
    %v4025 = vpop.f32.mrb[0].mxu0
    %v4026 = vadd.f32 %v3973, %v4025
    %v4027 = vpop.f32.mrb[0].mxu0
    %v4028 = vadd.f32 %v3975, %v4027
    %v4029 = vpop.f32.mrb[0].mxu0
    %v4030 = vadd.f32 %v3977, %v4029
    %v4031 = vpop.f32.mrb[0].mxu0
    %v4032 = vadd.f32 %v3979, %v4031
    %4033 = vdwg.mxu0
    %4034 = vmatprep.subr.bf16.mxu0 0
    %4035 = vmatpush1.bf16.msra.mxu0 %v3366
    %4036 = vmatprep.subr.bf16.mxu0 0
    %4037 = vmatpush1.bf16.msra.mxu0 %v3373
    %4038 = vmatprep.subr.bf16.mxu0 0
    %4039 = vmatpush1.bf16.msra.mxu0 %v3380
    %4040 = vmatprep.subr.bf16.mxu0 0
    %4041 = vmatpush1.bf16.msra.mxu0 %v3387
    %4042 = vmatprep.subr.bf16.mxu0 0
    %4043 = vmatpush1.bf16.msra.mxu0 %v3394
    %4044 = vmatprep.subr.bf16.mxu0 0
    %4045 = vmatpush1.bf16.msra.mxu0 %v3401
    %4046 = vmatprep.subr.bf16.mxu0 0
    %4047 = vmatpush1.bf16.msra.mxu0 %v3408
    %4048 = vmatprep.subr.bf16.mxu0 0
    %4049 = vmatpush1.bf16.msra.mxu0 %v3415
    %4050 = vmatprep.subr.bf16.mxu0 0
    %4051 = vmatpush1.bf16.msra.mxu0 %v3422
    %4052 = vmatprep.subr.bf16.mxu0 0
    %4053 = vmatpush1.bf16.msra.mxu0 %v3429
    %4054 = vmatprep.subr.bf16.mxu0 0
    %4055 = vmatpush1.bf16.msra.mxu0 %v3436
    %4056 = vmatprep.subr.bf16.mxu0 0
    %4057 = vmatpush1.bf16.msra.mxu0 %v3443
    %4058 = vmatprep.subr.bf16.mxu0 0
    %4059 = vmatpush1.bf16.msra.mxu0 %v3450
    %4060 = vmatprep.subr.bf16.mxu0 0
    %4061 = vmatpush1.bf16.msra.mxu0 %v3457
    %4062 = vmatprep.subr.bf16.mxu0 0
    %4063 = vmatpush1.bf16.msra.mxu0 %v3464
    %4064 = vmatprep.subr.bf16.mxu0 0
    %4065 = vmatpush1.bf16.msra.mxu0 %v3471
    %4066 = vmatprep.mubr.bf16.mxu0 %v2566
    %4067 = vmatmul.mubr.bf16.gmra.mrb[0].mxu0 %v2565
    %v4068 = vpop.f32.mrb[0].mxu0
    %v4069 = vadd.f32 %v2802, %v4068
    %v4070 = vpop.f32.mrb[0].mxu0
    %v4071 = vpop.f32.mrb[0].mxu0
    %v4072 = vadd.f32 %v2802, %v4071
    %v4073 = vpop.f32.mrb[0].mxu0
    %4074 = vmatprep.mubr.bf16.mxu0 %v2570
    %4075 = vmatmul.mubr.bf16.gmra.mrb[0].mxu0 %v2569
    %v4076 = vpop.f32.mrb[0].mxu0
    %v4077 = vadd.f32 %v2802, %v4076
    %v4078 = vpop.f32.mrb[0].mxu0
    %v4079 = vpop.f32.mrb[0].mxu0
    %v4080 = vadd.f32 %v2802, %v4079
    %v4081 = vpop.f32.mrb[0].mxu0
    %4082 = vdwg.mxu0
    %4083 = vmatprep.subr.bf16.mxu0 0
    %4084 = vmatpush1.bf16.msra.mxu0 %v3478
    %4085 = vmatprep.subr.bf16.mxu0 0
    %4086 = vmatpush1.bf16.msra.mxu0 %v3485
    %4087 = vmatprep.subr.bf16.mxu0 0
    %4088 = vmatpush1.bf16.msra.mxu0 %v3492
    %4089 = vmatprep.subr.bf16.mxu0 0
    %4090 = vmatpush1.bf16.msra.mxu0 %v3499
    %4091 = vmatprep.subr.bf16.mxu0 0
    %4092 = vmatpush1.bf16.msra.mxu0 %v3506
    %4093 = vmatprep.subr.bf16.mxu0 0
    %4094 = vmatpush1.bf16.msra.mxu0 %v3513
    %4095 = vmatprep.subr.bf16.mxu0 0
    %4096 = vmatpush1.bf16.msra.mxu0 %v3520
    %4097 = vmatprep.subr.bf16.mxu0 0
    %4098 = vmatpush1.bf16.msra.mxu0 %v3527
    %4099 = vmatprep.subr.bf16.mxu0 0
    %4100 = vmatpush1.bf16.msra.mxu0 %v3534
    %4101 = vmatprep.subr.bf16.mxu0 0
    %4102 = vmatpush1.bf16.msra.mxu0 0
    %4103 = vmatprep.subr.bf16.mxu0 0
    %4104 = vmatpush1.bf16.msra.mxu0 0
    %4105 = vmatprep.subr.bf16.mxu0 0
    %4106 = vmatpush1.bf16.msra.mxu0 0
    %4107 = vmatprep.subr.bf16.mxu0 0
    %4108 = vmatpush1.bf16.msra.mxu0 0
    %4109 = vmatprep.subr.bf16.mxu0 0
    %4110 = vmatpush1.bf16.msra.mxu0 0
    %4111 = vmatprep.subr.bf16.mxu0 0
    %4112 = vmatpush1.bf16.msra.mxu0 0
    %4113 = vmatprep.subr.bf16.mxu0 0
    %4114 = vmatpush1.bf16.msra.mxu0 0
    %4115 = vmatprep.mubr.bf16.mxu0 %v3711
    %4116 = vmatmul.mubr.bf16.gmra.mrb[0].mxu0 %v2567
    %v4117 = vpop.f32.mrb[0].mxu0
    %v4118 = vadd.f32 %v4069, %v4117
    %v4119 = vpop.f32.mrb[0].mxu0
    %v4120 = vpop.f32.mrb[0].mxu0
    %v4121 = vadd.f32 %v4072, %v4120
    %v4122 = vpop.f32.mrb[0].mxu0
    %4123 = vmatprep.mubr.bf16.mxu0 %v3714
    %4124 = vmatmul.mubr.bf16.gmra.mrb[0].mxu0 %v2571
    %v4125 = vpop.f32.mrb[0].mxu0
    %v4126 = vadd.f32 %v4077, %v4125
    %v4127 = vpop.f32.mrb[0].mxu0
    %v4128 = vpop.f32.mrb[0].mxu0
    %v4129 = vadd.f32 %v4080, %v4128
    %v4130 = vpop.f32.mrb[0].mxu0
    %4131 = vdwg.mxu0
    %v4132 = vxor.u32 %v3804, 2147483648
    %v4133 = vxor.u32 %v3806, 2147483648
    %v4134 = vxor.u32 %v3910, 2147483648
    %v4135 = vxor.u32 %v3912, 2147483648
    %v4136 = vxor.u32 %v4016, 2147483648
    %v4137 = vxor.u32 %v4018, 2147483648
    %v4138 = vxor.u32 %v4118, 2147483648
    %v4139 = vxor.u32 %v3808, 2147483648
    %v4140 = vxor.u32 %v3810, 2147483648
    %v4141 = vxor.u32 %v3914, 2147483648
    %v4142 = vxor.u32 %v3916, 2147483648
    %v4143 = vxor.u32 %v4020, 2147483648
    %v4144 = vxor.u32 %v4022, 2147483648
    %v4145 = vxor.u32 %v4121, 2147483648
    %v4146 = vxor.u32 %v3814, 2147483648
    %v4147 = vxor.u32 %v3816, 2147483648
    %v4148 = vxor.u32 %v3920, 2147483648
    %v4149 = vxor.u32 %v3922, 2147483648
    %v4150 = vxor.u32 %v4026, 2147483648
    %v4151 = vxor.u32 %v4028, 2147483648
    %v4152 = vxor.u32 %v4126, 2147483648
    %v4153 = vxor.u32 %v3818, 2147483648
    %v4154 = vxor.u32 %v3820, 2147483648
    %v4155 = vxor.u32 %v3924, 2147483648
    %v4156 = vxor.u32 %v3926, 2147483648
    %v4157 = vxor.u32 %v4030, 2147483648
    %v4158 = vxor.u32 %v4032, 2147483648
    %v4159 = vxor.u32 %v4129, 2147483648
    %v4160 = vmul.f32 %v4132, 1.442695
    %v4161 = vpow.pop %v4160
    %v4162 = vmul.f32 %v4133, 1.442695
    %v4163 = vpow.pop %v4162
    %v4164 = vmul.f32 %v4134, 1.442695
    %v4165 = vpow.pop %v4164
    %v4166 = vmul.f32 %v4135, 1.442695
    %v4167 = vpow.pop %v4166
    %v4168 = vmul.f32 %v4136, 1.442695
    %v4169 = vpow.pop %v4168
    %v4170 = vmul.f32 %v4137, 1.442695
    %v4171 = vpow.pop %v4170
    %v4172 = vmul.f32 %v4138, 1.442695
    %v4173 = vpow.pop %v4172
    %v4174 = vmul.f32 %v4139, 1.442695
    %v4175 = vpow.pop %v4174
    %v4176 = vmul.f32 %v4140, 1.442695
    %v4177 = vpow.pop %v4176
    %v4178 = vmul.f32 %v4141, 1.442695
    %v4179 = vpow.pop %v4178
    %v4180 = vmul.f32 %v4142, 1.442695
    %v4181 = vpow.pop %v4180
    %v4182 = vmul.f32 %v4143, 1.442695
    %v4183 = vpow.pop %v4182
    %v4184 = vmul.f32 %v4144, 1.442695
    %v4185 = vpow.pop %v4184
    %v4186 = vmul.f32 %v4145, 1.442695
    %v4187 = vpow.pop %v4186
    %v4188 = vmul.f32 %v4146, 1.442695
    %v4189 = vpow.pop %v4188
    %v4190 = vmul.f32 %v4147, 1.442695
    %v4191 = vpow.pop %v4190
    %v4192 = vmul.f32 %v4148, 1.442695
    %v4193 = vpow.pop %v4192
    %v4194 = vmul.f32 %v4149, 1.442695
    %v4195 = vpow.pop %v4194
    %v4196 = vmul.f32 %v4150, 1.442695
    %v4197 = vpow.pop %v4196
    %v4198 = vmul.f32 %v4151, 1.442695
    %v4199 = vpow.pop %v4198
    %v4200 = vmul.f32 %v4152, 1.442695
    %v4201 = vpow.pop %v4200
    %v4202 = vmul.f32 %v4153, 1.442695
    %v4203 = vpow.pop %v4202
    %v4204 = vmul.f32 %v4154, 1.442695
    %v4205 = vpow.pop %v4204
    %v4206 = vmul.f32 %v4155, 1.442695
    %v4207 = vpow.pop %v4206
    %v4208 = vmul.f32 %v4156, 1.442695
    %v4209 = vpow.pop %v4208
    %v4210 = vmul.f32 %v4157, 1.442695
    %v4211 = vpow.pop %v4210
    %v4212 = vmul.f32 %v4158, 1.442695
    %v4213 = vpow.pop %v4212
    %v4214 = vmul.f32 %v4159, 1.442695
    %v4215 = vpow.pop %v4214
    %v4216 = vadd.f32 %v4161, 1.0
    %v4217 = vadd.f32 %v4163, 1.0
    %v4218 = vadd.f32 %v4165, 1.0
    %v4219 = vadd.f32 %v4167, 1.0
    %v4220 = vadd.f32 %v4169, 1.0
    %v4221 = vadd.f32 %v4171, 1.0
    %v4222 = vadd.f32 %v4173, 1.0
    %v4223 = vadd.f32 %v4175, 1.0
    %v4224 = vadd.f32 %v4177, 1.0
    %v4225 = vadd.f32 %v4179, 1.0
    %v4226 = vadd.f32 %v4181, 1.0
    %v4227 = vadd.f32 %v4183, 1.0
    %v4228 = vadd.f32 %v4185, 1.0
    %v4229 = vadd.f32 %v4187, 1.0
    %v4230 = vadd.f32 %v4189, 1.0
    %v4231 = vadd.f32 %v4191, 1.0
    %v4232 = vadd.f32 %v4193, 1.0
    %v4233 = vadd.f32 %v4195, 1.0
    %v4234 = vadd.f32 %v4197, 1.0
    %v4235 = vadd.f32 %v4199, 1.0
    %v4236 = vadd.f32 %v4201, 1.0
    %v4237 = vadd.f32 %v4203, 1.0
    %v4238 = vadd.f32 %v4205, 1.0
    %v4239 = vadd.f32 %v4207, 1.0
    %v4240 = vadd.f32 %v4209, 1.0
    %v4241 = vadd.f32 %v4211, 1.0
    %v4242 = vadd.f32 %v4213, 1.0
    %v4243 = vadd.f32 %v4215, 1.0
    %v4244 = vrcp.pop %v4216
    %v4245 = vmul.f32 1.0, %v4244
    %v4246 = vrcp.pop %v4217
    %v4247 = vmul.f32 1.0, %v4246
    %v4248 = vrcp.pop %v4218
    %v4249 = vmul.f32 1.0, %v4248
    %v4250 = vrcp.pop %v4219
    %v4251 = vmul.f32 1.0, %v4250
    %v4252 = vrcp.pop %v4220
    %v4253 = vmul.f32 1.0, %v4252
    %v4254 = vrcp.pop %v4221
    %v4255 = vmul.f32 1.0, %v4254
    %v4256 = vrcp.pop %v4222
    %v4257 = vmul.f32 1.0, %v4256
    %v4258 = vrcp.pop %v4223
    %v4259 = vmul.f32 1.0, %v4258
    %v4260 = vrcp.pop %v4224
    %v4261 = vmul.f32 1.0, %v4260
    %v4262 = vrcp.pop %v4225
    %v4263 = vmul.f32 1.0, %v4262
    %v4264 = vrcp.pop %v4226
    %v4265 = vmul.f32 1.0, %v4264
    %v4266 = vrcp.pop %v4227
    %v4267 = vmul.f32 1.0, %v4266
    %v4268 = vrcp.pop %v4228
    %v4269 = vmul.f32 1.0, %v4268
    %v4270 = vrcp.pop %v4229
    %v4271 = vmul.f32 1.0, %v4270
    %v4272 = vrcp.pop %v4230
    %v4273 = vmul.f32 1.0, %v4272
    %v4274 = vrcp.pop %v4231
    %v4275 = vmul.f32 1.0, %v4274
    %v4276 = vrcp.pop %v4232
    %v4277 = vmul.f32 1.0, %v4276
    %v4278 = vrcp.pop %v4233
    %v4279 = vmul.f32 1.0, %v4278
    %v4280 = vrcp.pop %v4234
    %v4281 = vmul.f32 1.0, %v4280
    %v4282 = vrcp.pop %v4235
    %v4283 = vmul.f32 1.0, %v4282
    %v4284 = vrcp.pop %v4236
    %v4285 = vmul.f32 1.0, %v4284
    %v4286 = vrcp.pop %v4237
    %v4287 = vmul.f32 1.0, %v4286
    %v4288 = vrcp.pop %v4238
    %v4289 = vmul.f32 1.0, %v4288
    %v4290 = vrcp.pop %v4239
    %v4291 = vmul.f32 1.0, %v4290
    %v4292 = vrcp.pop %v4240
    %v4293 = vmul.f32 1.0, %v4292
    %v4294 = vrcp.pop %v4241
    %v4295 = vmul.f32 1.0, %v4294
    %v4296 = vrcp.pop %v4242
    %v4297 = vmul.f32 1.0, %v4296
    %v4298 = vrcp.pop %v4243
    %v4299 = vmul.f32 1.0, %v4298
    %4300 = vst [vmem:[#allocation2] sm:$0xff] %v4245
    %4301 = vst [vmem:[#allocation2 + $0x8] sm:$0xff] %v4247
    %4302 = vst [vmem:[#allocation2 + $0x10] sm:$0xff] %v4249
    %4303 = vst [vmem:[#allocation2 + $0x18] sm:$0xff] %v4251
    %4304 = vst [vmem:[#allocation2 + $0x20] sm:$0xff] %v4253
    %4305 = vst [vmem:[#allocation2 + $0x28] sm:$0xff] %v4255
    %4306 = vst.msk [vmem:[#allocation2 + $0x30] sm:$0xff] %vm1330, %v4257
    %4307 = vst [vmem:[#allocation2 + $0x38] sm:$0xff] %v4259
    %4308 = vst [vmem:[#allocation2 + $0x40] sm:$0xff] %v4261
    %4309 = vst [vmem:[#allocation2 + $0x48] sm:$0xff] %v4263
    %4310 = vst [vmem:[#allocation2 + $0x50] sm:$0xff] %v4265
    %4311 = vst [vmem:[#allocation2 + $0x58] sm:$0xff] %v4267
    %4312 = vst [vmem:[#allocation2 + $0x60] sm:$0xff] %v4269
    %4313 = vst.msk [vmem:[#allocation2 + $0x68] sm:$0xff] %vm1330, %v4271
    %4314 = vst [vmem:[#allocation2 + $0x70] sm:$0xff] %v4273
    %4315 = vst [vmem:[#allocation2 + $0x78] sm:$0xff] %v4275
    %4316 = vst [vmem:[#allocation2 + $0x80] sm:$0xff] %v4277
    %4317 = vst [vmem:[#allocation2 + $0x88] sm:$0xff] %v4279
    %4318 = vst [vmem:[#allocation2 + $0x90] sm:$0xff] %v4281
    %4319 = vst [vmem:[#allocation2 + $0x98] sm:$0xff] %v4283
    %4320 = vst.msk [vmem:[#allocation2 + $0xa0] sm:$0xff] %vm1330, %v4285
    %4321 = vst [vmem:[#allocation2 + $0xa8] sm:$0xff] %v4287
    %4322 = vst [vmem:[#allocation2 + $0xb0] sm:$0xff] %v4289
    %4323 = vst [vmem:[#allocation2 + $0xb8] sm:$0xff] %v4291
    %4324 = vst [vmem:[#allocation2 + $0xc0] sm:$0xff] %v4293
    %4325 = vst [vmem:[#allocation2 + $0xc8] sm:$0xff] %v4295
    %4326 = vst [vmem:[#allocation2 + $0xd0] sm:$0xff] %v4297
    %4327 = vst.msk [vmem:[#allocation2 + $0xd8] sm:$0xff] %vm1330, %v4299
    // Predicated region
    $region50: #{vqvae_forward.1} parent=1 // pred_check
      _
    $region51: #{vqvae_forward.1} parent=1 // pred_check_branch
      %4329 = sbr.rel (0) target = $region53
    $region52: #{vqvae_forward.1} parent=1 // pred_region
      %s4331 = ssub.s32 3584, 3584
      %4332 = vsyncadd [#allocation3], %s4331
      %s4333 = sshll.u32 [#allocation2], 4
      %s4334 = int_to_ptr.vmem [resolvable:$true] %s4333
      %4339 = dma.vmem_to_hbm [thread:$0]  %s4334, 3584, %s12, [#allocation3], 896, 896, 56
    $region53: #{vqvae_forward.1} parent=1 // pred_fallthru
      _
    // Predicated region
    $region54: #{vqvae_forward.1} parent=1 // pred_check
      _
    $region55: #{vqvae_forward.1} parent=1 // pred_check_branch
      %4341 = sbr.rel (0) target = $region57
    $region56: #{vqvae_forward.1} parent=1 // pred_region
      _
    $region57: #{vqvae_forward.1} parent=1 // pred_fallthru
      _
    // Predicated region
    $region58: #{vqvae_forward.1} parent=1 // pred_check
      _
    $region59: #{vqvae_forward.1} parent=1 // pred_check_branch
      %4343 = sbr.rel (0) target = $region61
    $region60: #{vqvae_forward.1} parent=1 // pred_region
      _
    $region61: #{vqvae_forward.1} parent=1 // pred_fallthru
      _
    // Predicated region
    $region62: #{vqvae_forward.1} parent=1 // pred_check
      _
    $region63: #{vqvae_forward.1} parent=1 // pred_check_branch
      %4345 = sbr.rel (0) target = $region65
    $region64: #{vqvae_forward.1} parent=1 // pred_region
      %4346 = dma.done [#allocation3], 3584
    $region65: #{vqvae_forward.1} parent=1 // pred_fallthru
      _
    // Predicated region
    $region66: #{vqvae_forward.1} parent=1 // pred_check
      _
    $region67: #{vqvae_forward.1} parent=1 // pred_check_branch
      %4348 = sbr.rel (0) target = $region69
    $region68: #{vqvae_forward.1} parent=1 // pred_region
      _
    $region69: #{vqvae_forward.1} parent=1 // pred_fallthru
      _
    // Predicated region
    $region70: #{vqvae_forward.1} parent=1 // pred_check
      _
    $region71: #{vqvae_forward.1} parent=1 // pred_check_branch
      %4350 = sbr.rel (0) target = $region73
    $region72: #{vqvae_forward.1} parent=1 // pred_region
      _
    $region73: #{vqvae_forward.1} parent=1 // pred_fallthru
      _
    %4351 = vsyncpa [#allocation3], 1

</llo_original>
